<compile_context>
chip_gen: v7x
topology: tpu7x:2x2x1
jax: 0.10.0
libtpu: 0.0.40
codegen_flags: <defaults>
</compile_context>

<pallas_src>
import functools

import jax
import jax.numpy as jnp
from jax.experimental import pallas as pl
from jax.experimental.pallas import tpu as pltpu

LANE = 128      # lane width: all kernel outputs are padded to this
TILE_M = 1024   # M tile for the grid-tiled conv-block kernel


# ---------------------------------------------------------------------------
# helpers
# ---------------------------------------------------------------------------
def _round_up(n, m):
    return ((n + m - 1) // m) * m


def _dropout_consts(p):
    if not (0.0 <= p < 1.0):
        raise ValueError("dropout_p must be in [0, 1)")
    thr = min(int(round(p * 4294967296.0)), 4294967295)   # P(bits < thr) == p
    scale = 1.0 / (1.0 - p)
    return thr, scale


def _im2col(x, k):
    """(N,H,W,C) -> (N*Ho*Wo, k*k*C) patches for a valid, stride-1 conv."""
    n, h, w, c = x.shape
    ho, wo = h - k + 1, w - k + 1
    cols = [x[:, dy:dy + ho, dx:dx + wo, :] for dy in range(k) for dx in range(k)]
    patches = jnp.concatenate(cols, axis=-1)          # (N,Ho,Wo,k*k*C), (dy,dx,ci)
    return patches.reshape(n * ho * wo, k * k * c)


def _avgpool2(x):
    n, h, w, c = x.shape
    return x.reshape(n, h // 2, 2, w // 2, 2, c).mean(axis=(2, 4))


# ---------------------------------------------------------------------------
# Pallas kernels
# ---------------------------------------------------------------------------
def _conv_block_kernel(x_ref, w_ref, b_ref, bits_ref, o_ref,
                       *, drop_threshold, keep_scale):
    """one M-tile of: (patches @ W + b) -> dropout -> tanh, 128-lane output."""
    y = jnp.dot(x_ref[...], w_ref[...], preferred_element_type=jnp.float32)
    y = y + b_ref[...]
    keep = bits_ref[...] >= jnp.uint32(drop_threshold)
    y = jnp.where(keep, y * keep_scale, 0.0)
    o_ref[...] = jnp.tanh(y)


def _head_kernel(x_ref, w3_ref, b3_ref, bits3_ref,
                 wf1_ref, bf1_ref, bits4_ref, wf2_ref, bf2_ref, o_ref,
                 *, drop_threshold, keep_scale):
    """Fused conv3 -> dropout -> tanh -> fc1 -> dropout -> tanh -> fc2."""
    thr = jnp.uint32(drop_threshold)
    h = jnp.dot(x_ref[...], w3_ref[...], preferred_element_type=jnp.float32)
    h = h + b3_ref[...]
    h = jnp.where(bits3_ref[...] >= thr, h * keep_scale, 0.0)
    h = jnp.tanh(h)
    h = jnp.dot(h, wf1_ref[...], preferred_element_type=jnp.float32) + bf1_ref[...]
    h = jnp.where(bits4_ref[...] >= thr, h * keep_scale, 0.0)
    h = jnp.tanh(h)
    o_ref[...] = jnp.dot(h, wf2_ref[...], preferred_element_type=jnp.float32) + bf2_ref[...]


# ---------------------------------------------------------------------------
# pallas_call wrappers
# ---------------------------------------------------------------------------
def _conv_block(patches, w_pad, b_pad, key, thr, scale):
    """Grid-tiled matmul+bias+dropout+tanh; weights stay VMEM-resident."""
    m, k = patches.shape
    tile = min(TILE_M, _round_up(m, 8))
    mp = _round_up(m, tile)
    if mp != m:
        patches = jnp.pad(patches, ((0, mp - m), (0, 0)))
    bits = jax.random.bits(key, (mp, LANE), dtype=jnp.uint32)

    out = pl.pallas_call(
        functools.partial(_conv_block_kernel,
                          drop_threshold=thr, keep_scale=scale),
        out_shape=jax.ShapeDtypeStruct((mp, LANE), jnp.float32),
        grid=(mp // tile,),
        in_specs=[
            pl.BlockSpec((tile, k), lambda i: (i, 0)),      # patches tile
            pl.BlockSpec((k, LANE), lambda i: (0, 0)),      # weights: resident
            pl.BlockSpec((1, LANE), lambda i: (0, 0)),      # bias: resident
            pl.BlockSpec((tile, LANE), lambda i: (i, 0)),   # dropout bits tile
        ],
        out_specs=pl.BlockSpec((tile, LANE), lambda i: (i, 0)),
        compiler_params=pltpu.CompilerParams(
            dimension_semantics=("parallel",)),
    )(patches, w_pad, b_pad, bits)
    return out[:m]


def lenet5_mcdropout_forward(x_nchw, params, dropout_p, key,
                             n_mc=1, out_features=10):
    """Runs n_mc MC-dropout forward passes in one stacked batch.

    Returns logits of shape (n_mc, B, out_features)."""
    b = x_nchw.shape[0]
    n = n_mc * b
    thr, scale = _dropout_consts(dropout_p)

    x = jnp.transpose(x_nchw, (0, 2, 3, 1))               # NHWC (B,28,28,1)
    x = jnp.tile(x, (n_mc, 1, 1, 1))                      # stack MC samples
    x = jnp.pad(x, ((0, 0), (2, 2), (2, 2), (0, 0)))      # conv1 padding=2

    k1, k2, k3, k4 = jax.random.split(key, 4)

    # conv block 1: Conv(1->6,5,pad2) -> MCDropout -> Tanh -> AvgPool(2)
    p1 = _im2col(x, 5)                                    # (n*784, 25)
    h1 = _conv_block(p1, params["w1"], params["b1"], k1, thr, scale)
    h1 = h1[:, :6].reshape(n, 28, 28, 6)
    h1 = _avgpool2(h1)                                    # (n,14,14,6)

    # conv block 2: Conv(6->16,5) -> MCDropout -> Tanh -> AvgPool(2)
    p2 = _im2col(h1, 5)                                   # (n*100, 150)
    h2 = _conv_block(p2, params["w2"], params["b2"], k2, thr, scale)
    h2 = h2[:, :16].reshape(n, 10, 10, 16)
    h2 = _avgpool2(h2)                                    # (n,5,5,16)

    # fused head: Conv(16->120,5) -> drop -> tanh -> fc1 -> drop -> tanh -> fc2
    p3 = _im2col(h2, 5)                                   # (n, 400)  (== flatten)
    bits3 = jax.random.bits(k3, (n, LANE), dtype=jnp.uint32)
    bits4 = jax.random.bits(k4, (n, LANE), dtype=jnp.uint32)
    out = pl.pallas_call(
        functools.partial(_head_kernel, drop_threshold=thr, keep_scale=scale),
        out_shape=jax.ShapeDtypeStruct((n, LANE), jnp.float32),
        in_specs=[pl.BlockSpec(memory_space=pltpu.MemorySpace.VMEM)] * 9,
        out_specs=pl.BlockSpec(memory_space=pltpu.MemorySpace.VMEM),
    )(p3, params["w3"], params["b3"], bits3,
      params["wf1"], params["bf1"], bits4, params["wf2"], params["bf2"])

    logits = out[:, :out_features]                        # drop lane padding
    return logits.reshape(n_mc, b, out_features)


# ---------------------------------------------------------------------------
# parameter init (PyTorch-default-like uniform; stored pre-padded to 128 lanes)
# ---------------------------------------------------------------------------
def init_params(key, out_features=10):
    def u(k, shape, fan_in):
        bound = 1.0 / (fan_in ** 0.5)
        return jax.random.uniform(k, shape, jnp.float32, -bound, bound)

    def conv_params(k, ks, cin, cout):
        kw, kb = jax.random.split(k)
        fan_in = cin * ks * ks
        w = u(kw, (ks, ks, cin, cout), fan_in).reshape(ks * ks * cin, cout)  # HWIO
        bias = u(kb, (cout,), fan_in)
        wp = jnp.zeros((ks * ks * cin, LANE), jnp.float32).at[:, :cout].set(w)
        bp = jnp.zeros((1, LANE), jnp.float32).at[0, :cout].set(bias)
        return wp, bp

    def fc_params(k, fin, fout):
        kw, kb = jax.random.split(k)
        w = u(kw, (fin, fout), fin)
        bias = u(kb, (fout,), fin)
        wp = jnp.zeros((LANE, LANE), jnp.float32).at[:fin, :fout].set(w)
        bp = jnp.zeros((1, LANE), jnp.float32).at[0, :fout].set(bias)
        return wp, bp

    ks = jax.random.split(key, 5)
    w1, b1 = conv_params(ks[0], 5, 1, 6)
    w2, b2 = conv_params(ks[1], 5, 6, 16)
    w3, b3 = conv_params(ks[2], 5, 16, 120)
    wf1, bf1 = fc_params(ks[3], 120, 84)
    wf2, bf2 = fc_params(ks[4], 84, out_features)
    return dict(w1=w1, b1=b1, w2=w2, b2=b2, w3=w3, b3=b3,
                wf1=wf1, bf1=bf1, wf2=wf2, bf2=bf2)


if __name__ == "__main__":
    # LeNet5 requires 28x28 single-channel inputs (MNIST-like).
    B, C, H, W = 4, 1, 28, 28
    dropout_p = 0.25
    n_mc = 4                      # MC samples stacked into one batched pass
    out_features = 10

    root = jax.random.PRNGKey(0)
    kx, kp, kd = jax.random.split(root, 3)
    x = jax.random.normal(kx, (B, C, H, W), dtype=jnp.float32)
    params = init_params(kp, out_features)

    fwd = jax.jit(lenet5_mcdropout_forward, static_argnums=(2, 4, 5))
    logits = fwd(x, params, dropout_p, kd, n_mc, out_features)
    logits = jax.block_until_ready(logits)

    assert logits.shape == (n_mc, B, out_features)
    assert bool(jnp.all(jnp.isfinite(logits)))
    print("KERNEL_OK")
</pallas_src>

<mosaic_0001>
module attributes {stable_mosaic.version = 11 : i64} {
  func.func @_conv_block_kernel(%arg0: i32, %arg1: memref<1024x25xf32, #tpu.memory_space<vmem>>, %arg2: memref<25x128xf32, #tpu.memory_space<vmem>>, %arg3: memref<1x128xf32, #tpu.memory_space<vmem>>, %arg4: memref<1024x128xi32, #tpu.memory_space<vmem>>, %arg5: memref<1024x128xf32, #tpu.memory_space<vmem>>) attributes {dimension_semantics = [#tpu.dimension_semantics<parallel>], iteration_bounds = array<i64: 13>, scalar_prefetch = 0 : i64, scratch_operands = 0 : i64, tpu.core_type = #tpu.core_type<tc>, window_params = [{transform_indices = @transform_0, window_bounds = array<i64: 1024, 25>}, {pipeline_mode = #tpu.pipeline_mode<synchronous>, transform_indices = @transform_1, window_bounds = array<i64: 25, 128>}, {pipeline_mode = #tpu.pipeline_mode<synchronous>, transform_indices = @transform_2, window_bounds = array<i64: 1, 128>}, {transform_indices = @transform_3, window_bounds = array<i64: 1024, 128>}, {transform_indices = @transform_4, window_bounds = array<i64: 1024, 128>}]} {
    %c0 = arith.constant 0 : index
    %c0_0 = arith.constant 0 : index
    %0 = vector.load %arg1[%c0, %c0_0] : memref<1024x25xf32, #tpu.memory_space<vmem>>, vector<1024x25xf32>
    %c0_1 = arith.constant 0 : index
    %c0_2 = arith.constant 0 : index
    %1 = vector.load %arg2[%c0_1, %c0_2] : memref<25x128xf32, #tpu.memory_space<vmem>>, vector<25x128xf32>
    %cst = arith.constant dense<0.000000e+00> : vector<1024x128xf32>
    %2 = tpu.matmul %0, %1, %cst {dimension_numbers = #tpu.dot_dimension_numbers<[1], [0], [0], [1], [0, 0, 1, 1], [], []>} : vector<1024x25xf32>, vector<25x128xf32>, vector<1024x128xf32> -> vector<1024x128xf32>
    %c0_3 = arith.constant 0 : index
    %c0_4 = arith.constant 0 : index
    %3 = vector.load %arg3[%c0_3, %c0_4] : memref<1x128xf32, #tpu.memory_space<vmem>>, vector<1x128xf32>
    %4 = vector.broadcast %3 : vector<1x128xf32> to vector<1024x128xf32>
    %5 = arith.addf %2, %4 : vector<1024x128xf32>
    %c0_5 = arith.constant 0 : index
    %c0_6 = arith.constant 0 : index
    %6 = vector.load %arg4[%c0_5, %c0_6] : memref<1024x128xi32, #tpu.memory_space<vmem>>, vector<1024x128xi32>
    %c1073741824_i32 = arith.constant 1073741824 : i32
    %7 = vector.broadcast %c1073741824_i32 : i32 to vector<1024x128xi32>
    %8 = arith.cmpi uge, %6, %7 : vector<1024x128xi32>
    %cst_7 = arith.constant 1.33333337 : f32
    %9 = vector.broadcast %cst_7 : f32 to vector<1024x128xf32>
    %10 = arith.mulf %5, %9 : vector<1024x128xf32>
    %cst_8 = arith.constant 0.000000e+00 : f32
    %11 = vector.broadcast %cst_8 : f32 to vector<1024x128xf32>
    %12 = arith.select %8, %10, %11 : vector<1024x128xi1>, vector<1024x128xf32>
    %13 = math.tanh %12 : vector<1024x128xf32>
    %c0_9 = arith.constant 0 : index
    %c0_10 = arith.constant 0 : index
    %14 = vector.load %arg5[%c0_9, %c0_10] : memref<1024x128xf32, #tpu.memory_space<vmem>>, vector<1024x128xf32>
    tpu.vector_store %arg5[%c0_9, %c0_10], %13 {strides = array<i32>} : memref<1024x128xf32, #tpu.memory_space<vmem>>, vector<1024x128xf32>,
    return
  }
  func.func @transform_0(%arg0: i32) -> (i32, i32) {
    %c0_i32 = arith.constant 0 : i32
    %c0_i32_0 = arith.constant 0 : i32
    return %arg0, %c0_i32 : i32, i32
  }
  func.func @transform_1(%arg0: i32) -> (i32, i32) {
    %c0_i32 = arith.constant 0 : i32
    %c0_i32_0 = arith.constant 0 : i32
    %c0_i32_1 = arith.constant 0 : i32
    return %c0_i32, %c0_i32_0 : i32, i32
  }
  func.func @transform_2(%arg0: i32) -> (i32, i32) {
    %c0_i32 = arith.constant 0 : i32
    %c0_i32_0 = arith.constant 0 : i32
    %c0_i32_1 = arith.constant 0 : i32
    return %c0_i32, %c0_i32_0 : i32, i32
  }
  func.func @transform_3(%arg0: i32) -> (i32, i32) {
    %c0_i32 = arith.constant 0 : i32
    %c0_i32_0 = arith.constant 0 : i32
    return %arg0, %c0_i32 : i32, i32
  }
  func.func @transform_4(%arg0: i32) -> (i32, i32) {
    %c0_i32 = arith.constant 0 : i32
    %c0_i32_0 = arith.constant 0 : i32
    return %arg0, %c0_i32 : i32, i32
  }
}

module attributes {stable_mosaic.version = 11 : i64} {
  func.func @_conv_block_kernel(%arg0: i32, %arg1: memref<1024x150xf32, #tpu.memory_space<vmem>>, %arg2: memref<150x128xf32, #tpu.memory_space<vmem>>, %arg3: memref<1x128xf32, #tpu.memory_space<vmem>>, %arg4: memref<1024x128xi32, #tpu.memory_space<vmem>>, %arg5: memref<1024x128xf32, #tpu.memory_space<vmem>>) attributes {dimension_semantics = [#tpu.dimension_semantics<parallel>], iteration_bounds = array<i64: 2>, scalar_prefetch = 0 : i64, scratch_operands = 0 : i64, tpu.core_type = #tpu.core_type<tc>, window_params = [{transform_indices = @transform_0, window_bounds = array<i64: 1024, 150>}, {pipeline_mode = #tpu.pipeline_mode<synchronous>, transform_indices = @transform_1, window_bounds = array<i64: 150, 128>}, {pipeline_mode = #tpu.pipeline_mode<synchronous>, transform_indices = @transform_2, window_bounds = array<i64: 1, 128>}, {transform_indices = @transform_3, window_bounds = array<i64: 1024, 128>}, {transform_indices = @transform_4, window_bounds = array<i64: 1024, 128>}]} {
    %c0 = arith.constant 0 : index
    %c0_0 = arith.constant 0 : index
    %0 = vector.load %arg1[%c0, %c0_0] : memref<1024x150xf32, #tpu.memory_space<vmem>>, vector<1024x150xf32>
    %c0_1 = arith.constant 0 : index
    %c0_2 = arith.constant 0 : index
    %1 = vector.load %arg2[%c0_1, %c0_2] : memref<150x128xf32, #tpu.memory_space<vmem>>, vector<150x128xf32>
    %cst = arith.constant dense<0.000000e+00> : vector<1024x128xf32>
    %2 = tpu.matmul %0, %1, %cst {dimension_numbers = #tpu.dot_dimension_numbers<[1], [0], [0], [1], [0, 0, 1, 1], [], []>} : vector<1024x150xf32>, vector<150x128xf32>, vector<1024x128xf32> -> vector<1024x128xf32>
    %c0_3 = arith.constant 0 : index
    %c0_4 = arith.constant 0 : index
    %3 = vector.load %arg3[%c0_3, %c0_4] : memref<1x128xf32, #tpu.memory_space<vmem>>, vector<1x128xf32>
    %4 = vector.broadcast %3 : vector<1x128xf32> to vector<1024x128xf32>
    %5 = arith.addf %2, %4 : vector<1024x128xf32>
    %c0_5 = arith.constant 0 : index
    %c0_6 = arith.constant 0 : index
    %6 = vector.load %arg4[%c0_5, %c0_6] : memref<1024x128xi32, #tpu.memory_space<vmem>>, vector<1024x128xi32>
    %c1073741824_i32 = arith.constant 1073741824 : i32
    %7 = vector.broadcast %c1073741824_i32 : i32 to vector<1024x128xi32>
    %8 = arith.cmpi uge, %6, %7 : vector<1024x128xi32>
    %cst_7 = arith.constant 1.33333337 : f32
    %9 = vector.broadcast %cst_7 : f32 to vector<1024x128xf32>
    %10 = arith.mulf %5, %9 : vector<1024x128xf32>
    %cst_8 = arith.constant 0.000000e+00 : f32
    %11 = vector.broadcast %cst_8 : f32 to vector<1024x128xf32>
    %12 = arith.select %8, %10, %11 : vector<1024x128xi1>, vector<1024x128xf32>
    %13 = math.tanh %12 : vector<1024x128xf32>
    %c0_9 = arith.constant 0 : index
    %c0_10 = arith.constant 0 : index
    %14 = vector.load %arg5[%c0_9, %c0_10] : memref<1024x128xf32, #tpu.memory_space<vmem>>, vector<1024x128xf32>
    tpu.vector_store %arg5[%c0_9, %c0_10], %13 {strides = array<i32>} : memref<1024x128xf32, #tpu.memory_space<vmem>>, vector<1024x128xf32>,
    return
  }
  func.func @transform_0(%arg0: i32) -> (i32, i32) {
    %c0_i32 = arith.constant 0 : i32
    %c0_i32_0 = arith.constant 0 : i32
    return %arg0, %c0_i32 : i32, i32
  }
  func.func @transform_1(%arg0: i32) -> (i32, i32) {
    %c0_i32 = arith.constant 0 : i32
    %c0_i32_0 = arith.constant 0 : i32
    %c0_i32_1 = arith.constant 0 : i32
    return %c0_i32, %c0_i32_0 : i32, i32
  }
  func.func @transform_2(%arg0: i32) -> (i32, i32) {
    %c0_i32 = arith.constant 0 : i32
    %c0_i32_0 = arith.constant 0 : i32
    %c0_i32_1 = arith.constant 0 : i32
    return %c0_i32, %c0_i32_0 : i32, i32
  }
  func.func @transform_3(%arg0: i32) -> (i32, i32) {
    %c0_i32 = arith.constant 0 : i32
    %c0_i32_0 = arith.constant 0 : i32
    return %arg0, %c0_i32 : i32, i32
  }
  func.func @transform_4(%arg0: i32) -> (i32, i32) {
    %c0_i32 = arith.constant 0 : i32
    %c0_i32_0 = arith.constant 0 : i32
    return %arg0, %c0_i32 : i32, i32
  }
}

module attributes {stable_mosaic.version = 11 : i64} {
  func.func @_head_kernel(%arg0: memref<16x400xf32, #tpu.memory_space<vmem>>, %arg1: memref<400x128xf32, #tpu.memory_space<vmem>>, %arg2: memref<1x128xf32, #tpu.memory_space<vmem>>, %arg3: memref<16x128xi32, #tpu.memory_space<vmem>>, %arg4: memref<128x128xf32, #tpu.memory_space<vmem>>, %arg5: memref<1x128xf32, #tpu.memory_space<vmem>>, %arg6: memref<16x128xi32, #tpu.memory_space<vmem>>, %arg7: memref<128x128xf32, #tpu.memory_space<vmem>>, %arg8: memref<1x128xf32, #tpu.memory_space<vmem>>, %arg9: memref<16x128xf32, #tpu.memory_space<vmem>>) attributes {dimension_semantics = [], scalar_prefetch = 0 : i64, scratch_operands = 0 : i64, tpu.core_type = #tpu.core_type<tc>} {
    %c0 = arith.constant 0 : index
    %c0_0 = arith.constant 0 : index
    %0 = vector.load %arg0[%c0, %c0_0] : memref<16x400xf32, #tpu.memory_space<vmem>>, vector<16x400xf32>
    %c0_1 = arith.constant 0 : index
    %c0_2 = arith.constant 0 : index
    %1 = vector.load %arg1[%c0_1, %c0_2] : memref<400x128xf32, #tpu.memory_space<vmem>>, vector<400x128xf32>
    %cst = arith.constant dense<0.000000e+00> : vector<16x128xf32>
    %2 = tpu.matmul %0, %1, %cst {dimension_numbers = #tpu.dot_dimension_numbers<[1], [0], [0], [1], [0, 0, 1, 1], [], []>} : vector<16x400xf32>, vector<400x128xf32>, vector<16x128xf32> -> vector<16x128xf32>
    %c0_3 = arith.constant 0 : index
    %c0_4 = arith.constant 0 : index
    %3 = vector.load %arg2[%c0_3, %c0_4] : memref<1x128xf32, #tpu.memory_space<vmem>>, vector<1x128xf32>
    %4 = vector.broadcast %3 : vector<1x128xf32> to vector<16x128xf32>
    %5 = arith.addf %2, %4 : vector<16x128xf32>
    %c0_5 = arith.constant 0 : index
    %c0_6 = arith.constant 0 : index
    %6 = vector.load %arg3[%c0_5, %c0_6] : memref<16x128xi32, #tpu.memory_space<vmem>>, vector<16x128xi32>
    %c1073741824_i32 = arith.constant 1073741824 : i32
    %7 = vector.broadcast %c1073741824_i32 : i32 to vector<16x128xi32>
    %8 = arith.cmpi uge, %6, %7 : vector<16x128xi32>
    %cst_7 = arith.constant 1.33333337 : f32
    %9 = vector.broadcast %cst_7 : f32 to vector<16x128xf32>
    %10 = arith.mulf %5, %9 : vector<16x128xf32>
    %cst_8 = arith.constant 0.000000e+00 : f32
    %11 = vector.broadcast %cst_8 : f32 to vector<16x128xf32>
    %12 = arith.select %8, %10, %11 : vector<16x128xi1>, vector<16x128xf32>
    %13 = math.tanh %12 : vector<16x128xf32>
    %c0_9 = arith.constant 0 : index
    %c0_10 = arith.constant 0 : index
    %14 = vector.load %arg4[%c0_9, %c0_10] : memref<128x128xf32, #tpu.memory_space<vmem>>, vector<128x128xf32>
    %cst_11 = arith.constant dense<0.000000e+00> : vector<16x128xf32>
    %15 = tpu.matmul %13, %14, %cst_11 {dimension_numbers = #tpu.dot_dimension_numbers<[1], [0], [0], [1], [0, 0, 1, 1], [], []>} : vector<16x128xf32>, vector<128x128xf32>, vector<16x128xf32> -> vector<16x128xf32>
    %c0_12 = arith.constant 0 : index
    %c0_13 = arith.constant 0 : index
    %16 = vector.load %arg5[%c0_12, %c0_13] : memref<1x128xf32, #tpu.memory_space<vmem>>, vector<1x128xf32>
    %17 = vector.broadcast %16 : vector<1x128xf32> to vector<16x128xf32>
    %18 = arith.addf %15, %17 : vector<16x128xf32>
    %c0_14 = arith.constant 0 : index
    %c0_15 = arith.constant 0 : index
    %19 = vector.load %arg6[%c0_14, %c0_15] : memref<16x128xi32, #tpu.memory_space<vmem>>, vector<16x128xi32>
    %c1073741824_i32_16 = arith.constant 1073741824 : i32
    %20 = vector.broadcast %c1073741824_i32_16 : i32 to vector<16x128xi32>
    %21 = arith.cmpi uge, %19, %20 : vector<16x128xi32>
    %cst_17 = arith.constant 1.33333337 : f32
    %22 = vector.broadcast %cst_17 : f32 to vector<16x128xf32>
    %23 = arith.mulf %18, %22 : vector<16x128xf32>
    %cst_18 = arith.constant 0.000000e+00 : f32
    %24 = vector.broadcast %cst_18 : f32 to vector<16x128xf32>
    %25 = arith.select %21, %23, %24 : vector<16x128xi1>, vector<16x128xf32>
    %26 = math.tanh %25 : vector<16x128xf32>
    %c0_19 = arith.constant 0 : index
    %c0_20 = arith.constant 0 : index
    %27 = vector.load %arg7[%c0_19, %c0_20] : memref<128x128xf32, #tpu.memory_space<vmem>>, vector<128x128xf32>
    %cst_21 = arith.constant dense<0.000000e+00> : vector<16x128xf32>
    %28 = tpu.matmul %26, %27, %cst_21 {dimension_numbers = #tpu.dot_dimension_numbers<[1], [0], [0], [1], [0, 0, 1, 1], [], []>} : vector<16x128xf32>, vector<128x128xf32>, vector<16x128xf32> -> vector<16x128xf32>
    %c0_22 = arith.constant 0 : index
    %c0_23 = arith.constant 0 : index
    %29 = vector.load %arg8[%c0_22, %c0_23] : memref<1x128xf32, #tpu.memory_space<vmem>>, vector<1x128xf32>
    %30 = vector.broadcast %29 : vector<1x128xf32> to vector<16x128xf32>
    %31 = arith.addf %28, %30 : vector<16x128xf32>
    %c0_24 = arith.constant 0 : index
    %c0_25 = arith.constant 0 : index
    %32 = vector.load %arg9[%c0_24, %c0_25] : memref<16x128xf32, #tpu.memory_space<vmem>>, vector<16x128xf32>
    tpu.vector_store %arg9[%c0_24, %c0_25], %31 {strides = array<i32>} : memref<16x128xf32, #tpu.memory_space<vmem>>, vector<16x128xf32>,
    return
  }
}

</mosaic_0001>

<llo_original>
// kernel: lenet5_mcdropout_forward.9
$region0: #{lenet5_mcdropout_forward.9}
  #allocation0 [shape = 'u32[]', space=smem, size = 0x4, offset = 0x4, fixed_abs, tag = 'smem constant byte address 0x4 - core index']
  #allocation1 [shape = 'u32[144,128]{1,0:T(1,128)}', space=vmem, size = 0x12000, scoped, tag = 'internal scratch']
  %s0 = inlined_call_operand.vmem [shape: f32[13312,25], index: 0, kind: input, shape index: {}]
  %s1 = inlined_call_operand.vmem [shape: f32[25,128], index: 1, kind: input, shape index: {}]
  %s2 = inlined_call_operand.vmem [shape: f32[1,128], index: 2, kind: input, shape index: {}]
  %s3 = inlined_call_operand.vmem [shape: u32[13312,128], index: 3, kind: input, shape index: {}]
  %s4 = inlined_call_operand.vmem [shape: f32[13312,128], index: 4, kind: output, shape index: {}]
  %s5 = sld [smem:[#allocation0]]
  $region49: #{lenet5_mcdropout_forward.9} parent=0
    _
  %s7 = ssub.s32 1, %s5
  %s8 = scalar_select 0, %s7, %s5
  loop: start=0, step=1, limit=15
  $region2: #{lenet5_mcdropout_forward.9} parent=0 // loop_pre_header
    _
  $region3: #{lenet5_mcdropout_forward.9} parent=0 // loop_header
    %s10 = sphi 0, %s14
    %p11 = scmp.ge.s32.totalorder %s10, 15
    %s20 = sphi 0, %s22
    %s23 = sphi 0, %s20
    %s24 = sphi 0, %s23
    %s40 = sphi 0, %s24
    %s44 = sphi 0, %s44
    %s46 = sphi 0, %s44
    %s47 = sphi 0, %s46
    %s61 = sphi 0, %s47
    %s65 = sphi 0, %s65
    %s67 = sphi 0, %s65
    %s68 = sphi 0, %s67
    %s82 = sphi 0, %s68
    %s88 = sphi 0, %s90
    %s91 = sphi 0, %s88
    %s92 = sphi 0, %s91
    %s108 = sphi 0, %s92
    %s114 = sphi 0, %s116
    %s117 = sphi 0, %s114
    %s118 = sphi 0, %s117
    %s134 = sphi 0, %s118
  $region4: #{lenet5_mcdropout_forward.9} parent=0 // loop_header_branch
    %13 = sbr.rel (%p11) target = $region8
  $region5: #{lenet5_mcdropout_forward.9} parent=0 // loop_body
    %s15 = ssub.s32 %s10, 1
    %s16 = ssub.s32 %s10, 2
    %s17 = sadd.s32 %s10, 1
    %s18 = ssub.s32 %s10, %s17
    %p19 = scmp.eq.s32.totalorder %s18, 0
    %s21 = sadd.s32 %s20, 1
    %s22 = scalar_select %p19, %s20, %s21
    %p25 = pneg %p19
    %p26 = scmp.eq.s32.totalorder %s10, 12
    %p27 = por %p25, %p26
    %p28 = scmp.ne.s32.totalorder %s20, %s23
    %p29 = scmp.eq.s32.totalorder %s10, 0
    %p30 = por %p28, %p29
    %p31 = scmp.ne.s32.totalorder %s20, %s23
    %p32 = scmp.eq.s32.totalorder %s15, 12
    %p33 = por %p31, %p32
    %p34 = scmp.ne.s32.totalorder %s23, %s24
    %p35 = scmp.eq.s32.totalorder %s15, 0
    %p36 = por %p34, %p35
    %p37 = scmp.ne.s32.totalorder %s23, %s24
    %p38 = scmp.eq.s32.totalorder %s16, 12
    %p39 = por %p37, %p38
    %p41 = scmp.ne.s32.totalorder %s24, %s40
    %p42 = scmp.eq.s32.totalorder %s16, 0
    %p43 = por %p41, %p42
    %s45 = sadd.s32 %s44, 1
    %p48 = scmp.eq.s32.totalorder %s10, 12
    %p49 = scmp.ne.s32.totalorder %s44, %s46
    %p50 = scmp.eq.s32.totalorder %s10, 0
    %p51 = por %p49, %p50
    %p52 = scmp.ne.s32.totalorder %s44, %s46
    %p53 = scmp.eq.s32.totalorder %s15, 12
    %p54 = por %p52, %p53
    %p55 = scmp.ne.s32.totalorder %s46, %s47
    %p56 = scmp.eq.s32.totalorder %s15, 0
    %p57 = por %p55, %p56
    %p58 = scmp.ne.s32.totalorder %s46, %s47
    %p59 = scmp.eq.s32.totalorder %s16, 12
    %p60 = por %p58, %p59
    %p62 = scmp.ne.s32.totalorder %s47, %s61
    %p63 = scmp.eq.s32.totalorder %s16, 0
    %p64 = por %p62, %p63
    %s66 = sadd.s32 %s65, 1
    %p69 = scmp.eq.s32.totalorder %s10, 12
    %p70 = scmp.ne.s32.totalorder %s65, %s67
    %p71 = scmp.eq.s32.totalorder %s10, 0
    %p72 = por %p70, %p71
    %p73 = scmp.ne.s32.totalorder %s65, %s67
    %p74 = scmp.eq.s32.totalorder %s15, 12
    %p75 = por %p73, %p74
    %p76 = scmp.ne.s32.totalorder %s67, %s68
    %p77 = scmp.eq.s32.totalorder %s15, 0
    %p78 = por %p76, %p77
    %p79 = scmp.ne.s32.totalorder %s67, %s68
    %p80 = scmp.eq.s32.totalorder %s16, 12
    %p81 = por %p79, %p80
    %p83 = scmp.ne.s32.totalorder %s68, %s82
    %p84 = scmp.eq.s32.totalorder %s16, 0
    %p85 = por %p83, %p84
    %s86 = ssub.s32 %s10, %s17
    %p87 = scmp.eq.s32.totalorder %s86, 0
    %s89 = sadd.s32 %s88, 1
    %s90 = scalar_select %p87, %s88, %s89
    %p93 = pneg %p87
    %p94 = scmp.eq.s32.totalorder %s10, 12
    %p95 = por %p93, %p94
    %p96 = scmp.ne.s32.totalorder %s88, %s91
    %p97 = scmp.eq.s32.totalorder %s10, 0
    %p98 = por %p96, %p97
    %p99 = scmp.ne.s32.totalorder %s88, %s91
    %p100 = scmp.eq.s32.totalorder %s15, 12
    %p101 = por %p99, %p100
    %p102 = scmp.ne.s32.totalorder %s91, %s92
    %p103 = scmp.eq.s32.totalorder %s15, 0
    %p104 = por %p102, %p103
    %p105 = scmp.ne.s32.totalorder %s91, %s92
    %p106 = scmp.eq.s32.totalorder %s16, 12
    %p107 = por %p105, %p106
    %p109 = scmp.ne.s32.totalorder %s92, %s108
    %p110 = scmp.eq.s32.totalorder %s16, 0
    %p111 = por %p109, %p110
    %s112 = ssub.s32 %s10, %s17
    %p113 = scmp.eq.s32.totalorder %s112, 0
    %s115 = sadd.s32 %s114, 1
    %s116 = scalar_select %p113, %s114, %s115
    %p119 = pneg %p113
    %p120 = scmp.eq.s32.totalorder %s10, 12
    %p121 = por %p119, %p120
    %p122 = scmp.ne.s32.totalorder %s114, %s117
    %p123 = scmp.eq.s32.totalorder %s10, 0
    %p124 = por %p122, %p123
    %p125 = scmp.ne.s32.totalorder %s114, %s117
    %p126 = scmp.eq.s32.totalorder %s15, 12
    %p127 = por %p125, %p126
    %p128 = scmp.ne.s32.totalorder %s117, %s118
    %p129 = scmp.eq.s32.totalorder %s15, 0
    %p130 = por %p128, %p129
    %p131 = scmp.ne.s32.totalorder %s117, %s118
    %p132 = scmp.eq.s32.totalorder %s16, 12
    %p133 = por %p131, %p132
    %p135 = scmp.ne.s32.totalorder %s118, %s134
    %p136 = scmp.eq.s32.totalorder %s16, 0
    %p137 = por %p135, %p136
    %p138 = scmp.le.s32.totalorder 1, %s10
    %p139 = scmp.lt.s32.totalorder %s10, 14
    %p140 = pnand %p138, %p139
    %p141 = pneg %p140
    // Predicated region
    $region9: #{lenet5_mcdropout_forward.9} parent=5 // pred_check
      _
    $region10: #{lenet5_mcdropout_forward.9} parent=5 // pred_check_branch
      %143 = sbr.rel (%p140) target = $region12
    $region11: #{lenet5_mcdropout_forward.9} parent=5 // pred_region
      %s144 = ssub.s32 %s10, 1
      // Predicated region
      $region13: #{lenet5_mcdropout_forward.9} parent=11 // pred_check
        %p145 = pneg %p57
      $region14: #{lenet5_mcdropout_forward.9} parent=11 // pred_check_branch
        %147 = sbr.rel (%p145) target = $region16
      $region15: #{lenet5_mcdropout_forward.9} parent=11 // pred_region
        _
      $region16: #{lenet5_mcdropout_forward.9} parent=11 // pred_fallthru
        _
      // Predicated region
      $region17: #{lenet5_mcdropout_forward.9} parent=11 // pred_check
        %p148 = pneg %p78
      $region18: #{lenet5_mcdropout_forward.9} parent=11 // pred_check_branch
        %150 = sbr.rel (%p148) target = $region20
      $region19: #{lenet5_mcdropout_forward.9} parent=11 // pred_region
        _
      $region20: #{lenet5_mcdropout_forward.9} parent=11 // pred_fallthru
        _
    $region12: #{lenet5_mcdropout_forward.9} parent=5 // pred_fallthru
      _
    %p151 = scmp.lt.s32.totalorder %s10, 13
    // Predicated region
    $region21: #{lenet5_mcdropout_forward.9} parent=5 // pred_check
      %p152 = pneg %p151
    $region22: #{lenet5_mcdropout_forward.9} parent=5 // pred_check_branch
      %154 = sbr.rel (%p152) target = $region24
    $region23: #{lenet5_mcdropout_forward.9} parent=5 // pred_region
      // Predicated region
      $region25: #{lenet5_mcdropout_forward.9} parent=23 // pred_check
        %p155 = pneg %p30
      $region26: #{lenet5_mcdropout_forward.9} parent=23 // pred_check_branch
        %157 = sbr.rel (%p155) target = $region28
      $region27: #{lenet5_mcdropout_forward.9} parent=23 // pred_region
        %s158 = smul.u32 128, %s10
        %p159 = scmp.lt.s32.totalorder %s158, 1663
        %s160 = scalar_select %p159, %s158, 1663
        %s161 = smul.addr %s160, 8
        %s162 = scalar_lea.vmem %s0, %s161
        %s163 = smul.u32 128, %s10
      $region28: #{lenet5_mcdropout_forward.9} parent=23 // pred_fallthru
        _
      // Predicated region
      $region29: #{lenet5_mcdropout_forward.9} parent=23 // pred_check
        %p164 = pneg %p98
      $region30: #{lenet5_mcdropout_forward.9} parent=23 // pred_check_branch
        %166 = sbr.rel (%p164) target = $region32
      $region31: #{lenet5_mcdropout_forward.9} parent=23 // pred_region
        %s167 = smul.u32 128, %s10
        %p168 = scmp.lt.s32.totalorder %s167, 1663
        %s169 = scalar_select %p168, %s167, 1663
        %s170 = smul.addr %s169, 8
        %s171 = scalar_lea.vmem %s3, %s170
        %s172 = smul.u32 128, %s10
      $region32: #{lenet5_mcdropout_forward.9} parent=23 // pred_fallthru
        _
    $region24: #{lenet5_mcdropout_forward.9} parent=5 // pred_fallthru
      _
    %p173 = scmp.le.s32.totalorder 1, %s10
    %p174 = scmp.lt.s32.totalorder %s10, 14
    %p175 = pnand %p173, %p174
    %p176 = pneg %p175
    // Predicated region
    $region33: #{lenet5_mcdropout_forward.9} parent=5 // pred_check
      _
    $region34: #{lenet5_mcdropout_forward.9} parent=5 // pred_check_branch
      %178 = sbr.rel (%p175) target = $region36
    $region35: #{lenet5_mcdropout_forward.9} parent=5 // pred_region
      %s179 = ssub.s32 %s10, 1
      %s180 = smul.u32 128, %s15
      %p181 = scmp.lt.s32.totalorder %s180, 1663
      %s182 = scalar_select %p181, %s180, 1663
      %s183 = smul.addr %s182, 8
      %s184 = scalar_lea.vmem %s0, %s183
      %p185 = pneg %p36
      %p186 = pneg %p33
      %p187 = pneg %p57
      %p188 = pneg %p54
      %p189 = pneg %p78
      %p190 = pneg %p75
      %s191 = smul.u32 128, %s15
      %p192 = scmp.lt.s32.totalorder %s191, 1663
      %s193 = scalar_select %p192, %s191, 1663
      %s194 = smul.addr %s193, 8
      %s195 = scalar_lea.vmem %s3, %s194
      %p196 = pneg %p104
      %p197 = pneg %p101
      %p198 = pneg %p130
      %p199 = pneg %p127
      %s200 = smul.u32 128, %s15
      %p201 = scmp.lt.s32.totalorder %s200, 1663
      %s202 = scalar_select %p201, %s200, 1663
      %s203 = smul.addr %s202, 8
      %s204 = scalar_lea.vmem %s4, %s203
      %s205 = smul.u32 128, %s15
      %p206 = scmp.lt.s32.totalorder %s205, 1663
      %s207 = scalar_select %p206, %s205, 1663
      %s208 = smul.addr %s207, 8
      %s209 = scalar_lea.vmem %s0, %s208
      %s210 = smul.u32 128, %s15
      %s211 = smul.u32 128, %s15
      %p212 = scmp.lt.s32.totalorder %s211, 1663
      %s213 = scalar_select %p212, %s211, 1663
      %s214 = smul.addr %s213, 8
      %s215 = scalar_lea.vmem %s3, %s214
      %s216 = smul.u32 128, %s15
      %s217 = smul.u32 128, %s15
      %p218 = scmp.lt.s32.totalorder %s217, 1663
      %s219 = scalar_select %p218, %s217, 1663
      %s220 = smul.addr %s219, 8
      %s221 = scalar_lea.vmem %s4, %s220
      %s222 = smul.u32 128, %s15
      %v223 = vld [vmem:[%s209] sm:$0xff]
      %v224 = vld [vmem:[%s209 + $0x8] sm:$0xff]
      %v225 = vld [vmem:[%s209 + $0x10] sm:$0xff]
      %v226 = vld [vmem:[%s209 + $0x18] sm:$0xff]
      %v227 = vld [vmem:[%s209 + $0x20] sm:$0xff]
      %v228 = vld [vmem:[%s209 + $0x28] sm:$0xff]
      %v229 = vld [vmem:[%s209 + $0x30] sm:$0xff]
      %v230 = vld [vmem:[%s209 + $0x38] sm:$0xff]
      %v231 = vld [vmem:[%s209 + $0x40] sm:$0xff]
      %v232 = vld [vmem:[%s209 + $0x48] sm:$0xff]
      %v233 = vld [vmem:[%s209 + $0x50] sm:$0xff]
      %v234 = vld [vmem:[%s209 + $0x58] sm:$0xff]
      %v235 = vld [vmem:[%s209 + $0x60] sm:$0xff]
      %v236 = vld [vmem:[%s209 + $0x68] sm:$0xff]
      %v237 = vld [vmem:[%s209 + $0x70] sm:$0xff]
      %v238 = vld [vmem:[%s209 + $0x78] sm:$0xff]
      %v239 = vld [vmem:[%s209 + $0x80] sm:$0xff]
      %v240 = vld [vmem:[%s209 + $0x88] sm:$0xff]
      %v241 = vld [vmem:[%s209 + $0x90] sm:$0xff]
      %v242 = vld [vmem:[%s209 + $0x98] sm:$0xff]
      %v243 = vld [vmem:[%s209 + $0xa0] sm:$0xff]
      %v244 = vld [vmem:[%s209 + $0xa8] sm:$0xff]
      %v245 = vld [vmem:[%s209 + $0xb0] sm:$0xff]
      %v246 = vld [vmem:[%s209 + $0xb8] sm:$0xff]
      %v247 = vld [vmem:[%s209 + $0xc0] sm:$0xff]
      %v248 = vld [vmem:[%s209 + $0xc8] sm:$0xff]
      %v249 = vld [vmem:[%s209 + $0xd0] sm:$0xff]
      %v250 = vld [vmem:[%s209 + $0xd8] sm:$0xff]
      %v251 = vld [vmem:[%s209 + $0xe0] sm:$0xff]
      %v252 = vld [vmem:[%s209 + $0xe8] sm:$0xff]
      %v253 = vld [vmem:[%s209 + $0xf0] sm:$0xff]
      %v254 = vld [vmem:[%s209 + $0xf8] sm:$0xff]
      %v255 = vld [vmem:[%s209 + $0x100] sm:$0xff]
      %v256 = vld [vmem:[%s209 + $0x108] sm:$0xff]
      %v257 = vld [vmem:[%s209 + $0x110] sm:$0xff]
      %v258 = vld [vmem:[%s209 + $0x118] sm:$0xff]
      %v259 = vld [vmem:[%s209 + $0x120] sm:$0xff]
      %v260 = vld [vmem:[%s209 + $0x128] sm:$0xff]
      %v261 = vld [vmem:[%s209 + $0x130] sm:$0xff]
      %v262 = vld [vmem:[%s209 + $0x138] sm:$0xff]
      %v263 = vld [vmem:[%s209 + $0x140] sm:$0xff]
      %v264 = vld [vmem:[%s209 + $0x148] sm:$0xff]
      %v265 = vld [vmem:[%s209 + $0x150] sm:$0xff]
      %v266 = vld [vmem:[%s209 + $0x158] sm:$0xff]
      %v267 = vld [vmem:[%s209 + $0x160] sm:$0xff]
      %v268 = vld [vmem:[%s209 + $0x168] sm:$0xff]
      %v269 = vld [vmem:[%s209 + $0x170] sm:$0xff]
      %v270 = vld [vmem:[%s209 + $0x178] sm:$0xff]
      %v271 = vld [vmem:[%s209 + $0x180] sm:$0xff]
      %v272 = vld [vmem:[%s209 + $0x188] sm:$0xff]
      %v273 = vld [vmem:[%s209 + $0x190] sm:$0xff]
      %v274 = vld [vmem:[%s209 + $0x198] sm:$0xff]
      %v275 = vld [vmem:[%s209 + $0x1a0] sm:$0xff]
      %v276 = vld [vmem:[%s209 + $0x1a8] sm:$0xff]
      %v277 = vld [vmem:[%s209 + $0x1b0] sm:$0xff]
      %v278 = vld [vmem:[%s209 + $0x1b8] sm:$0xff]
      %v279 = vld [vmem:[%s209 + $0x1c0] sm:$0xff]
      %v280 = vld [vmem:[%s209 + $0x1c8] sm:$0xff]
      %v281 = vld [vmem:[%s209 + $0x1d0] sm:$0xff]
      %v282 = vld [vmem:[%s209 + $0x1d8] sm:$0xff]
      %v283 = vld [vmem:[%s209 + $0x1e0] sm:$0xff]
      %v284 = vld [vmem:[%s209 + $0x1e8] sm:$0xff]
      %v285 = vld [vmem:[%s209 + $0x1f0] sm:$0xff]
      %v286 = vld [vmem:[%s209 + $0x1f8] sm:$0xff]
      %v287 = vld [vmem:[%s209 + $0x200] sm:$0xff]
      %v288 = vld [vmem:[%s209 + $0x208] sm:$0xff]
      %v289 = vld [vmem:[%s209 + $0x210] sm:$0xff]
      %v290 = vld [vmem:[%s209 + $0x218] sm:$0xff]
      %v291 = vld [vmem:[%s209 + $0x220] sm:$0xff]
      %v292 = vld [vmem:[%s209 + $0x228] sm:$0xff]
      %v293 = vld [vmem:[%s209 + $0x230] sm:$0xff]
      %v294 = vld [vmem:[%s209 + $0x238] sm:$0xff]
      %v295 = vld [vmem:[%s209 + $0x240] sm:$0xff]
      %v296 = vld [vmem:[%s209 + $0x248] sm:$0xff]
      %v297 = vld [vmem:[%s209 + $0x250] sm:$0xff]
      %v298 = vld [vmem:[%s209 + $0x258] sm:$0xff]
      %v299 = vld [vmem:[%s209 + $0x260] sm:$0xff]
      %v300 = vld [vmem:[%s209 + $0x268] sm:$0xff]
      %v301 = vld [vmem:[%s209 + $0x270] sm:$0xff]
      %v302 = vld [vmem:[%s209 + $0x278] sm:$0xff]
      %v303 = vld [vmem:[%s209 + $0x280] sm:$0xff]
      %v304 = vld [vmem:[%s209 + $0x288] sm:$0xff]
      %v305 = vld [vmem:[%s209 + $0x290] sm:$0xff]
      %v306 = vld [vmem:[%s209 + $0x298] sm:$0xff]
      %v307 = vld [vmem:[%s209 + $0x2a0] sm:$0xff]
      %v308 = vld [vmem:[%s209 + $0x2a8] sm:$0xff]
      %v309 = vld [vmem:[%s209 + $0x2b0] sm:$0xff]
      %v310 = vld [vmem:[%s209 + $0x2b8] sm:$0xff]
      %v311 = vld [vmem:[%s209 + $0x2c0] sm:$0xff]
      %v312 = vld [vmem:[%s209 + $0x2c8] sm:$0xff]
      %v313 = vld [vmem:[%s209 + $0x2d0] sm:$0xff]
      %v314 = vld [vmem:[%s209 + $0x2d8] sm:$0xff]
      %v315 = vld [vmem:[%s209 + $0x2e0] sm:$0xff]
      %v316 = vld [vmem:[%s209 + $0x2e8] sm:$0xff]
      %v317 = vld [vmem:[%s209 + $0x2f0] sm:$0xff]
      %v318 = vld [vmem:[%s209 + $0x2f8] sm:$0xff]
      %v319 = vld [vmem:[%s209 + $0x300] sm:$0xff]
      %v320 = vld [vmem:[%s209 + $0x308] sm:$0xff]
      %v321 = vld [vmem:[%s209 + $0x310] sm:$0xff]
      %v322 = vld [vmem:[%s209 + $0x318] sm:$0xff]
      %v323 = vld [vmem:[%s209 + $0x320] sm:$0xff]
      %v324 = vld [vmem:[%s209 + $0x328] sm:$0xff]
      %v325 = vld [vmem:[%s209 + $0x330] sm:$0xff]
      %v326 = vld [vmem:[%s209 + $0x338] sm:$0xff]
      %v327 = vld [vmem:[%s209 + $0x340] sm:$0xff]
      %v328 = vld [vmem:[%s209 + $0x348] sm:$0xff]
      %v329 = vld [vmem:[%s209 + $0x350] sm:$0xff]
      %v330 = vld [vmem:[%s209 + $0x358] sm:$0xff]
      %v331 = vld [vmem:[%s209 + $0x360] sm:$0xff]
      %v332 = vld [vmem:[%s209 + $0x368] sm:$0xff]
      %v333 = vld [vmem:[%s209 + $0x370] sm:$0xff]
      %v334 = vld [vmem:[%s209 + $0x378] sm:$0xff]
      %v335 = vld [vmem:[%s209 + $0x380] sm:$0xff]
      %v336 = vld [vmem:[%s209 + $0x388] sm:$0xff]
      %v337 = vld [vmem:[%s209 + $0x390] sm:$0xff]
      %v338 = vld [vmem:[%s209 + $0x398] sm:$0xff]
      %v339 = vld [vmem:[%s209 + $0x3a0] sm:$0xff]
      %v340 = vld [vmem:[%s209 + $0x3a8] sm:$0xff]
      %v341 = vld [vmem:[%s209 + $0x3b0] sm:$0xff]
      %v342 = vld [vmem:[%s209 + $0x3b8] sm:$0xff]
      %v343 = vld [vmem:[%s209 + $0x3c0] sm:$0xff]
      %v344 = vld [vmem:[%s209 + $0x3c8] sm:$0xff]
      %v345 = vld [vmem:[%s209 + $0x3d0] sm:$0xff]
      %v346 = vld [vmem:[%s209 + $0x3d8] sm:$0xff]
      %v347 = vld [vmem:[%s209 + $0x3e0] sm:$0xff]
      %v348 = vld [vmem:[%s209 + $0x3e8] sm:$0xff]
      %v349 = vld [vmem:[%s209 + $0x3f0] sm:$0xff]
      %v350 = vld [vmem:[%s209 + $0x3f8] sm:$0xff]
      %v351 = vld [vmem:[%s1] sm:$0xff]
      %v352 = vld [vmem:[%s1 + $0x8] sm:$0xff]
      %v353 = vld [vmem:[%s1 + $0x10] sm:$0xff]
      %v354 = vld [vmem:[%s1 + $0x18] sm:$0x1]
      %v355 = vld [vmem:[%s2] sm:$0x1]
      %v357 = vlaneseq
      %v358 = vshrl.u32 %v357, 7
      %v359 = vsub.s32 0, %v358
      %v360 = vrot.slane %v355, %v359
      %vm362 = vcmask 203776
      %v364 = vsel %vm362, %v223, 0
      %v367 = vsel %vm362, %v224, 0
      %v370 = vsel %vm362, %v225, 0
      %v373 = vsel %vm362, %v226, 0
      %v376 = vsel %vm362, %v227, 0
      %v379 = vsel %vm362, %v228, 0
      %v382 = vsel %vm362, %v229, 0
      %v385 = vsel %vm362, %v230, 0
      %v388 = vsel %vm362, %v231, 0
      %v391 = vsel %vm362, %v232, 0
      %v394 = vsel %vm362, %v233, 0
      %v397 = vsel %vm362, %v234, 0
      %v400 = vsel %vm362, %v235, 0
      %v403 = vsel %vm362, %v236, 0
      %v406 = vsel %vm362, %v237, 0
      %v409 = vsel %vm362, %v238, 0
      %v412 = vsel %vm362, %v239, 0
      %v415 = vsel %vm362, %v240, 0
      %v418 = vsel %vm362, %v241, 0
      %v421 = vsel %vm362, %v242, 0
      %v424 = vsel %vm362, %v243, 0
      %v427 = vsel %vm362, %v244, 0
      %v430 = vsel %vm362, %v245, 0
      %v433 = vsel %vm362, %v246, 0
      %v436 = vsel %vm362, %v247, 0
      %v439 = vsel %vm362, %v248, 0
      %v442 = vsel %vm362, %v249, 0
      %v445 = vsel %vm362, %v250, 0
      %v448 = vsel %vm362, %v251, 0
      %v451 = vsel %vm362, %v252, 0
      %v454 = vsel %vm362, %v253, 0
      %v457 = vsel %vm362, %v254, 0
      %v460 = vsel %vm362, %v255, 0
      %v463 = vsel %vm362, %v256, 0
      %v466 = vsel %vm362, %v257, 0
      %v469 = vsel %vm362, %v258, 0
      %v472 = vsel %vm362, %v259, 0
      %v475 = vsel %vm362, %v260, 0
      %v478 = vsel %vm362, %v261, 0
      %v481 = vsel %vm362, %v262, 0
      %v484 = vsel %vm362, %v263, 0
      %v487 = vsel %vm362, %v264, 0
      %v490 = vsel %vm362, %v265, 0
      %v493 = vsel %vm362, %v266, 0
      %v496 = vsel %vm362, %v267, 0
      %v499 = vsel %vm362, %v268, 0
      %v502 = vsel %vm362, %v269, 0
      %v505 = vsel %vm362, %v270, 0
      %v508 = vsel %vm362, %v271, 0
      %v511 = vsel %vm362, %v272, 0
      %v514 = vsel %vm362, %v273, 0
      %v517 = vsel %vm362, %v274, 0
      %v520 = vsel %vm362, %v275, 0
      %v523 = vsel %vm362, %v276, 0
      %v526 = vsel %vm362, %v277, 0
      %v529 = vsel %vm362, %v278, 0
      %v532 = vsel %vm362, %v279, 0
      %v535 = vsel %vm362, %v280, 0
      %v538 = vsel %vm362, %v281, 0
      %v541 = vsel %vm362, %v282, 0
      %v544 = vsel %vm362, %v283, 0
      %v547 = vsel %vm362, %v284, 0
      %v550 = vsel %vm362, %v285, 0
      %v553 = vsel %vm362, %v286, 0
      %v556 = vsel %vm362, %v287, 0
      %v559 = vsel %vm362, %v288, 0
      %v562 = vsel %vm362, %v289, 0
      %v565 = vsel %vm362, %v290, 0
      %v568 = vsel %vm362, %v291, 0
      %v571 = vsel %vm362, %v292, 0
      %v574 = vsel %vm362, %v293, 0
      %v577 = vsel %vm362, %v294, 0
      %v580 = vsel %vm362, %v295, 0
      %v583 = vsel %vm362, %v296, 0
      %v586 = vsel %vm362, %v297, 0
      %v589 = vsel %vm362, %v298, 0
      %v592 = vsel %vm362, %v299, 0
      %v595 = vsel %vm362, %v300, 0
      %v598 = vsel %vm362, %v301, 0
      %v601 = vsel %vm362, %v302, 0
      %v604 = vsel %vm362, %v303, 0
      %v607 = vsel %vm362, %v304, 0
      %v610 = vsel %vm362, %v305, 0
      %v613 = vsel %vm362, %v306, 0
      %v616 = vsel %vm362, %v307, 0
      %v619 = vsel %vm362, %v308, 0
      %v622 = vsel %vm362, %v309, 0
      %v625 = vsel %vm362, %v310, 0
      %v628 = vsel %vm362, %v311, 0
      %v631 = vsel %vm362, %v312, 0
      %v634 = vsel %vm362, %v313, 0
      %v637 = vsel %vm362, %v314, 0
      %v640 = vsel %vm362, %v315, 0
      %v643 = vsel %vm362, %v316, 0
      %v646 = vsel %vm362, %v317, 0
      %v649 = vsel %vm362, %v318, 0
      %v652 = vsel %vm362, %v319, 0
      %v655 = vsel %vm362, %v320, 0
      %v658 = vsel %vm362, %v321, 0
      %v661 = vsel %vm362, %v322, 0
      %v664 = vsel %vm362, %v323, 0
      %v667 = vsel %vm362, %v324, 0
      %v670 = vsel %vm362, %v325, 0
      %v673 = vsel %vm362, %v326, 0
      %v676 = vsel %vm362, %v327, 0
      %v679 = vsel %vm362, %v328, 0
      %v682 = vsel %vm362, %v329, 0
      %v685 = vsel %vm362, %v330, 0
      %v688 = vsel %vm362, %v331, 0
      %v691 = vsel %vm362, %v332, 0
      %v694 = vsel %vm362, %v333, 0
      %v697 = vsel %vm362, %v334, 0
      %v700 = vsel %vm362, %v335, 0
      %v703 = vsel %vm362, %v336, 0
      %v706 = vsel %vm362, %v337, 0
      %v709 = vsel %vm362, %v338, 0
      %v712 = vsel %vm362, %v339, 0
      %v715 = vsel %vm362, %v340, 0
      %v718 = vsel %vm362, %v341, 0
      %v721 = vsel %vm362, %v342, 0
      %v724 = vsel %vm362, %v343, 0
      %v727 = vsel %vm362, %v344, 0
      %v730 = vsel %vm362, %v345, 0
      %v733 = vsel %vm362, %v346, 0
      %v736 = vsel %vm362, %v347, 0
      %v739 = vsel %vm362, %v348, 0
      %v742 = vsel %vm362, %v349, 0
      %v745 = vsel %vm362, %v350, 0
      %vm747 = vcmask 1040384
      %v749 = vsel %vm747, %v354, 0
      %751 = vmatprep.subr.mxu0 0.0
      %752 = vmatpush1.msra.mxu0 %v351
      %753 = vmatprep.subr.mxu0 0.0
      %754 = vmatpush1.msra.mxu0 %v352
      %755 = vmatprep.subr.mxu0 0.0
      %756 = vmatpush1.msra.mxu0 %v353
      %757 = vmatprep.subr.mxu0 0.0
      %758 = vmatpush1.msra.mxu0 %v749
      %759 = vmatprep.subr.mxu0 0.0
      %760 = vmatpush1.msra.mxu0 0.0
      %761 = vmatprep.subr.mxu0 0.0
      %762 = vmatpush1.msra.mxu0 0.0
      %763 = vmatprep.subr.mxu0 0.0
      %764 = vmatpush1.msra.mxu0 0.0
      %765 = vmatprep.subr.mxu0 0.0
      %766 = vmatpush1.msra.mxu0 0.0
      %767 = vmatprep.subr.mxu0 0.0
      %768 = vmatpush1.msra.mxu0 0.0
      %769 = vmatprep.subr.mxu0 0.0
      %770 = vmatpush1.msra.mxu0 0.0
      %771 = vmatprep.subr.mxu0 0.0
      %772 = vmatpush1.msra.mxu0 0.0
      %773 = vmatprep.subr.mxu0 0.0
      %774 = vmatpush1.msra.mxu0 0.0
      %775 = vmatprep.subr.mxu0 0.0
      %776 = vmatpush1.msra.mxu0 0.0
      %777 = vmatprep.subr.mxu0 0.0
      %778 = vmatpush1.msra.mxu0 0.0
      %779 = vmatprep.subr.mxu0 0.0
      %780 = vmatpush1.msra.mxu0 0.0
      %781 = vmatprep.subr.mxu0 0.0
      %782 = vmatpush1.msra.mxu0 0.0
      %783 = vmatprep.subr.mxu0 0.0
      %784 = vmatpush1.msra.mxu0 0.0
      %785 = vmatprep.subr.mxu0 0.0
      %786 = vmatpush1.msra.mxu0 0.0
      %787 = vmatprep.subr.mxu0 0.0
      %788 = vmatpush1.msra.mxu0 0.0
      %789 = vmatprep.subr.mxu0 0.0
      %790 = vmatpush1.msra.mxu0 0.0
      %791 = vmatprep.subr.mxu0 0.0
      %792 = vmatpush1.msra.mxu0 0.0
      %793 = vmatprep.subr.mxu0 0.0
      %794 = vmatpush1.msra.mxu0 0.0
      %795 = vmatprep.subr.mxu0 0.0
      %796 = vmatpush1.msra.mxu0 0.0
      %797 = vmatprep.subr.mxu0 0.0
      %798 = vmatpush1.msra.mxu0 0.0
      %799 = vmatprep.subr.mxu0 0.0
      %800 = vmatpush1.msra.mxu0 0.0
      %801 = vmatprep.subr.mxu0 0.0
      %802 = vmatpush1.msra.mxu0 0.0
      %803 = vmatprep.subr.mxu0 0.0
      %804 = vmatpush1.msra.mxu0 0.0
      %805 = vmatprep.subr.mxu0 0.0
      %806 = vmatpush1.msra.mxu0 0.0
      %807 = vmatprep.subr.mxu0 0.0
      %808 = vmatpush1.msra.mxu0 0.0
      %809 = vmatprep.subr.mxu0 0.0
      %810 = vmatpush1.msra.mxu0 0.0
      %811 = vmatprep.subr.mxu0 0.0
      %812 = vmatpush1.msra.mxu0 0.0
      %813 = vmatprep.subr.mxu0 0.0
      %814 = vmatpush1.msra.mxu0 0.0
      %815 = vmatprep.mubr.f32.mxu0 0.0
      %816 = vmatmul.mubr.f32.gmra.mrb[0].mxu0 %v364
      %v817 = vpop.f32.mrb[0].mxu0
      %v818 = vadd.f32 %v360, %v817
      %v819 = vpop.f32.mrb[0].mxu0
      %820 = vmatprep.mubr.f32.mxu0 0.0
      %821 = vmatmul.mubr.f32.gmra.mrb[0].mxu0 %v367
      %v822 = vpop.f32.mrb[0].mxu0
      %v823 = vadd.f32 %v360, %v822
      %v824 = vpop.f32.mrb[0].mxu0
      %825 = vmatprep.mubr.f32.mxu0 0.0
      %826 = vmatmul.mubr.f32.gmra.mrb[0].mxu0 %v370
      %v827 = vpop.f32.mrb[0].mxu0
      %v828 = vadd.f32 %v360, %v827
      %v829 = vpop.f32.mrb[0].mxu0
      %830 = vmatprep.mubr.f32.mxu0 0.0
      %831 = vmatmul.mubr.f32.gmra.mrb[0].mxu0 %v373
      %v832 = vpop.f32.mrb[0].mxu0
      %v833 = vadd.f32 %v360, %v832
      %v834 = vpop.f32.mrb[0].mxu0
      %835 = vmatprep.mubr.f32.mxu0 0.0
      %836 = vmatmul.mubr.f32.gmra.mrb[0].mxu0 %v376
      %v837 = vpop.f32.mrb[0].mxu0
      %v838 = vadd.f32 %v360, %v837
      %v839 = vpop.f32.mrb[0].mxu0
      %840 = vmatprep.mubr.f32.mxu0 0.0
      %841 = vmatmul.mubr.f32.gmra.mrb[0].mxu0 %v379
      %v842 = vpop.f32.mrb[0].mxu0
      %v843 = vadd.f32 %v360, %v842
      %v844 = vpop.f32.mrb[0].mxu0
      %845 = vmatprep.mubr.f32.mxu0 0.0
      %846 = vmatmul.mubr.f32.gmra.mrb[0].mxu0 %v382
      %v847 = vpop.f32.mrb[0].mxu0
      %v848 = vadd.f32 %v360, %v847
      %v849 = vpop.f32.mrb[0].mxu0
      %850 = vmatprep.mubr.f32.mxu0 0.0
      %851 = vmatmul.mubr.f32.gmra.mrb[0].mxu0 %v385
      %v852 = vpop.f32.mrb[0].mxu0
      %v853 = vadd.f32 %v360, %v852
      %v854 = vpop.f32.mrb[0].mxu0
      %855 = vmatprep.mubr.f32.mxu0 0.0
      %856 = vmatmul.mubr.f32.gmra.mrb[0].mxu0 %v388
      %v857 = vpop.f32.mrb[0].mxu0
      %v858 = vadd.f32 %v360, %v857
      %v859 = vpop.f32.mrb[0].mxu0
      %860 = vmatprep.mubr.f32.mxu0 0.0
      %861 = vmatmul.mubr.f32.gmra.mrb[0].mxu0 %v391
      %v862 = vpop.f32.mrb[0].mxu0
      %v863 = vadd.f32 %v360, %v862
      %v864 = vpop.f32.mrb[0].mxu0
      %865 = vmatprep.mubr.f32.mxu0 0.0
      %866 = vmatmul.mubr.f32.gmra.mrb[0].mxu0 %v394
      %v867 = vpop.f32.mrb[0].mxu0
      %v868 = vadd.f32 %v360, %v867
      %v869 = vpop.f32.mrb[0].mxu0
      %870 = vmatprep.mubr.f32.mxu0 0.0
      %871 = vmatmul.mubr.f32.gmra.mrb[0].mxu0 %v397
      %v872 = vpop.f32.mrb[0].mxu0
      %v873 = vadd.f32 %v360, %v872
      %v874 = vpop.f32.mrb[0].mxu0
      %875 = vmatprep.mubr.f32.mxu0 0.0
      %876 = vmatmul.mubr.f32.gmra.mrb[0].mxu0 %v400
      %v877 = vpop.f32.mrb[0].mxu0
      %v878 = vadd.f32 %v360, %v877
      %v879 = vpop.f32.mrb[0].mxu0
      %880 = vmatprep.mubr.f32.mxu0 0.0
      %881 = vmatmul.mubr.f32.gmra.mrb[0].mxu0 %v403
      %v882 = vpop.f32.mrb[0].mxu0
      %v883 = vadd.f32 %v360, %v882
      %v884 = vpop.f32.mrb[0].mxu0
      %885 = vmatprep.mubr.f32.mxu0 0.0
      %886 = vmatmul.mubr.f32.gmra.mrb[0].mxu0 %v406
      %v887 = vpop.f32.mrb[0].mxu0
      %v888 = vadd.f32 %v360, %v887
      %v889 = vpop.f32.mrb[0].mxu0
      %890 = vmatprep.mubr.f32.mxu0 0.0
      %891 = vmatmul.mubr.f32.gmra.mrb[0].mxu0 %v409
      %v892 = vpop.f32.mrb[0].mxu0
      %v893 = vadd.f32 %v360, %v892
      %v894 = vpop.f32.mrb[0].mxu0
      %895 = vmatprep.mubr.f32.mxu0 0.0
      %896 = vmatmul.mubr.f32.gmra.mrb[0].mxu0 %v412
      %v897 = vpop.f32.mrb[0].mxu0
      %v898 = vadd.f32 %v360, %v897
      %v899 = vpop.f32.mrb[0].mxu0
      %900 = vmatprep.mubr.f32.mxu0 0.0
      %901 = vmatmul.mubr.f32.gmra.mrb[0].mxu0 %v415
      %v902 = vpop.f32.mrb[0].mxu0
      %v903 = vadd.f32 %v360, %v902
      %v904 = vpop.f32.mrb[0].mxu0
      %905 = vmatprep.mubr.f32.mxu0 0.0
      %906 = vmatmul.mubr.f32.gmra.mrb[0].mxu0 %v418
      %v907 = vpop.f32.mrb[0].mxu0
      %v908 = vadd.f32 %v360, %v907
      %v909 = vpop.f32.mrb[0].mxu0
      %910 = vmatprep.mubr.f32.mxu0 0.0
      %911 = vmatmul.mubr.f32.gmra.mrb[0].mxu0 %v421
      %v912 = vpop.f32.mrb[0].mxu0
      %v913 = vadd.f32 %v360, %v912
      %v914 = vpop.f32.mrb[0].mxu0
      %915 = vmatprep.mubr.f32.mxu0 0.0
      %916 = vmatmul.mubr.f32.gmra.mrb[0].mxu0 %v424
      %v917 = vpop.f32.mrb[0].mxu0
      %v918 = vadd.f32 %v360, %v917
      %v919 = vpop.f32.mrb[0].mxu0
      %920 = vmatprep.mubr.f32.mxu0 0.0
      %921 = vmatmul.mubr.f32.gmra.mrb[0].mxu0 %v427
      %v922 = vpop.f32.mrb[0].mxu0
      %v923 = vadd.f32 %v360, %v922
      %v924 = vpop.f32.mrb[0].mxu0
      %925 = vmatprep.mubr.f32.mxu0 0.0
      %926 = vmatmul.mubr.f32.gmra.mrb[0].mxu0 %v430
      %v927 = vpop.f32.mrb[0].mxu0
      %v928 = vadd.f32 %v360, %v927
      %v929 = vpop.f32.mrb[0].mxu0
      %930 = vmatprep.mubr.f32.mxu0 0.0
      %931 = vmatmul.mubr.f32.gmra.mrb[0].mxu0 %v433
      %v932 = vpop.f32.mrb[0].mxu0
      %v933 = vadd.f32 %v360, %v932
      %v934 = vpop.f32.mrb[0].mxu0
      %935 = vmatprep.mubr.f32.mxu0 0.0
      %936 = vmatmul.mubr.f32.gmra.mrb[0].mxu0 %v436
      %v937 = vpop.f32.mrb[0].mxu0
      %v938 = vadd.f32 %v360, %v937
      %v939 = vpop.f32.mrb[0].mxu0
      %940 = vmatprep.mubr.f32.mxu0 0.0
      %941 = vmatmul.mubr.f32.gmra.mrb[0].mxu0 %v439
      %v942 = vpop.f32.mrb[0].mxu0
      %v943 = vadd.f32 %v360, %v942
      %v944 = vpop.f32.mrb[0].mxu0
      %945 = vmatprep.mubr.f32.mxu0 0.0
      %946 = vmatmul.mubr.f32.gmra.mrb[0].mxu0 %v442
      %v947 = vpop.f32.mrb[0].mxu0
      %v948 = vadd.f32 %v360, %v947
      %v949 = vpop.f32.mrb[0].mxu0
      %950 = vmatprep.mubr.f32.mxu0 0.0
      %951 = vmatmul.mubr.f32.gmra.mrb[0].mxu0 %v445
      %v952 = vpop.f32.mrb[0].mxu0
      %v953 = vadd.f32 %v360, %v952
      %v954 = vpop.f32.mrb[0].mxu0
      %955 = vmatprep.mubr.f32.mxu0 0.0
      %956 = vmatmul.mubr.f32.gmra.mrb[0].mxu0 %v448
      %v957 = vpop.f32.mrb[0].mxu0
      %v958 = vadd.f32 %v360, %v957
      %v959 = vpop.f32.mrb[0].mxu0
      %960 = vmatprep.mubr.f32.mxu0 0.0
      %961 = vmatmul.mubr.f32.gmra.mrb[0].mxu0 %v451
      %v962 = vpop.f32.mrb[0].mxu0
      %v963 = vadd.f32 %v360, %v962
      %v964 = vpop.f32.mrb[0].mxu0
      %965 = vmatprep.mubr.f32.mxu0 0.0
      %966 = vmatmul.mubr.f32.gmra.mrb[0].mxu0 %v454
      %v967 = vpop.f32.mrb[0].mxu0
      %v968 = vadd.f32 %v360, %v967
      %v969 = vpop.f32.mrb[0].mxu0
      %970 = vmatprep.mubr.f32.mxu0 0.0
      %971 = vmatmul.mubr.f32.gmra.mrb[0].mxu0 %v457
      %v972 = vpop.f32.mrb[0].mxu0
      %v973 = vadd.f32 %v360, %v972
      %v974 = vpop.f32.mrb[0].mxu0
      %975 = vmatprep.mubr.f32.mxu0 0.0
      %976 = vmatmul.mubr.f32.gmra.mrb[0].mxu0 %v460
      %v977 = vpop.f32.mrb[0].mxu0
      %v978 = vadd.f32 %v360, %v977
      %v979 = vpop.f32.mrb[0].mxu0
      %980 = vmatprep.mubr.f32.mxu0 0.0
      %981 = vmatmul.mubr.f32.gmra.mrb[0].mxu0 %v463
      %v982 = vpop.f32.mrb[0].mxu0
      %v983 = vadd.f32 %v360, %v982
      %v984 = vpop.f32.mrb[0].mxu0
      %985 = vmatprep.mubr.f32.mxu0 0.0
      %986 = vmatmul.mubr.f32.gmra.mrb[0].mxu0 %v466
      %v987 = vpop.f32.mrb[0].mxu0
      %v988 = vadd.f32 %v360, %v987
      %v989 = vpop.f32.mrb[0].mxu0
      %990 = vmatprep.mubr.f32.mxu0 0.0
      %991 = vmatmul.mubr.f32.gmra.mrb[0].mxu0 %v469
      %v992 = vpop.f32.mrb[0].mxu0
      %v993 = vadd.f32 %v360, %v992
      %v994 = vpop.f32.mrb[0].mxu0
      %995 = vmatprep.mubr.f32.mxu0 0.0
      %996 = vmatmul.mubr.f32.gmra.mrb[0].mxu0 %v472
      %v997 = vpop.f32.mrb[0].mxu0
      %v998 = vadd.f32 %v360, %v997
      %v999 = vpop.f32.mrb[0].mxu0
      %1000 = vmatprep.mubr.f32.mxu0 0.0
      %1001 = vmatmul.mubr.f32.gmra.mrb[0].mxu0 %v475
      %v1002 = vpop.f32.mrb[0].mxu0
      %v1003 = vadd.f32 %v360, %v1002
      %v1004 = vpop.f32.mrb[0].mxu0
      %1005 = vmatprep.mubr.f32.mxu0 0.0
      %1006 = vmatmul.mubr.f32.gmra.mrb[0].mxu0 %v478
      %v1007 = vpop.f32.mrb[0].mxu0
      %v1008 = vadd.f32 %v360, %v1007
      %v1009 = vpop.f32.mrb[0].mxu0
      %1010 = vmatprep.mubr.f32.mxu0 0.0
      %1011 = vmatmul.mubr.f32.gmra.mrb[0].mxu0 %v481
      %v1012 = vpop.f32.mrb[0].mxu0
      %v1013 = vadd.f32 %v360, %v1012
      %v1014 = vpop.f32.mrb[0].mxu0
      %1015 = vmatprep.mubr.f32.mxu0 0.0
      %1016 = vmatmul.mubr.f32.gmra.mrb[0].mxu0 %v484
      %v1017 = vpop.f32.mrb[0].mxu0
      %v1018 = vadd.f32 %v360, %v1017
      %v1019 = vpop.f32.mrb[0].mxu0
      %1020 = vmatprep.mubr.f32.mxu0 0.0
      %1021 = vmatmul.mubr.f32.gmra.mrb[0].mxu0 %v487
      %v1022 = vpop.f32.mrb[0].mxu0
      %v1023 = vadd.f32 %v360, %v1022
      %v1024 = vpop.f32.mrb[0].mxu0
      %1025 = vmatprep.mubr.f32.mxu0 0.0
      %1026 = vmatmul.mubr.f32.gmra.mrb[0].mxu0 %v490
      %v1027 = vpop.f32.mrb[0].mxu0
      %v1028 = vadd.f32 %v360, %v1027
      %v1029 = vpop.f32.mrb[0].mxu0
      %1030 = vmatprep.mubr.f32.mxu0 0.0
      %1031 = vmatmul.mubr.f32.gmra.mrb[0].mxu0 %v493
      %v1032 = vpop.f32.mrb[0].mxu0
      %v1033 = vadd.f32 %v360, %v1032
      %v1034 = vpop.f32.mrb[0].mxu0
      %1035 = vmatprep.mubr.f32.mxu0 0.0
      %1036 = vmatmul.mubr.f32.gmra.mrb[0].mxu0 %v496
      %v1037 = vpop.f32.mrb[0].mxu0
      %v1038 = vadd.f32 %v360, %v1037
      %v1039 = vpop.f32.mrb[0].mxu0
      %1040 = vmatprep.mubr.f32.mxu0 0.0
      %1041 = vmatmul.mubr.f32.gmra.mrb[0].mxu0 %v499
      %v1042 = vpop.f32.mrb[0].mxu0
      %v1043 = vadd.f32 %v360, %v1042
      %v1044 = vpop.f32.mrb[0].mxu0
      %1045 = vmatprep.mubr.f32.mxu0 0.0
      %1046 = vmatmul.mubr.f32.gmra.mrb[0].mxu0 %v502
      %v1047 = vpop.f32.mrb[0].mxu0
      %v1048 = vadd.f32 %v360, %v1047
      %v1049 = vpop.f32.mrb[0].mxu0
      %1050 = vmatprep.mubr.f32.mxu0 0.0
      %1051 = vmatmul.mubr.f32.gmra.mrb[0].mxu0 %v505
      %v1052 = vpop.f32.mrb[0].mxu0
      %v1053 = vadd.f32 %v360, %v1052
      %v1054 = vpop.f32.mrb[0].mxu0
      %1055 = vmatprep.mubr.f32.mxu0 0.0
      %1056 = vmatmul.mubr.f32.gmra.mrb[0].mxu0 %v508
      %v1057 = vpop.f32.mrb[0].mxu0
      %v1058 = vadd.f32 %v360, %v1057
      %v1059 = vpop.f32.mrb[0].mxu0
      %1060 = vmatprep.mubr.f32.mxu0 0.0
      %1061 = vmatmul.mubr.f32.gmra.mrb[0].mxu0 %v511
      %v1062 = vpop.f32.mrb[0].mxu0
      %v1063 = vadd.f32 %v360, %v1062
      %v1064 = vpop.f32.mrb[0].mxu0
      %1065 = vmatprep.mubr.f32.mxu0 0.0
      %1066 = vmatmul.mubr.f32.gmra.mrb[0].mxu0 %v514
      %v1067 = vpop.f32.mrb[0].mxu0
      %v1068 = vadd.f32 %v360, %v1067
      %v1069 = vpop.f32.mrb[0].mxu0
      %1070 = vmatprep.mubr.f32.mxu0 0.0
      %1071 = vmatmul.mubr.f32.gmra.mrb[0].mxu0 %v517
      %v1072 = vpop.f32.mrb[0].mxu0
      %v1073 = vadd.f32 %v360, %v1072
      %v1074 = vpop.f32.mrb[0].mxu0
      %1075 = vmatprep.mubr.f32.mxu0 0.0
      %1076 = vmatmul.mubr.f32.gmra.mrb[0].mxu0 %v520
      %v1077 = vpop.f32.mrb[0].mxu0
      %v1078 = vadd.f32 %v360, %v1077
      %v1079 = vpop.f32.mrb[0].mxu0
      %1080 = vmatprep.mubr.f32.mxu0 0.0
      %1081 = vmatmul.mubr.f32.gmra.mrb[0].mxu0 %v523
      %v1082 = vpop.f32.mrb[0].mxu0
      %v1083 = vadd.f32 %v360, %v1082
      %v1084 = vpop.f32.mrb[0].mxu0
      %1085 = vmatprep.mubr.f32.mxu0 0.0
      %1086 = vmatmul.mubr.f32.gmra.mrb[0].mxu0 %v526
      %v1087 = vpop.f32.mrb[0].mxu0
      %v1088 = vadd.f32 %v360, %v1087
      %v1089 = vpop.f32.mrb[0].mxu0
      %1090 = vmatprep.mubr.f32.mxu0 0.0
      %1091 = vmatmul.mubr.f32.gmra.mrb[0].mxu0 %v529
      %v1092 = vpop.f32.mrb[0].mxu0
      %v1093 = vadd.f32 %v360, %v1092
      %v1094 = vpop.f32.mrb[0].mxu0
      %1095 = vmatprep.mubr.f32.mxu0 0.0
      %1096 = vmatmul.mubr.f32.gmra.mrb[0].mxu0 %v532
      %v1097 = vpop.f32.mrb[0].mxu0
      %v1098 = vadd.f32 %v360, %v1097
      %v1099 = vpop.f32.mrb[0].mxu0
      %1100 = vmatprep.mubr.f32.mxu0 0.0
      %1101 = vmatmul.mubr.f32.gmra.mrb[0].mxu0 %v535
      %v1102 = vpop.f32.mrb[0].mxu0
      %v1103 = vadd.f32 %v360, %v1102
      %v1104 = vpop.f32.mrb[0].mxu0
      %1105 = vmatprep.mubr.f32.mxu0 0.0
      %1106 = vmatmul.mubr.f32.gmra.mrb[0].mxu0 %v538
      %v1107 = vpop.f32.mrb[0].mxu0
      %v1108 = vadd.f32 %v360, %v1107
      %v1109 = vpop.f32.mrb[0].mxu0
      %1110 = vmatprep.mubr.f32.mxu0 0.0
      %1111 = vmatmul.mubr.f32.gmra.mrb[0].mxu0 %v541
      %v1112 = vpop.f32.mrb[0].mxu0
      %v1113 = vadd.f32 %v360, %v1112
      %v1114 = vpop.f32.mrb[0].mxu0
      %1115 = vmatprep.mubr.f32.mxu0 0.0
      %1116 = vmatmul.mubr.f32.gmra.mrb[0].mxu0 %v544
      %v1117 = vpop.f32.mrb[0].mxu0
      %v1118 = vadd.f32 %v360, %v1117
      %v1119 = vpop.f32.mrb[0].mxu0
      %1120 = vmatprep.mubr.f32.mxu0 0.0
      %1121 = vmatmul.mubr.f32.gmra.mrb[0].mxu0 %v547
      %v1122 = vpop.f32.mrb[0].mxu0
      %v1123 = vadd.f32 %v360, %v1122
      %v1124 = vpop.f32.mrb[0].mxu0
      %1125 = vmatprep.mubr.f32.mxu0 0.0
      %1126 = vmatmul.mubr.f32.gmra.mrb[0].mxu0 %v550
      %v1127 = vpop.f32.mrb[0].mxu0
      %v1128 = vadd.f32 %v360, %v1127
      %v1129 = vpop.f32.mrb[0].mxu0
      %1130 = vmatprep.mubr.f32.mxu0 0.0
      %1131 = vmatmul.mubr.f32.gmra.mrb[0].mxu0 %v553
      %v1132 = vpop.f32.mrb[0].mxu0
      %v1133 = vadd.f32 %v360, %v1132
      %v1134 = vpop.f32.mrb[0].mxu0
      %1135 = vmatprep.mubr.f32.mxu0 0.0
      %1136 = vmatmul.mubr.f32.gmra.mrb[0].mxu0 %v556
      %v1137 = vpop.f32.mrb[0].mxu0
      %v1138 = vadd.f32 %v360, %v1137
      %v1139 = vpop.f32.mrb[0].mxu0
      %1140 = vmatprep.mubr.f32.mxu0 0.0
      %1141 = vmatmul.mubr.f32.gmra.mrb[0].mxu0 %v559
      %v1142 = vpop.f32.mrb[0].mxu0
      %v1143 = vadd.f32 %v360, %v1142
      %v1144 = vpop.f32.mrb[0].mxu0
      %1145 = vmatprep.mubr.f32.mxu0 0.0
      %1146 = vmatmul.mubr.f32.gmra.mrb[0].mxu0 %v562
      %v1147 = vpop.f32.mrb[0].mxu0
      %v1148 = vadd.f32 %v360, %v1147
      %v1149 = vpop.f32.mrb[0].mxu0
      %1150 = vmatprep.mubr.f32.mxu0 0.0
      %1151 = vmatmul.mubr.f32.gmra.mrb[0].mxu0 %v565
      %v1152 = vpop.f32.mrb[0].mxu0
      %v1153 = vadd.f32 %v360, %v1152
      %v1154 = vpop.f32.mrb[0].mxu0
      %1155 = vmatprep.mubr.f32.mxu0 0.0
      %1156 = vmatmul.mubr.f32.gmra.mrb[0].mxu0 %v568
      %v1157 = vpop.f32.mrb[0].mxu0
      %v1158 = vadd.f32 %v360, %v1157
      %v1159 = vpop.f32.mrb[0].mxu0
      %1160 = vmatprep.mubr.f32.mxu0 0.0
      %1161 = vmatmul.mubr.f32.gmra.mrb[0].mxu0 %v571
      %v1162 = vpop.f32.mrb[0].mxu0
      %v1163 = vadd.f32 %v360, %v1162
      %v1164 = vpop.f32.mrb[0].mxu0
      %1165 = vmatprep.mubr.f32.mxu0 0.0
      %1166 = vmatmul.mubr.f32.gmra.mrb[0].mxu0 %v574
      %v1167 = vpop.f32.mrb[0].mxu0
      %v1168 = vadd.f32 %v360, %v1167
      %v1169 = vpop.f32.mrb[0].mxu0
      %1170 = vmatprep.mubr.f32.mxu0 0.0
      %1171 = vmatmul.mubr.f32.gmra.mrb[0].mxu0 %v577
      %v1172 = vpop.f32.mrb[0].mxu0
      %v1173 = vadd.f32 %v360, %v1172
      %v1174 = vpop.f32.mrb[0].mxu0
      %1175 = vmatprep.mubr.f32.mxu0 0.0
      %1176 = vmatmul.mubr.f32.gmra.mrb[0].mxu0 %v580
      %v1177 = vpop.f32.mrb[0].mxu0
      %v1178 = vadd.f32 %v360, %v1177
      %v1179 = vpop.f32.mrb[0].mxu0
      %1180 = vmatprep.mubr.f32.mxu0 0.0
      %1181 = vmatmul.mubr.f32.gmra.mrb[0].mxu0 %v583
      %v1182 = vpop.f32.mrb[0].mxu0
      %v1183 = vadd.f32 %v360, %v1182
      %v1184 = vpop.f32.mrb[0].mxu0
      %1185 = vmatprep.mubr.f32.mxu0 0.0
      %1186 = vmatmul.mubr.f32.gmra.mrb[0].mxu0 %v586
      %v1187 = vpop.f32.mrb[0].mxu0
      %v1188 = vadd.f32 %v360, %v1187
      %v1189 = vpop.f32.mrb[0].mxu0
      %1190 = vmatprep.mubr.f32.mxu0 0.0
      %1191 = vmatmul.mubr.f32.gmra.mrb[0].mxu0 %v589
      %v1192 = vpop.f32.mrb[0].mxu0
      %v1193 = vadd.f32 %v360, %v1192
      %v1194 = vpop.f32.mrb[0].mxu0
      %1195 = vmatprep.mubr.f32.mxu0 0.0
      %1196 = vmatmul.mubr.f32.gmra.mrb[0].mxu0 %v592
      %v1197 = vpop.f32.mrb[0].mxu0
      %v1198 = vadd.f32 %v360, %v1197
      %v1199 = vpop.f32.mrb[0].mxu0
      %1200 = vmatprep.mubr.f32.mxu0 0.0
      %1201 = vmatmul.mubr.f32.gmra.mrb[0].mxu0 %v595
      %v1202 = vpop.f32.mrb[0].mxu0
      %v1203 = vadd.f32 %v360, %v1202
      %v1204 = vpop.f32.mrb[0].mxu0
      %1205 = vmatprep.mubr.f32.mxu0 0.0
      %1206 = vmatmul.mubr.f32.gmra.mrb[0].mxu0 %v598
      %v1207 = vpop.f32.mrb[0].mxu0
      %v1208 = vadd.f32 %v360, %v1207
      %v1209 = vpop.f32.mrb[0].mxu0
      %1210 = vmatprep.mubr.f32.mxu0 0.0
      %1211 = vmatmul.mubr.f32.gmra.mrb[0].mxu0 %v601
      %v1212 = vpop.f32.mrb[0].mxu0
      %v1213 = vadd.f32 %v360, %v1212
      %v1214 = vpop.f32.mrb[0].mxu0
      %1215 = vmatprep.mubr.f32.mxu0 0.0
      %1216 = vmatmul.mubr.f32.gmra.mrb[0].mxu0 %v604
      %v1217 = vpop.f32.mrb[0].mxu0
      %v1218 = vadd.f32 %v360, %v1217
      %v1219 = vpop.f32.mrb[0].mxu0
      %1220 = vmatprep.mubr.f32.mxu0 0.0
      %1221 = vmatmul.mubr.f32.gmra.mrb[0].mxu0 %v607
      %v1222 = vpop.f32.mrb[0].mxu0
      %v1223 = vadd.f32 %v360, %v1222
      %v1224 = vpop.f32.mrb[0].mxu0
      %1225 = vmatprep.mubr.f32.mxu0 0.0
      %1226 = vmatmul.mubr.f32.gmra.mrb[0].mxu0 %v610
      %v1227 = vpop.f32.mrb[0].mxu0
      %v1228 = vadd.f32 %v360, %v1227
      %v1229 = vpop.f32.mrb[0].mxu0
      %1230 = vmatprep.mubr.f32.mxu0 0.0
      %1231 = vmatmul.mubr.f32.gmra.mrb[0].mxu0 %v613
      %v1232 = vpop.f32.mrb[0].mxu0
      %v1233 = vadd.f32 %v360, %v1232
      %v1234 = vpop.f32.mrb[0].mxu0
      %1235 = vmatprep.mubr.f32.mxu0 0.0
      %1236 = vmatmul.mubr.f32.gmra.mrb[0].mxu0 %v616
      %v1237 = vpop.f32.mrb[0].mxu0
      %v1238 = vadd.f32 %v360, %v1237
      %v1239 = vpop.f32.mrb[0].mxu0
      %1240 = vmatprep.mubr.f32.mxu0 0.0
      %1241 = vmatmul.mubr.f32.gmra.mrb[0].mxu0 %v619
      %v1242 = vpop.f32.mrb[0].mxu0
      %v1243 = vadd.f32 %v360, %v1242
      %v1244 = vpop.f32.mrb[0].mxu0
      %1245 = vmatprep.mubr.f32.mxu0 0.0
      %1246 = vmatmul.mubr.f32.gmra.mrb[0].mxu0 %v622
      %v1247 = vpop.f32.mrb[0].mxu0
      %v1248 = vadd.f32 %v360, %v1247
      %v1249 = vpop.f32.mrb[0].mxu0
      %1250 = vmatprep.mubr.f32.mxu0 0.0
      %1251 = vmatmul.mubr.f32.gmra.mrb[0].mxu0 %v625
      %v1252 = vpop.f32.mrb[0].mxu0
      %v1253 = vadd.f32 %v360, %v1252
      %v1254 = vpop.f32.mrb[0].mxu0
      %1255 = vmatprep.mubr.f32.mxu0 0.0
      %1256 = vmatmul.mubr.f32.gmra.mrb[0].mxu0 %v628
      %v1257 = vpop.f32.mrb[0].mxu0
      %v1258 = vadd.f32 %v360, %v1257
      %v1259 = vpop.f32.mrb[0].mxu0
      %1260 = vmatprep.mubr.f32.mxu0 0.0
      %1261 = vmatmul.mubr.f32.gmra.mrb[0].mxu0 %v631
      %v1262 = vpop.f32.mrb[0].mxu0
      %v1263 = vadd.f32 %v360, %v1262
      %v1264 = vpop.f32.mrb[0].mxu0
      %1265 = vmatprep.mubr.f32.mxu0 0.0
      %1266 = vmatmul.mubr.f32.gmra.mrb[0].mxu0 %v634
      %v1267 = vpop.f32.mrb[0].mxu0
      %v1268 = vadd.f32 %v360, %v1267
      %v1269 = vpop.f32.mrb[0].mxu0
      %1270 = vmatprep.mubr.f32.mxu0 0.0
      %1271 = vmatmul.mubr.f32.gmra.mrb[0].mxu0 %v637
      %v1272 = vpop.f32.mrb[0].mxu0
      %v1273 = vadd.f32 %v360, %v1272
      %v1274 = vpop.f32.mrb[0].mxu0
      %1275 = vmatprep.mubr.f32.mxu0 0.0
      %1276 = vmatmul.mubr.f32.gmra.mrb[0].mxu0 %v640
      %v1277 = vpop.f32.mrb[0].mxu0
      %v1278 = vadd.f32 %v360, %v1277
      %v1279 = vpop.f32.mrb[0].mxu0
      %1280 = vmatprep.mubr.f32.mxu0 0.0
      %1281 = vmatmul.mubr.f32.gmra.mrb[0].mxu0 %v643
      %v1282 = vpop.f32.mrb[0].mxu0
      %v1283 = vadd.f32 %v360, %v1282
      %v1284 = vpop.f32.mrb[0].mxu0
      %1285 = vmatprep.mubr.f32.mxu0 0.0
      %1286 = vmatmul.mubr.f32.gmra.mrb[0].mxu0 %v646
      %v1287 = vpop.f32.mrb[0].mxu0
      %v1288 = vadd.f32 %v360, %v1287
      %v1289 = vpop.f32.mrb[0].mxu0
      %1290 = vmatprep.mubr.f32.mxu0 0.0
      %1291 = vmatmul.mubr.f32.gmra.mrb[0].mxu0 %v649
      %v1292 = vpop.f32.mrb[0].mxu0
      %v1293 = vadd.f32 %v360, %v1292
      %v1294 = vpop.f32.mrb[0].mxu0
      %1295 = vmatprep.mubr.f32.mxu0 0.0
      %1296 = vmatmul.mubr.f32.gmra.mrb[0].mxu0 %v652
      %v1297 = vpop.f32.mrb[0].mxu0
      %v1298 = vadd.f32 %v360, %v1297
      %v1299 = vpop.f32.mrb[0].mxu0
      %1300 = vmatprep.mubr.f32.mxu0 0.0
      %1301 = vmatmul.mubr.f32.gmra.mrb[0].mxu0 %v655
      %v1302 = vpop.f32.mrb[0].mxu0
      %v1303 = vadd.f32 %v360, %v1302
      %v1304 = vpop.f32.mrb[0].mxu0
      %1305 = vmatprep.mubr.f32.mxu0 0.0
      %1306 = vmatmul.mubr.f32.gmra.mrb[0].mxu0 %v658
      %v1307 = vpop.f32.mrb[0].mxu0
      %v1308 = vadd.f32 %v360, %v1307
      %v1309 = vpop.f32.mrb[0].mxu0
      %1310 = vmatprep.mubr.f32.mxu0 0.0
      %1311 = vmatmul.mubr.f32.gmra.mrb[0].mxu0 %v661
      %v1312 = vpop.f32.mrb[0].mxu0
      %v1313 = vadd.f32 %v360, %v1312
      %v1314 = vpop.f32.mrb[0].mxu0
      %1315 = vmatprep.mubr.f32.mxu0 0.0
      %1316 = vmatmul.mubr.f32.gmra.mrb[0].mxu0 %v664
      %v1317 = vpop.f32.mrb[0].mxu0
      %v1318 = vadd.f32 %v360, %v1317
      %v1319 = vpop.f32.mrb[0].mxu0
      %1320 = vmatprep.mubr.f32.mxu0 0.0
      %1321 = vmatmul.mubr.f32.gmra.mrb[0].mxu0 %v667
      %v1322 = vpop.f32.mrb[0].mxu0
      %v1323 = vadd.f32 %v360, %v1322
      %v1324 = vpop.f32.mrb[0].mxu0
      %1325 = vmatprep.mubr.f32.mxu0 0.0
      %1326 = vmatmul.mubr.f32.gmra.mrb[0].mxu0 %v670
      %v1327 = vpop.f32.mrb[0].mxu0
      %v1328 = vadd.f32 %v360, %v1327
      %v1329 = vpop.f32.mrb[0].mxu0
      %1330 = vmatprep.mubr.f32.mxu0 0.0
      %1331 = vmatmul.mubr.f32.gmra.mrb[0].mxu0 %v673
      %v1332 = vpop.f32.mrb[0].mxu0
      %v1333 = vadd.f32 %v360, %v1332
      %v1334 = vpop.f32.mrb[0].mxu0
      %1335 = vmatprep.mubr.f32.mxu0 0.0
      %1336 = vmatmul.mubr.f32.gmra.mrb[0].mxu0 %v676
      %v1337 = vpop.f32.mrb[0].mxu0
      %v1338 = vadd.f32 %v360, %v1337
      %v1339 = vpop.f32.mrb[0].mxu0
      %1340 = vmatprep.mubr.f32.mxu0 0.0
      %1341 = vmatmul.mubr.f32.gmra.mrb[0].mxu0 %v679
      %v1342 = vpop.f32.mrb[0].mxu0
      %v1343 = vadd.f32 %v360, %v1342
      %v1344 = vpop.f32.mrb[0].mxu0
      %1345 = vmatprep.mubr.f32.mxu0 0.0
      %1346 = vmatmul.mubr.f32.gmra.mrb[0].mxu0 %v682
      %v1347 = vpop.f32.mrb[0].mxu0
      %v1348 = vadd.f32 %v360, %v1347
      %v1349 = vpop.f32.mrb[0].mxu0
      %1350 = vmatprep.mubr.f32.mxu0 0.0
      %1351 = vmatmul.mubr.f32.gmra.mrb[0].mxu0 %v685
      %v1352 = vpop.f32.mrb[0].mxu0
      %v1353 = vadd.f32 %v360, %v1352
      %v1354 = vpop.f32.mrb[0].mxu0
      %1355 = vmatprep.mubr.f32.mxu0 0.0
      %1356 = vmatmul.mubr.f32.gmra.mrb[0].mxu0 %v688
      %v1357 = vpop.f32.mrb[0].mxu0
      %v1358 = vadd.f32 %v360, %v1357
      %v1359 = vpop.f32.mrb[0].mxu0
      %1360 = vmatprep.mubr.f32.mxu0 0.0
      %1361 = vmatmul.mubr.f32.gmra.mrb[0].mxu0 %v691
      %v1362 = vpop.f32.mrb[0].mxu0
      %v1363 = vadd.f32 %v360, %v1362
      %v1364 = vpop.f32.mrb[0].mxu0
      %1365 = vmatprep.mubr.f32.mxu0 0.0
      %1366 = vmatmul.mubr.f32.gmra.mrb[0].mxu0 %v694
      %v1367 = vpop.f32.mrb[0].mxu0
      %v1368 = vadd.f32 %v360, %v1367
      %v1369 = vpop.f32.mrb[0].mxu0
      %1370 = vmatprep.mubr.f32.mxu0 0.0
      %1371 = vmatmul.mubr.f32.gmra.mrb[0].mxu0 %v697
      %v1372 = vpop.f32.mrb[0].mxu0
      %v1373 = vadd.f32 %v360, %v1372
      %v1374 = vpop.f32.mrb[0].mxu0
      %1375 = vmatprep.mubr.f32.mxu0 0.0
      %1376 = vmatmul.mubr.f32.gmra.mrb[0].mxu0 %v700
      %v1377 = vpop.f32.mrb[0].mxu0
      %v1378 = vadd.f32 %v360, %v1377
      %v1379 = vpop.f32.mrb[0].mxu0
      %1380 = vmatprep.mubr.f32.mxu0 0.0
      %1381 = vmatmul.mubr.f32.gmra.mrb[0].mxu0 %v703
      %v1382 = vpop.f32.mrb[0].mxu0
      %v1383 = vadd.f32 %v360, %v1382
      %v1384 = vpop.f32.mrb[0].mxu0
      %1385 = vmatprep.mubr.f32.mxu0 0.0
      %1386 = vmatmul.mubr.f32.gmra.mrb[0].mxu0 %v706
      %v1387 = vpop.f32.mrb[0].mxu0
      %v1388 = vadd.f32 %v360, %v1387
      %v1389 = vpop.f32.mrb[0].mxu0
      %1390 = vmatprep.mubr.f32.mxu0 0.0
      %1391 = vmatmul.mubr.f32.gmra.mrb[0].mxu0 %v709
      %v1392 = vpop.f32.mrb[0].mxu0
      %v1393 = vadd.f32 %v360, %v1392
      %v1394 = vpop.f32.mrb[0].mxu0
      %1395 = vmatprep.mubr.f32.mxu0 0.0
      %1396 = vmatmul.mubr.f32.gmra.mrb[0].mxu0 %v712
      %v1397 = vpop.f32.mrb[0].mxu0
      %v1398 = vadd.f32 %v360, %v1397
      %v1399 = vpop.f32.mrb[0].mxu0
      %1400 = vmatprep.mubr.f32.mxu0 0.0
      %1401 = vmatmul.mubr.f32.gmra.mrb[0].mxu0 %v715
      %v1402 = vpop.f32.mrb[0].mxu0
      %v1403 = vadd.f32 %v360, %v1402
      %v1404 = vpop.f32.mrb[0].mxu0
      %1405 = vmatprep.mubr.f32.mxu0 0.0
      %1406 = vmatmul.mubr.f32.gmra.mrb[0].mxu0 %v718
      %v1407 = vpop.f32.mrb[0].mxu0
      %v1408 = vadd.f32 %v360, %v1407
      %v1409 = vpop.f32.mrb[0].mxu0
      %1410 = vmatprep.mubr.f32.mxu0 0.0
      %1411 = vmatmul.mubr.f32.gmra.mrb[0].mxu0 %v721
      %v1412 = vpop.f32.mrb[0].mxu0
      %v1413 = vadd.f32 %v360, %v1412
      %v1414 = vpop.f32.mrb[0].mxu0
      %1415 = vmatprep.mubr.f32.mxu0 0.0
      %1416 = vmatmul.mubr.f32.gmra.mrb[0].mxu0 %v724
      %v1417 = vpop.f32.mrb[0].mxu0
      %v1418 = vadd.f32 %v360, %v1417
      %v1419 = vpop.f32.mrb[0].mxu0
      %1420 = vmatprep.mubr.f32.mxu0 0.0
      %1421 = vmatmul.mubr.f32.gmra.mrb[0].mxu0 %v727
      %v1422 = vpop.f32.mrb[0].mxu0
      %v1423 = vadd.f32 %v360, %v1422
      %v1424 = vpop.f32.mrb[0].mxu0
      %1425 = vmatprep.mubr.f32.mxu0 0.0
      %1426 = vmatmul.mubr.f32.gmra.mrb[0].mxu0 %v730
      %v1427 = vpop.f32.mrb[0].mxu0
      %v1428 = vadd.f32 %v360, %v1427
      %v1429 = vpop.f32.mrb[0].mxu0
      %1430 = vmatprep.mubr.f32.mxu0 0.0
      %1431 = vmatmul.mubr.f32.gmra.mrb[0].mxu0 %v733
      %v1432 = vpop.f32.mrb[0].mxu0
      %v1433 = vadd.f32 %v360, %v1432
      %v1434 = vpop.f32.mrb[0].mxu0
      %1435 = vmatprep.mubr.f32.mxu0 0.0
      %1436 = vmatmul.mubr.f32.gmra.mrb[0].mxu0 %v736
      %v1437 = vpop.f32.mrb[0].mxu0
      %v1438 = vadd.f32 %v360, %v1437
      %v1439 = vpop.f32.mrb[0].mxu0
      %1440 = vmatprep.mubr.f32.mxu0 0.0
      %1441 = vmatmul.mubr.f32.gmra.mrb[0].mxu0 %v739
      %v1442 = vpop.f32.mrb[0].mxu0
      %v1443 = vadd.f32 %v360, %v1442
      %v1444 = vpop.f32.mrb[0].mxu0
      %1445 = vmatprep.mubr.f32.mxu0 0.0
      %1446 = vmatmul.mubr.f32.gmra.mrb[0].mxu0 %v742
      %v1447 = vpop.f32.mrb[0].mxu0
      %v1448 = vadd.f32 %v360, %v1447
      %v1449 = vpop.f32.mrb[0].mxu0
      %1450 = vmatprep.mubr.f32.mxu0 0.0
      %1451 = vmatmul.mubr.f32.gmra.mrb[0].mxu0 %v745
      %v1452 = vpop.f32.mrb[0].mxu0
      %v1453 = vadd.f32 %v360, %v1452
      %v1454 = vpop.f32.mrb[0].mxu0
      %1455 = vdwg.mxu0
      %v1456 = vld [vmem:[%s215] sm:$0xff]
      %v1457 = vld [vmem:[%s215 + $0x8] sm:$0xff]
      %v1458 = vld [vmem:[%s215 + $0x10] sm:$0xff]
      %v1459 = vld [vmem:[%s215 + $0x18] sm:$0xff]
      %v1460 = vld [vmem:[%s215 + $0x20] sm:$0xff]
      %v1461 = vld [vmem:[%s215 + $0x28] sm:$0xff]
      %v1462 = vld [vmem:[%s215 + $0x30] sm:$0xff]
      %v1463 = vld [vmem:[%s215 + $0x38] sm:$0xff]
      %v1464 = vld [vmem:[%s215 + $0x40] sm:$0xff]
      %v1465 = vld [vmem:[%s215 + $0x48] sm:$0xff]
      %v1466 = vld [vmem:[%s215 + $0x50] sm:$0xff]
      %v1467 = vld [vmem:[%s215 + $0x58] sm:$0xff]
      %v1468 = vld [vmem:[%s215 + $0x60] sm:$0xff]
      %v1469 = vld [vmem:[%s215 + $0x68] sm:$0xff]
      %v1470 = vld [vmem:[%s215 + $0x70] sm:$0xff]
      %v1471 = vld [vmem:[%s215 + $0x78] sm:$0xff]
      %v1472 = vld [vmem:[%s215 + $0x80] sm:$0xff]
      %v1473 = vld [vmem:[%s215 + $0x88] sm:$0xff]
      %v1474 = vld [vmem:[%s215 + $0x90] sm:$0xff]
      %v1475 = vld [vmem:[%s215 + $0x98] sm:$0xff]
      %v1476 = vld [vmem:[%s215 + $0xa0] sm:$0xff]
      %v1477 = vld [vmem:[%s215 + $0xa8] sm:$0xff]
      %v1478 = vld [vmem:[%s215 + $0xb0] sm:$0xff]
      %v1479 = vld [vmem:[%s215 + $0xb8] sm:$0xff]
      %v1480 = vld [vmem:[%s215 + $0xc0] sm:$0xff]
      %v1481 = vld [vmem:[%s215 + $0xc8] sm:$0xff]
      %v1482 = vld [vmem:[%s215 + $0xd0] sm:$0xff]
      %v1483 = vld [vmem:[%s215 + $0xd8] sm:$0xff]
      %v1484 = vld [vmem:[%s215 + $0xe0] sm:$0xff]
      %v1485 = vld [vmem:[%s215 + $0xe8] sm:$0xff]
      %v1486 = vld [vmem:[%s215 + $0xf0] sm:$0xff]
      %v1487 = vld [vmem:[%s215 + $0xf8] sm:$0xff]
      %v1488 = vld [vmem:[%s215 + $0x100] sm:$0xff]
      %v1489 = vld [vmem:[%s215 + $0x108] sm:$0xff]
      %v1490 = vld [vmem:[%s215 + $0x110] sm:$0xff]
      %v1491 = vld [vmem:[%s215 + $0x118] sm:$0xff]
      %v1492 = vld [vmem:[%s215 + $0x120] sm:$0xff]
      %v1493 = vld [vmem:[%s215 + $0x128] sm:$0xff]
      %v1494 = vld [vmem:[%s215 + $0x130] sm:$0xff]
      %v1495 = vld [vmem:[%s215 + $0x138] sm:$0xff]
      %v1496 = vld [vmem:[%s215 + $0x140] sm:$0xff]
      %v1497 = vld [vmem:[%s215 + $0x148] sm:$0xff]
      %v1498 = vld [vmem:[%s215 + $0x150] sm:$0xff]
      %v1499 = vld [vmem:[%s215 + $0x158] sm:$0xff]
      %v1500 = vld [vmem:[%s215 + $0x160] sm:$0xff]
      %v1501 = vld [vmem:[%s215 + $0x168] sm:$0xff]
      %v1502 = vld [vmem:[%s215 + $0x170] sm:$0xff]
      %v1503 = vld [vmem:[%s215 + $0x178] sm:$0xff]
      %v1504 = vld [vmem:[%s215 + $0x180] sm:$0xff]
      %v1505 = vld [vmem:[%s215 + $0x188] sm:$0xff]
      %v1506 = vld [vmem:[%s215 + $0x190] sm:$0xff]
      %v1507 = vld [vmem:[%s215 + $0x198] sm:$0xff]
      %v1508 = vld [vmem:[%s215 + $0x1a0] sm:$0xff]
      %v1509 = vld [vmem:[%s215 + $0x1a8] sm:$0xff]
      %v1510 = vld [vmem:[%s215 + $0x1b0] sm:$0xff]
      %v1511 = vld [vmem:[%s215 + $0x1b8] sm:$0xff]
      %v1512 = vld [vmem:[%s215 + $0x1c0] sm:$0xff]
      %v1513 = vld [vmem:[%s215 + $0x1c8] sm:$0xff]
      %v1514 = vld [vmem:[%s215 + $0x1d0] sm:$0xff]
      %v1515 = vld [vmem:[%s215 + $0x1d8] sm:$0xff]
      %v1516 = vld [vmem:[%s215 + $0x1e0] sm:$0xff]
      %v1517 = vld [vmem:[%s215 + $0x1e8] sm:$0xff]
      %v1518 = vld [vmem:[%s215 + $0x1f0] sm:$0xff]
      %v1519 = vld [vmem:[%s215 + $0x1f8] sm:$0xff]
      %v1520 = vld [vmem:[%s215 + $0x200] sm:$0xff]
      %v1521 = vld [vmem:[%s215 + $0x208] sm:$0xff]
      %v1522 = vld [vmem:[%s215 + $0x210] sm:$0xff]
      %v1523 = vld [vmem:[%s215 + $0x218] sm:$0xff]
      %v1524 = vld [vmem:[%s215 + $0x220] sm:$0xff]
      %v1525 = vld [vmem:[%s215 + $0x228] sm:$0xff]
      %v1526 = vld [vmem:[%s215 + $0x230] sm:$0xff]
      %v1527 = vld [vmem:[%s215 + $0x238] sm:$0xff]
      %v1528 = vld [vmem:[%s215 + $0x240] sm:$0xff]
      %v1529 = vld [vmem:[%s215 + $0x248] sm:$0xff]
      %v1530 = vld [vmem:[%s215 + $0x250] sm:$0xff]
      %v1531 = vld [vmem:[%s215 + $0x258] sm:$0xff]
      %v1532 = vld [vmem:[%s215 + $0x260] sm:$0xff]
      %v1533 = vld [vmem:[%s215 + $0x268] sm:$0xff]
      %v1534 = vld [vmem:[%s215 + $0x270] sm:$0xff]
      %v1535 = vld [vmem:[%s215 + $0x278] sm:$0xff]
      %v1536 = vld [vmem:[%s215 + $0x280] sm:$0xff]
      %v1537 = vld [vmem:[%s215 + $0x288] sm:$0xff]
      %v1538 = vld [vmem:[%s215 + $0x290] sm:$0xff]
      %v1539 = vld [vmem:[%s215 + $0x298] sm:$0xff]
      %v1540 = vld [vmem:[%s215 + $0x2a0] sm:$0xff]
      %v1541 = vld [vmem:[%s215 + $0x2a8] sm:$0xff]
      %v1542 = vld [vmem:[%s215 + $0x2b0] sm:$0xff]
      %v1543 = vld [vmem:[%s215 + $0x2b8] sm:$0xff]
      %v1544 = vld [vmem:[%s215 + $0x2c0] sm:$0xff]
      %v1545 = vld [vmem:[%s215 + $0x2c8] sm:$0xff]
      %v1546 = vld [vmem:[%s215 + $0x2d0] sm:$0xff]
      %v1547 = vld [vmem:[%s215 + $0x2d8] sm:$0xff]
      %v1548 = vld [vmem:[%s215 + $0x2e0] sm:$0xff]
      %v1549 = vld [vmem:[%s215 + $0x2e8] sm:$0xff]
      %v1550 = vld [vmem:[%s215 + $0x2f0] sm:$0xff]
      %v1551 = vld [vmem:[%s215 + $0x2f8] sm:$0xff]
      %v1552 = vld [vmem:[%s215 + $0x300] sm:$0xff]
      %v1553 = vld [vmem:[%s215 + $0x308] sm:$0xff]
      %v1554 = vld [vmem:[%s215 + $0x310] sm:$0xff]
      %v1555 = vld [vmem:[%s215 + $0x318] sm:$0xff]
      %v1556 = vld [vmem:[%s215 + $0x320] sm:$0xff]
      %v1557 = vld [vmem:[%s215 + $0x328] sm:$0xff]
      %v1558 = vld [vmem:[%s215 + $0x330] sm:$0xff]
      %v1559 = vld [vmem:[%s215 + $0x338] sm:$0xff]
      %v1560 = vld [vmem:[%s215 + $0x340] sm:$0xff]
      %v1561 = vld [vmem:[%s215 + $0x348] sm:$0xff]
      %v1562 = vld [vmem:[%s215 + $0x350] sm:$0xff]
      %v1563 = vld [vmem:[%s215 + $0x358] sm:$0xff]
      %v1564 = vld [vmem:[%s215 + $0x360] sm:$0xff]
      %v1565 = vld [vmem:[%s215 + $0x368] sm:$0xff]
      %v1566 = vld [vmem:[%s215 + $0x370] sm:$0xff]
      %v1567 = vld [vmem:[%s215 + $0x378] sm:$0xff]
      %v1568 = vld [vmem:[%s215 + $0x380] sm:$0xff]
      %v1569 = vld [vmem:[%s215 + $0x388] sm:$0xff]
      %v1570 = vld [vmem:[%s215 + $0x390] sm:$0xff]
      %v1571 = vld [vmem:[%s215 + $0x398] sm:$0xff]
      %v1572 = vld [vmem:[%s215 + $0x3a0] sm:$0xff]
      %v1573 = vld [vmem:[%s215 + $0x3a8] sm:$0xff]
      %v1574 = vld [vmem:[%s215 + $0x3b0] sm:$0xff]
      %v1575 = vld [vmem:[%s215 + $0x3b8] sm:$0xff]
      %v1576 = vld [vmem:[%s215 + $0x3c0] sm:$0xff]
      %v1577 = vld [vmem:[%s215 + $0x3c8] sm:$0xff]
      %v1578 = vld [vmem:[%s215 + $0x3d0] sm:$0xff]
      %v1579 = vld [vmem:[%s215 + $0x3d8] sm:$0xff]
      %v1580 = vld [vmem:[%s215 + $0x3e0] sm:$0xff]
      %v1581 = vld [vmem:[%s215 + $0x3e8] sm:$0xff]
      %v1582 = vld [vmem:[%s215 + $0x3f0] sm:$0xff]
      %v1583 = vld [vmem:[%s215 + $0x3f8] sm:$0xff]
      %vm1584 = vcmp.ge.u32.totalorder %v1456, 1073741824
      %vm1585 = vcmp.ge.u32.totalorder %v1457, 1073741824
      %vm1586 = vcmp.ge.u32.totalorder %v1458, 1073741824
      %vm1587 = vcmp.ge.u32.totalorder %v1459, 1073741824
      %vm1588 = vcmp.ge.u32.totalorder %v1460, 1073741824
      %vm1589 = vcmp.ge.u32.totalorder %v1461, 1073741824
      %vm1590 = vcmp.ge.u32.totalorder %v1462, 1073741824
      %vm1591 = vcmp.ge.u32.totalorder %v1463, 1073741824
      %vm1592 = vcmp.ge.u32.totalorder %v1464, 1073741824
      %vm1593 = vcmp.ge.u32.totalorder %v1465, 1073741824
      %vm1594 = vcmp.ge.u32.totalorder %v1466, 1073741824
      %vm1595 = vcmp.ge.u32.totalorder %v1467, 1073741824
      %vm1596 = vcmp.ge.u32.totalorder %v1468, 1073741824
      %vm1597 = vcmp.ge.u32.totalorder %v1469, 1073741824
      %vm1598 = vcmp.ge.u32.totalorder %v1470, 1073741824
      %vm1599 = vcmp.ge.u32.totalorder %v1471, 1073741824
      %vm1600 = vcmp.ge.u32.totalorder %v1472, 1073741824
      %vm1601 = vcmp.ge.u32.totalorder %v1473, 1073741824
      %vm1602 = vcmp.ge.u32.totalorder %v1474, 1073741824
      %vm1603 = vcmp.ge.u32.totalorder %v1475, 1073741824
      %vm1604 = vcmp.ge.u32.totalorder %v1476, 1073741824
      %vm1605 = vcmp.ge.u32.totalorder %v1477, 1073741824
      %vm1606 = vcmp.ge.u32.totalorder %v1478, 1073741824
      %vm1607 = vcmp.ge.u32.totalorder %v1479, 1073741824
      %vm1608 = vcmp.ge.u32.totalorder %v1480, 1073741824
      %vm1609 = vcmp.ge.u32.totalorder %v1481, 1073741824
      %vm1610 = vcmp.ge.u32.totalorder %v1482, 1073741824
      %vm1611 = vcmp.ge.u32.totalorder %v1483, 1073741824
      %vm1612 = vcmp.ge.u32.totalorder %v1484, 1073741824
      %vm1613 = vcmp.ge.u32.totalorder %v1485, 1073741824
      %vm1614 = vcmp.ge.u32.totalorder %v1486, 1073741824
      %vm1615 = vcmp.ge.u32.totalorder %v1487, 1073741824
      %vm1616 = vcmp.ge.u32.totalorder %v1488, 1073741824
      %vm1617 = vcmp.ge.u32.totalorder %v1489, 1073741824
      %vm1618 = vcmp.ge.u32.totalorder %v1490, 1073741824
      %vm1619 = vcmp.ge.u32.totalorder %v1491, 1073741824
      %vm1620 = vcmp.ge.u32.totalorder %v1492, 1073741824
      %vm1621 = vcmp.ge.u32.totalorder %v1493, 1073741824
      %vm1622 = vcmp.ge.u32.totalorder %v1494, 1073741824
      %vm1623 = vcmp.ge.u32.totalorder %v1495, 1073741824
      %vm1624 = vcmp.ge.u32.totalorder %v1496, 1073741824
      %vm1625 = vcmp.ge.u32.totalorder %v1497, 1073741824
      %vm1626 = vcmp.ge.u32.totalorder %v1498, 1073741824
      %vm1627 = vcmp.ge.u32.totalorder %v1499, 1073741824
      %vm1628 = vcmp.ge.u32.totalorder %v1500, 1073741824
      %vm1629 = vcmp.ge.u32.totalorder %v1501, 1073741824
      %vm1630 = vcmp.ge.u32.totalorder %v1502, 1073741824
      %vm1631 = vcmp.ge.u32.totalorder %v1503, 1073741824
      %vm1632 = vcmp.ge.u32.totalorder %v1504, 1073741824
      %vm1633 = vcmp.ge.u32.totalorder %v1505, 1073741824
      %vm1634 = vcmp.ge.u32.totalorder %v1506, 1073741824
      %vm1635 = vcmp.ge.u32.totalorder %v1507, 1073741824
      %vm1636 = vcmp.ge.u32.totalorder %v1508, 1073741824
      %vm1637 = vcmp.ge.u32.totalorder %v1509, 1073741824
      %vm1638 = vcmp.ge.u32.totalorder %v1510, 1073741824
      %vm1639 = vcmp.ge.u32.totalorder %v1511, 1073741824
      %vm1640 = vcmp.ge.u32.totalorder %v1512, 1073741824
      %vm1641 = vcmp.ge.u32.totalorder %v1513, 1073741824
      %vm1642 = vcmp.ge.u32.totalorder %v1514, 1073741824
      %vm1643 = vcmp.ge.u32.totalorder %v1515, 1073741824
      %vm1644 = vcmp.ge.u32.totalorder %v1516, 1073741824
      %vm1645 = vcmp.ge.u32.totalorder %v1517, 1073741824
      %vm1646 = vcmp.ge.u32.totalorder %v1518, 1073741824
      %vm1647 = vcmp.ge.u32.totalorder %v1519, 1073741824
      %vm1648 = vcmp.ge.u32.totalorder %v1520, 1073741824
      %vm1649 = vcmp.ge.u32.totalorder %v1521, 1073741824
      %vm1650 = vcmp.ge.u32.totalorder %v1522, 1073741824
      %vm1651 = vcmp.ge.u32.totalorder %v1523, 1073741824
      %vm1652 = vcmp.ge.u32.totalorder %v1524, 1073741824
      %vm1653 = vcmp.ge.u32.totalorder %v1525, 1073741824
      %vm1654 = vcmp.ge.u32.totalorder %v1526, 1073741824
      %vm1655 = vcmp.ge.u32.totalorder %v1527, 1073741824
      %vm1656 = vcmp.ge.u32.totalorder %v1528, 1073741824
      %vm1657 = vcmp.ge.u32.totalorder %v1529, 1073741824
      %vm1658 = vcmp.ge.u32.totalorder %v1530, 1073741824
      %vm1659 = vcmp.ge.u32.totalorder %v1531, 1073741824
      %vm1660 = vcmp.ge.u32.totalorder %v1532, 1073741824
      %vm1661 = vcmp.ge.u32.totalorder %v1533, 1073741824
      %vm1662 = vcmp.ge.u32.totalorder %v1534, 1073741824
      %vm1663 = vcmp.ge.u32.totalorder %v1535, 1073741824
      %vm1664 = vcmp.ge.u32.totalorder %v1536, 1073741824
      %vm1665 = vcmp.ge.u32.totalorder %v1537, 1073741824
      %vm1666 = vcmp.ge.u32.totalorder %v1538, 1073741824
      %vm1667 = vcmp.ge.u32.totalorder %v1539, 1073741824
      %vm1668 = vcmp.ge.u32.totalorder %v1540, 1073741824
      %vm1669 = vcmp.ge.u32.totalorder %v1541, 1073741824
      %vm1670 = vcmp.ge.u32.totalorder %v1542, 1073741824
      %vm1671 = vcmp.ge.u32.totalorder %v1543, 1073741824
      %vm1672 = vcmp.ge.u32.totalorder %v1544, 1073741824
      %vm1673 = vcmp.ge.u32.totalorder %v1545, 1073741824
      %vm1674 = vcmp.ge.u32.totalorder %v1546, 1073741824
      %vm1675 = vcmp.ge.u32.totalorder %v1547, 1073741824
      %vm1676 = vcmp.ge.u32.totalorder %v1548, 1073741824
      %vm1677 = vcmp.ge.u32.totalorder %v1549, 1073741824
      %vm1678 = vcmp.ge.u32.totalorder %v1550, 1073741824
      %vm1679 = vcmp.ge.u32.totalorder %v1551, 1073741824
      %vm1680 = vcmp.ge.u32.totalorder %v1552, 1073741824
      %vm1681 = vcmp.ge.u32.totalorder %v1553, 1073741824
      %vm1682 = vcmp.ge.u32.totalorder %v1554, 1073741824
      %vm1683 = vcmp.ge.u32.totalorder %v1555, 1073741824
      %vm1684 = vcmp.ge.u32.totalorder %v1556, 1073741824
      %vm1685 = vcmp.ge.u32.totalorder %v1557, 1073741824
      %vm1686 = vcmp.ge.u32.totalorder %v1558, 1073741824
      %vm1687 = vcmp.ge.u32.totalorder %v1559, 1073741824
      %vm1688 = vcmp.ge.u32.totalorder %v1560, 1073741824
      %vm1689 = vcmp.ge.u32.totalorder %v1561, 1073741824
      %vm1690 = vcmp.ge.u32.totalorder %v1562, 1073741824
      %vm1691 = vcmp.ge.u32.totalorder %v1563, 1073741824
      %vm1692 = vcmp.ge.u32.totalorder %v1564, 1073741824
      %vm1693 = vcmp.ge.u32.totalorder %v1565, 1073741824
      %vm1694 = vcmp.ge.u32.totalorder %v1566, 1073741824
      %vm1695 = vcmp.ge.u32.totalorder %v1567, 1073741824
      %vm1696 = vcmp.ge.u32.totalorder %v1568, 1073741824
      %vm1697 = vcmp.ge.u32.totalorder %v1569, 1073741824
      %vm1698 = vcmp.ge.u32.totalorder %v1570, 1073741824
      %vm1699 = vcmp.ge.u32.totalorder %v1571, 1073741824
      %vm1700 = vcmp.ge.u32.totalorder %v1572, 1073741824
      %vm1701 = vcmp.ge.u32.totalorder %v1573, 1073741824
      %vm1702 = vcmp.ge.u32.totalorder %v1574, 1073741824
      %vm1703 = vcmp.ge.u32.totalorder %v1575, 1073741824
      %vm1704 = vcmp.ge.u32.totalorder %v1576, 1073741824
      %vm1705 = vcmp.ge.u32.totalorder %v1577, 1073741824
      %vm1706 = vcmp.ge.u32.totalorder %v1578, 1073741824
      %vm1707 = vcmp.ge.u32.totalorder %v1579, 1073741824
      %vm1708 = vcmp.ge.u32.totalorder %v1580, 1073741824
      %vm1709 = vcmp.ge.u32.totalorder %v1581, 1073741824
      %vm1710 = vcmp.ge.u32.totalorder %v1582, 1073741824
      %vm1711 = vcmp.ge.u32.totalorder %v1583, 1073741824
      %v1712 = vmul.f32 %v818, 1.3333334
      %v1713 = vmul.f32 %v823, 1.3333334
      %v1714 = vmul.f32 %v828, 1.3333334
      %v1715 = vmul.f32 %v833, 1.3333334
      %v1716 = vmul.f32 %v838, 1.3333334
      %v1717 = vmul.f32 %v843, 1.3333334
      %v1718 = vmul.f32 %v848, 1.3333334
      %v1719 = vmul.f32 %v853, 1.3333334
      %v1720 = vmul.f32 %v858, 1.3333334
      %v1721 = vmul.f32 %v863, 1.3333334
      %v1722 = vmul.f32 %v868, 1.3333334
      %v1723 = vmul.f32 %v873, 1.3333334
      %v1724 = vmul.f32 %v878, 1.3333334
      %v1725 = vmul.f32 %v883, 1.3333334
      %v1726 = vmul.f32 %v888, 1.3333334
      %v1727 = vmul.f32 %v893, 1.3333334
      %v1728 = vmul.f32 %v898, 1.3333334
      %v1729 = vmul.f32 %v903, 1.3333334
      %v1730 = vmul.f32 %v908, 1.3333334
      %v1731 = vmul.f32 %v913, 1.3333334
      %v1732 = vmul.f32 %v918, 1.3333334
      %v1733 = vmul.f32 %v923, 1.3333334
      %v1734 = vmul.f32 %v928, 1.3333334
      %v1735 = vmul.f32 %v933, 1.3333334
      %v1736 = vmul.f32 %v938, 1.3333334
      %v1737 = vmul.f32 %v943, 1.3333334
      %v1738 = vmul.f32 %v948, 1.3333334
      %v1739 = vmul.f32 %v953, 1.3333334
      %v1740 = vmul.f32 %v958, 1.3333334
      %v1741 = vmul.f32 %v963, 1.3333334
      %v1742 = vmul.f32 %v968, 1.3333334
      %v1743 = vmul.f32 %v973, 1.3333334
      %v1744 = vmul.f32 %v978, 1.3333334
      %v1745 = vmul.f32 %v983, 1.3333334
      %v1746 = vmul.f32 %v988, 1.3333334
      %v1747 = vmul.f32 %v993, 1.3333334
      %v1748 = vmul.f32 %v998, 1.3333334
      %v1749 = vmul.f32 %v1003, 1.3333334
      %v1750 = vmul.f32 %v1008, 1.3333334
      %v1751 = vmul.f32 %v1013, 1.3333334
      %v1752 = vmul.f32 %v1018, 1.3333334
      %v1753 = vmul.f32 %v1023, 1.3333334
      %v1754 = vmul.f32 %v1028, 1.3333334
      %v1755 = vmul.f32 %v1033, 1.3333334
      %v1756 = vmul.f32 %v1038, 1.3333334
      %v1757 = vmul.f32 %v1043, 1.3333334
      %v1758 = vmul.f32 %v1048, 1.3333334
      %v1759 = vmul.f32 %v1053, 1.3333334
      %v1760 = vmul.f32 %v1058, 1.3333334
      %v1761 = vmul.f32 %v1063, 1.3333334
      %v1762 = vmul.f32 %v1068, 1.3333334
      %v1763 = vmul.f32 %v1073, 1.3333334
      %v1764 = vmul.f32 %v1078, 1.3333334
      %v1765 = vmul.f32 %v1083, 1.3333334
      %v1766 = vmul.f32 %v1088, 1.3333334
      %v1767 = vmul.f32 %v1093, 1.3333334
      %v1768 = vmul.f32 %v1098, 1.3333334
      %v1769 = vmul.f32 %v1103, 1.3333334
      %v1770 = vmul.f32 %v1108, 1.3333334
      %v1771 = vmul.f32 %v1113, 1.3333334
      %v1772 = vmul.f32 %v1118, 1.3333334
      %v1773 = vmul.f32 %v1123, 1.3333334
      %v1774 = vmul.f32 %v1128, 1.3333334
      %v1775 = vmul.f32 %v1133, 1.3333334
      %v1776 = vmul.f32 %v1138, 1.3333334
      %v1777 = vmul.f32 %v1143, 1.3333334
      %v1778 = vmul.f32 %v1148, 1.3333334
      %v1779 = vmul.f32 %v1153, 1.3333334
      %v1780 = vmul.f32 %v1158, 1.3333334
      %v1781 = vmul.f32 %v1163, 1.3333334
      %v1782 = vmul.f32 %v1168, 1.3333334
      %v1783 = vmul.f32 %v1173, 1.3333334
      %v1784 = vmul.f32 %v1178, 1.3333334
      %v1785 = vmul.f32 %v1183, 1.3333334
      %v1786 = vmul.f32 %v1188, 1.3333334
      %v1787 = vmul.f32 %v1193, 1.3333334
      %v1788 = vmul.f32 %v1198, 1.3333334
      %v1789 = vmul.f32 %v1203, 1.3333334
      %v1790 = vmul.f32 %v1208, 1.3333334
      %v1791 = vmul.f32 %v1213, 1.3333334
      %v1792 = vmul.f32 %v1218, 1.3333334
      %v1793 = vmul.f32 %v1223, 1.3333334
      %v1794 = vmul.f32 %v1228, 1.3333334
      %v1795 = vmul.f32 %v1233, 1.3333334
      %v1796 = vmul.f32 %v1238, 1.3333334
      %v1797 = vmul.f32 %v1243, 1.3333334
      %v1798 = vmul.f32 %v1248, 1.3333334
      %v1799 = vmul.f32 %v1253, 1.3333334
      %v1800 = vmul.f32 %v1258, 1.3333334
      %v1801 = vmul.f32 %v1263, 1.3333334
      %v1802 = vmul.f32 %v1268, 1.3333334
      %v1803 = vmul.f32 %v1273, 1.3333334
      %v1804 = vmul.f32 %v1278, 1.3333334
      %v1805 = vmul.f32 %v1283, 1.3333334
      %v1806 = vmul.f32 %v1288, 1.3333334
      %v1807 = vmul.f32 %v1293, 1.3333334
      %v1808 = vmul.f32 %v1298, 1.3333334
      %v1809 = vmul.f32 %v1303, 1.3333334
      %v1810 = vmul.f32 %v1308, 1.3333334
      %v1811 = vmul.f32 %v1313, 1.3333334
      %v1812 = vmul.f32 %v1318, 1.3333334
      %v1813 = vmul.f32 %v1323, 1.3333334
      %v1814 = vmul.f32 %v1328, 1.3333334
      %v1815 = vmul.f32 %v1333, 1.3333334
      %v1816 = vmul.f32 %v1338, 1.3333334
      %v1817 = vmul.f32 %v1343, 1.3333334
      %v1818 = vmul.f32 %v1348, 1.3333334
      %v1819 = vmul.f32 %v1353, 1.3333334
      %v1820 = vmul.f32 %v1358, 1.3333334
      %v1821 = vmul.f32 %v1363, 1.3333334
      %v1822 = vmul.f32 %v1368, 1.3333334
      %v1823 = vmul.f32 %v1373, 1.3333334
      %v1824 = vmul.f32 %v1378, 1.3333334
      %v1825 = vmul.f32 %v1383, 1.3333334
      %v1826 = vmul.f32 %v1388, 1.3333334
      %v1827 = vmul.f32 %v1393, 1.3333334
      %v1828 = vmul.f32 %v1398, 1.3333334
      %v1829 = vmul.f32 %v1403, 1.3333334
      %v1830 = vmul.f32 %v1408, 1.3333334
      %v1831 = vmul.f32 %v1413, 1.3333334
      %v1832 = vmul.f32 %v1418, 1.3333334
      %v1833 = vmul.f32 %v1423, 1.3333334
      %v1834 = vmul.f32 %v1428, 1.3333334
      %v1835 = vmul.f32 %v1433, 1.3333334
      %v1836 = vmul.f32 %v1438, 1.3333334
      %v1837 = vmul.f32 %v1443, 1.3333334
      %v1838 = vmul.f32 %v1448, 1.3333334
      %v1839 = vmul.f32 %v1453, 1.3333334
      %v1840 = vsel %vm1584, %v1712, 0.0
      %v1841 = vsel %vm1585, %v1713, 0.0
      %v1842 = vsel %vm1586, %v1714, 0.0
      %v1843 = vsel %vm1587, %v1715, 0.0
      %v1844 = vsel %vm1588, %v1716, 0.0
      %v1845 = vsel %vm1589, %v1717, 0.0
      %v1846 = vsel %vm1590, %v1718, 0.0
      %v1847 = vsel %vm1591, %v1719, 0.0
      %v1848 = vsel %vm1592, %v1720, 0.0
      %v1849 = vsel %vm1593, %v1721, 0.0
      %v1850 = vsel %vm1594, %v1722, 0.0
      %v1851 = vsel %vm1595, %v1723, 0.0
      %v1852 = vsel %vm1596, %v1724, 0.0
      %v1853 = vsel %vm1597, %v1725, 0.0
      %v1854 = vsel %vm1598, %v1726, 0.0
      %v1855 = vsel %vm1599, %v1727, 0.0
      %v1856 = vsel %vm1600, %v1728, 0.0
      %v1857 = vsel %vm1601, %v1729, 0.0
      %v1858 = vsel %vm1602, %v1730, 0.0
      %v1859 = vsel %vm1603, %v1731, 0.0
      %v1860 = vsel %vm1604, %v1732, 0.0
      %v1861 = vsel %vm1605, %v1733, 0.0
      %v1862 = vsel %vm1606, %v1734, 0.0
      %v1863 = vsel %vm1607, %v1735, 0.0
      %v1864 = vsel %vm1608, %v1736, 0.0
      %v1865 = vsel %vm1609, %v1737, 0.0
      %v1866 = vsel %vm1610, %v1738, 0.0
      %v1867 = vsel %vm1611, %v1739, 0.0
      %v1868 = vsel %vm1612, %v1740, 0.0
      %v1869 = vsel %vm1613, %v1741, 0.0
      %v1870 = vsel %vm1614, %v1742, 0.0
      %v1871 = vsel %vm1615, %v1743, 0.0
      %v1872 = vsel %vm1616, %v1744, 0.0
      %v1873 = vsel %vm1617, %v1745, 0.0
      %v1874 = vsel %vm1618, %v1746, 0.0
      %v1875 = vsel %vm1619, %v1747, 0.0
      %v1876 = vsel %vm1620, %v1748, 0.0
      %v1877 = vsel %vm1621, %v1749, 0.0
      %v1878 = vsel %vm1622, %v1750, 0.0
      %v1879 = vsel %vm1623, %v1751, 0.0
      %v1880 = vsel %vm1624, %v1752, 0.0
      %v1881 = vsel %vm1625, %v1753, 0.0
      %v1882 = vsel %vm1626, %v1754, 0.0
      %v1883 = vsel %vm1627, %v1755, 0.0
      %v1884 = vsel %vm1628, %v1756, 0.0
      %v1885 = vsel %vm1629, %v1757, 0.0
      %v1886 = vsel %vm1630, %v1758, 0.0
      %v1887 = vsel %vm1631, %v1759, 0.0
      %v1888 = vsel %vm1632, %v1760, 0.0
      %v1889 = vsel %vm1633, %v1761, 0.0
      %v1890 = vsel %vm1634, %v1762, 0.0
      %v1891 = vsel %vm1635, %v1763, 0.0
      %v1892 = vsel %vm1636, %v1764, 0.0
      %v1893 = vsel %vm1637, %v1765, 0.0
      %v1894 = vsel %vm1638, %v1766, 0.0
      %v1895 = vsel %vm1639, %v1767, 0.0
      %v1896 = vsel %vm1640, %v1768, 0.0
      %v1897 = vsel %vm1641, %v1769, 0.0
      %v1898 = vsel %vm1642, %v1770, 0.0
      %v1899 = vsel %vm1643, %v1771, 0.0
      %v1900 = vsel %vm1644, %v1772, 0.0
      %v1901 = vsel %vm1645, %v1773, 0.0
      %v1902 = vsel %vm1646, %v1774, 0.0
      %v1903 = vsel %vm1647, %v1775, 0.0
      %v1904 = vsel %vm1648, %v1776, 0.0
      %v1905 = vsel %vm1649, %v1777, 0.0
      %v1906 = vsel %vm1650, %v1778, 0.0
      %v1907 = vsel %vm1651, %v1779, 0.0
      %v1908 = vsel %vm1652, %v1780, 0.0
      %v1909 = vsel %vm1653, %v1781, 0.0
      %v1910 = vsel %vm1654, %v1782, 0.0
      %v1911 = vsel %vm1655, %v1783, 0.0
      %v1912 = vsel %vm1656, %v1784, 0.0
      %v1913 = vsel %vm1657, %v1785, 0.0
      %v1914 = vsel %vm1658, %v1786, 0.0
      %v1915 = vsel %vm1659, %v1787, 0.0
      %v1916 = vsel %vm1660, %v1788, 0.0
      %v1917 = vsel %vm1661, %v1789, 0.0
      %v1918 = vsel %vm1662, %v1790, 0.0
      %v1919 = vsel %vm1663, %v1791, 0.0
      %v1920 = vsel %vm1664, %v1792, 0.0
      %v1921 = vsel %vm1665, %v1793, 0.0
      %v1922 = vsel %vm1666, %v1794, 0.0
      %v1923 = vsel %vm1667, %v1795, 0.0
      %v1924 = vsel %vm1668, %v1796, 0.0
      %v1925 = vsel %vm1669, %v1797, 0.0
      %v1926 = vsel %vm1670, %v1798, 0.0
      %v1927 = vsel %vm1671, %v1799, 0.0
      %v1928 = vsel %vm1672, %v1800, 0.0
      %v1929 = vsel %vm1673, %v1801, 0.0
      %v1930 = vsel %vm1674, %v1802, 0.0
      %v1931 = vsel %vm1675, %v1803, 0.0
      %v1932 = vsel %vm1676, %v1804, 0.0
      %v1933 = vsel %vm1677, %v1805, 0.0
      %v1934 = vsel %vm1678, %v1806, 0.0
      %v1935 = vsel %vm1679, %v1807, 0.0
      %v1936 = vsel %vm1680, %v1808, 0.0
      %v1937 = vsel %vm1681, %v1809, 0.0
      %v1938 = vsel %vm1682, %v1810, 0.0
      %v1939 = vsel %vm1683, %v1811, 0.0
      %v1940 = vsel %vm1684, %v1812, 0.0
      %v1941 = vsel %vm1685, %v1813, 0.0
      %v1942 = vsel %vm1686, %v1814, 0.0
      %v1943 = vsel %vm1687, %v1815, 0.0
      %v1944 = vsel %vm1688, %v1816, 0.0
      %v1945 = vsel %vm1689, %v1817, 0.0
      %v1946 = vsel %vm1690, %v1818, 0.0
      %v1947 = vsel %vm1691, %v1819, 0.0
      %v1948 = vsel %vm1692, %v1820, 0.0
      %v1949 = vsel %vm1693, %v1821, 0.0
      %v1950 = vsel %vm1694, %v1822, 0.0
      %v1951 = vsel %vm1695, %v1823, 0.0
      %v1952 = vsel %vm1696, %v1824, 0.0
      %v1953 = vsel %vm1697, %v1825, 0.0
      %v1954 = vsel %vm1698, %v1826, 0.0
      %v1955 = vsel %vm1699, %v1827, 0.0
      %v1956 = vsel %vm1700, %v1828, 0.0
      %v1957 = vsel %vm1701, %v1829, 0.0
      %v1958 = vsel %vm1702, %v1830, 0.0
      %v1959 = vsel %vm1703, %v1831, 0.0
      %v1960 = vsel %vm1704, %v1832, 0.0
      %v1961 = vsel %vm1705, %v1833, 0.0
      %v1962 = vsel %vm1706, %v1834, 0.0
      %v1963 = vsel %vm1707, %v1835, 0.0
      %v1964 = vsel %vm1708, %v1836, 0.0
      %v1965 = vsel %vm1709, %v1837, 0.0
      %v1966 = vsel %vm1710, %v1838, 0.0
      %v1967 = vsel %vm1711, %v1839, 0.0
      %v1968 = vtanh.pop %v1840
      %v1969 = vtanh.pop %v1841
      %v1970 = vtanh.pop %v1842
      %v1971 = vtanh.pop %v1843
      %v1972 = vtanh.pop %v1844
      %v1973 = vtanh.pop %v1845
      %v1974 = vtanh.pop %v1846
      %v1975 = vtanh.pop %v1847
      %v1976 = vtanh.pop %v1848
      %v1977 = vtanh.pop %v1849
      %v1978 = vtanh.pop %v1850
      %v1979 = vtanh.pop %v1851
      %v1980 = vtanh.pop %v1852
      %v1981 = vtanh.pop %v1853
      %v1982 = vtanh.pop %v1854
      %v1983 = vtanh.pop %v1855
      %v1984 = vtanh.pop %v1856
      %v1985 = vtanh.pop %v1857
      %v1986 = vtanh.pop %v1858
      %v1987 = vtanh.pop %v1859
      %v1988 = vtanh.pop %v1860
      %v1989 = vtanh.pop %v1861
      %v1990 = vtanh.pop %v1862
      %v1991 = vtanh.pop %v1863
      %v1992 = vtanh.pop %v1864
      %v1993 = vtanh.pop %v1865
      %v1994 = vtanh.pop %v1866
      %v1995 = vtanh.pop %v1867
      %v1996 = vtanh.pop %v1868
      %v1997 = vtanh.pop %v1869
      %v1998 = vtanh.pop %v1870
      %v1999 = vtanh.pop %v1871
      %v2000 = vtanh.pop %v1872
      %v2001 = vtanh.pop %v1873
      %v2002 = vtanh.pop %v1874
      %v2003 = vtanh.pop %v1875
      %v2004 = vtanh.pop %v1876
      %v2005 = vtanh.pop %v1877
      %v2006 = vtanh.pop %v1878
      %v2007 = vtanh.pop %v1879
      %v2008 = vtanh.pop %v1880
      %v2009 = vtanh.pop %v1881
      %v2010 = vtanh.pop %v1882
      %v2011 = vtanh.pop %v1883
      %v2012 = vtanh.pop %v1884
      %v2013 = vtanh.pop %v1885
      %v2014 = vtanh.pop %v1886
      %v2015 = vtanh.pop %v1887
      %v2016 = vtanh.pop %v1888
      %v2017 = vtanh.pop %v1889
      %v2018 = vtanh.pop %v1890
      %v2019 = vtanh.pop %v1891
      %v2020 = vtanh.pop %v1892
      %v2021 = vtanh.pop %v1893
      %v2022 = vtanh.pop %v1894
      %v2023 = vtanh.pop %v1895
      %v2024 = vtanh.pop %v1896
      %v2025 = vtanh.pop %v1897
      %v2026 = vtanh.pop %v1898
      %v2027 = vtanh.pop %v1899
      %v2028 = vtanh.pop %v1900
      %v2029 = vtanh.pop %v1901
      %v2030 = vtanh.pop %v1902
      %v2031 = vtanh.pop %v1903
      %v2032 = vtanh.pop %v1904
      %v2033 = vtanh.pop %v1905
      %v2034 = vtanh.pop %v1906
      %v2035 = vtanh.pop %v1907
      %v2036 = vtanh.pop %v1908
      %v2037 = vtanh.pop %v1909
      %v2038 = vtanh.pop %v1910
      %v2039 = vtanh.pop %v1911
      %v2040 = vtanh.pop %v1912
      %v2041 = vtanh.pop %v1913
      %v2042 = vtanh.pop %v1914
      %v2043 = vtanh.pop %v1915
      %v2044 = vtanh.pop %v1916
      %v2045 = vtanh.pop %v1917
      %v2046 = vtanh.pop %v1918
      %v2047 = vtanh.pop %v1919
      %v2048 = vtanh.pop %v1920
      %v2049 = vtanh.pop %v1921
      %v2050 = vtanh.pop %v1922
      %v2051 = vtanh.pop %v1923
      %v2052 = vtanh.pop %v1924
      %v2053 = vtanh.pop %v1925
      %v2054 = vtanh.pop %v1926
      %v2055 = vtanh.pop %v1927
      %v2056 = vtanh.pop %v1928
      %v2057 = vtanh.pop %v1929
      %v2058 = vtanh.pop %v1930
      %v2059 = vtanh.pop %v1931
      %v2060 = vtanh.pop %v1932
      %v2061 = vtanh.pop %v1933
      %v2062 = vtanh.pop %v1934
      %v2063 = vtanh.pop %v1935
      %v2064 = vtanh.pop %v1936
      %v2065 = vtanh.pop %v1937
      %v2066 = vtanh.pop %v1938
      %v2067 = vtanh.pop %v1939
      %v2068 = vtanh.pop %v1940
      %v2069 = vtanh.pop %v1941
      %v2070 = vtanh.pop %v1942
      %v2071 = vtanh.pop %v1943
      %v2072 = vtanh.pop %v1944
      %v2073 = vtanh.pop %v1945
      %v2074 = vtanh.pop %v1946
      %v2075 = vtanh.pop %v1947
      %v2076 = vtanh.pop %v1948
      %v2077 = vtanh.pop %v1949
      %v2078 = vtanh.pop %v1950
      %v2079 = vtanh.pop %v1951
      %v2080 = vtanh.pop %v1952
      %v2081 = vtanh.pop %v1953
      %v2082 = vtanh.pop %v1954
      %v2083 = vtanh.pop %v1955
      %v2084 = vtanh.pop %v1956
      %v2085 = vtanh.pop %v1957
      %v2086 = vtanh.pop %v1958
      %v2087 = vtanh.pop %v1959
      %v2088 = vtanh.pop %v1960
      %v2089 = vtanh.pop %v1961
      %v2090 = vtanh.pop %v1962
      %v2091 = vtanh.pop %v1963
      %v2092 = vtanh.pop %v1964
      %v2093 = vtanh.pop %v1965
      %v2094 = vtanh.pop %v1966
      %v2095 = vtanh.pop %v1967
      %2096 = vst [vmem:[%s221] sm:$0xff] %v1968
      %2097 = vst [vmem:[%s221 + $0x8] sm:$0xff] %v1969
      %2098 = vst [vmem:[%s221 + $0x10] sm:$0xff] %v1970
      %2099 = vst [vmem:[%s221 + $0x18] sm:$0xff] %v1971
      %2100 = vst [vmem:[%s221 + $0x20] sm:$0xff] %v1972
      %2101 = vst [vmem:[%s221 + $0x28] sm:$0xff] %v1973
      %2102 = vst [vmem:[%s221 + $0x30] sm:$0xff] %v1974
      %2103 = vst [vmem:[%s221 + $0x38] sm:$0xff] %v1975
      %2104 = vst [vmem:[%s221 + $0x40] sm:$0xff] %v1976
      %2105 = vst [vmem:[%s221 + $0x48] sm:$0xff] %v1977
      %2106 = vst [vmem:[%s221 + $0x50] sm:$0xff] %v1978
      %2107 = vst [vmem:[%s221 + $0x58] sm:$0xff] %v1979
      %2108 = vst [vmem:[%s221 + $0x60] sm:$0xff] %v1980
      %2109 = vst [vmem:[%s221 + $0x68] sm:$0xff] %v1981
      %2110 = vst [vmem:[%s221 + $0x70] sm:$0xff] %v1982
      %2111 = vst [vmem:[%s221 + $0x78] sm:$0xff] %v1983
      %2112 = vst [vmem:[%s221 + $0x80] sm:$0xff] %v1984
      %2113 = vst [vmem:[%s221 + $0x88] sm:$0xff] %v1985
      %2114 = vst [vmem:[%s221 + $0x90] sm:$0xff] %v1986
      %2115 = vst [vmem:[%s221 + $0x98] sm:$0xff] %v1987
      %2116 = vst [vmem:[%s221 + $0xa0] sm:$0xff] %v1988
      %2117 = vst [vmem:[%s221 + $0xa8] sm:$0xff] %v1989
      %2118 = vst [vmem:[%s221 + $0xb0] sm:$0xff] %v1990
      %2119 = vst [vmem:[%s221 + $0xb8] sm:$0xff] %v1991
      %2120 = vst [vmem:[%s221 + $0xc0] sm:$0xff] %v1992
      %2121 = vst [vmem:[%s221 + $0xc8] sm:$0xff] %v1993
      %2122 = vst [vmem:[%s221 + $0xd0] sm:$0xff] %v1994
      %2123 = vst [vmem:[%s221 + $0xd8] sm:$0xff] %v1995
      %2124 = vst [vmem:[%s221 + $0xe0] sm:$0xff] %v1996
      %2125 = vst [vmem:[%s221 + $0xe8] sm:$0xff] %v1997
      %2126 = vst [vmem:[%s221 + $0xf0] sm:$0xff] %v1998
      %2127 = vst [vmem:[%s221 + $0xf8] sm:$0xff] %v1999
      %2128 = vst [vmem:[%s221 + $0x100] sm:$0xff] %v2000
      %2129 = vst [vmem:[%s221 + $0x108] sm:$0xff] %v2001
      %2130 = vst [vmem:[%s221 + $0x110] sm:$0xff] %v2002
      %2131 = vst [vmem:[%s221 + $0x118] sm:$0xff] %v2003
      %2132 = vst [vmem:[%s221 + $0x120] sm:$0xff] %v2004
      %2133 = vst [vmem:[%s221 + $0x128] sm:$0xff] %v2005
      %2134 = vst [vmem:[%s221 + $0x130] sm:$0xff] %v2006
      %2135 = vst [vmem:[%s221 + $0x138] sm:$0xff] %v2007
      %2136 = vst [vmem:[%s221 + $0x140] sm:$0xff] %v2008
      %2137 = vst [vmem:[%s221 + $0x148] sm:$0xff] %v2009
      %2138 = vst [vmem:[%s221 + $0x150] sm:$0xff] %v2010
      %2139 = vst [vmem:[%s221 + $0x158] sm:$0xff] %v2011
      %2140 = vst [vmem:[%s221 + $0x160] sm:$0xff] %v2012
      %2141 = vst [vmem:[%s221 + $0x168] sm:$0xff] %v2013
      %2142 = vst [vmem:[%s221 + $0x170] sm:$0xff] %v2014
      %2143 = vst [vmem:[%s221 + $0x178] sm:$0xff] %v2015
      %2144 = vst [vmem:[%s221 + $0x180] sm:$0xff] %v2016
      %2145 = vst [vmem:[%s221 + $0x188] sm:$0xff] %v2017
      %2146 = vst [vmem:[%s221 + $0x190] sm:$0xff] %v2018
      %2147 = vst [vmem:[%s221 + $0x198] sm:$0xff] %v2019
      %2148 = vst [vmem:[%s221 + $0x1a0] sm:$0xff] %v2020
      %2149 = vst [vmem:[%s221 + $0x1a8] sm:$0xff] %v2021
      %2150 = vst [vmem:[%s221 + $0x1b0] sm:$0xff] %v2022
      %2151 = vst [vmem:[%s221 + $0x1b8] sm:$0xff] %v2023
      %2152 = vst [vmem:[%s221 + $0x1c0] sm:$0xff] %v2024
      %2153 = vst [vmem:[%s221 + $0x1c8] sm:$0xff] %v2025
      %2154 = vst [vmem:[%s221 + $0x1d0] sm:$0xff] %v2026
      %2155 = vst [vmem:[%s221 + $0x1d8] sm:$0xff] %v2027
      %2156 = vst [vmem:[%s221 + $0x1e0] sm:$0xff] %v2028
      %2157 = vst [vmem:[%s221 + $0x1e8] sm:$0xff] %v2029
      %2158 = vst [vmem:[%s221 + $0x1f0] sm:$0xff] %v2030
      %2159 = vst [vmem:[%s221 + $0x1f8] sm:$0xff] %v2031
      %2160 = vst [vmem:[%s221 + $0x200] sm:$0xff] %v2032
      %2161 = vst [vmem:[%s221 + $0x208] sm:$0xff] %v2033
      %2162 = vst [vmem:[%s221 + $0x210] sm:$0xff] %v2034
      %2163 = vst [vmem:[%s221 + $0x218] sm:$0xff] %v2035
      %2164 = vst [vmem:[%s221 + $0x220] sm:$0xff] %v2036
      %2165 = vst [vmem:[%s221 + $0x228] sm:$0xff] %v2037
      %2166 = vst [vmem:[%s221 + $0x230] sm:$0xff] %v2038
      %2167 = vst [vmem:[%s221 + $0x238] sm:$0xff] %v2039
      %2168 = vst [vmem:[%s221 + $0x240] sm:$0xff] %v2040
      %2169 = vst [vmem:[%s221 + $0x248] sm:$0xff] %v2041
      %2170 = vst [vmem:[%s221 + $0x250] sm:$0xff] %v2042
      %2171 = vst [vmem:[%s221 + $0x258] sm:$0xff] %v2043
      %2172 = vst [vmem:[%s221 + $0x260] sm:$0xff] %v2044
      %2173 = vst [vmem:[%s221 + $0x268] sm:$0xff] %v2045
      %2174 = vst [vmem:[%s221 + $0x270] sm:$0xff] %v2046
      %2175 = vst [vmem:[%s221 + $0x278] sm:$0xff] %v2047
      %2176 = vst [vmem:[%s221 + $0x280] sm:$0xff] %v2048
      %2177 = vst [vmem:[%s221 + $0x288] sm:$0xff] %v2049
      %2178 = vst [vmem:[%s221 + $0x290] sm:$0xff] %v2050
      %2179 = vst [vmem:[%s221 + $0x298] sm:$0xff] %v2051
      %2180 = vst [vmem:[%s221 + $0x2a0] sm:$0xff] %v2052
      %2181 = vst [vmem:[%s221 + $0x2a8] sm:$0xff] %v2053
      %2182 = vst [vmem:[%s221 + $0x2b0] sm:$0xff] %v2054
      %2183 = vst [vmem:[%s221 + $0x2b8] sm:$0xff] %v2055
      %2184 = vst [vmem:[%s221 + $0x2c0] sm:$0xff] %v2056
      %2185 = vst [vmem:[%s221 + $0x2c8] sm:$0xff] %v2057
      %2186 = vst [vmem:[%s221 + $0x2d0] sm:$0xff] %v2058
      %2187 = vst [vmem:[%s221 + $0x2d8] sm:$0xff] %v2059
      %2188 = vst [vmem:[%s221 + $0x2e0] sm:$0xff] %v2060
      %2189 = vst [vmem:[%s221 + $0x2e8] sm:$0xff] %v2061
      %2190 = vst [vmem:[%s221 + $0x2f0] sm:$0xff] %v2062
      %2191 = vst [vmem:[%s221 + $0x2f8] sm:$0xff] %v2063
      %2192 = vst [vmem:[%s221 + $0x300] sm:$0xff] %v2064
      %2193 = vst [vmem:[%s221 + $0x308] sm:$0xff] %v2065
      %2194 = vst [vmem:[%s221 + $0x310] sm:$0xff] %v2066
      %2195 = vst [vmem:[%s221 + $0x318] sm:$0xff] %v2067
      %2196 = vst [vmem:[%s221 + $0x320] sm:$0xff] %v2068
      %2197 = vst [vmem:[%s221 + $0x328] sm:$0xff] %v2069
      %2198 = vst [vmem:[%s221 + $0x330] sm:$0xff] %v2070
      %2199 = vst [vmem:[%s221 + $0x338] sm:$0xff] %v2071
      %2200 = vst [vmem:[%s221 + $0x340] sm:$0xff] %v2072
      %2201 = vst [vmem:[%s221 + $0x348] sm:$0xff] %v2073
      %2202 = vst [vmem:[%s221 + $0x350] sm:$0xff] %v2074
      %2203 = vst [vmem:[%s221 + $0x358] sm:$0xff] %v2075
      %2204 = vst [vmem:[%s221 + $0x360] sm:$0xff] %v2076
      %2205 = vst [vmem:[%s221 + $0x368] sm:$0xff] %v2077
      %2206 = vst [vmem:[%s221 + $0x370] sm:$0xff] %v2078
      %2207 = vst [vmem:[%s221 + $0x378] sm:$0xff] %v2079
      %2208 = vst [vmem:[%s221 + $0x380] sm:$0xff] %v2080
      %2209 = vst [vmem:[%s221 + $0x388] sm:$0xff] %v2081
      %2210 = vst [vmem:[%s221 + $0x390] sm:$0xff] %v2082
      %2211 = vst [vmem:[%s221 + $0x398] sm:$0xff] %v2083
      %2212 = vst [vmem:[%s221 + $0x3a0] sm:$0xff] %v2084
      %2213 = vst [vmem:[%s221 + $0x3a8] sm:$0xff] %v2085
      %2214 = vst [vmem:[%s221 + $0x3b0] sm:$0xff] %v2086
      %2215 = vst [vmem:[%s221 + $0x3b8] sm:$0xff] %v2087
      %2216 = vst [vmem:[%s221 + $0x3c0] sm:$0xff] %v2088
      %2217 = vst [vmem:[%s221 + $0x3c8] sm:$0xff] %v2089
      %2218 = vst [vmem:[%s221 + $0x3d0] sm:$0xff] %v2090
      %2219 = vst [vmem:[%s221 + $0x3d8] sm:$0xff] %v2091
      %2220 = vst [vmem:[%s221 + $0x3e0] sm:$0xff] %v2092
      %2221 = vst [vmem:[%s221 + $0x3e8] sm:$0xff] %v2093
      %2222 = vst [vmem:[%s221 + $0x3f0] sm:$0xff] %v2094
      %2223 = vst [vmem:[%s221 + $0x3f8] sm:$0xff] %v2095
      %s2224 = smul.u32 128, %s15
      %p2225 = scmp.lt.s32.totalorder %s2224, 1663
      %s2226 = scalar_select %p2225, %s2224, 1663
      %s2227 = smul.addr %s2226, 8
      %s2228 = scalar_lea.vmem %s4, %s2227
      // Predicated region
      $region37: #{lenet5_mcdropout_forward.9} parent=35 // pred_check
        %p2229 = pneg %p127
      $region38: #{lenet5_mcdropout_forward.9} parent=35 // pred_check_branch
        %2231 = sbr.rel (%p2229) target = $region40
      $region39: #{lenet5_mcdropout_forward.9} parent=35 // pred_region
        %s2232 = smul.u32 128, %s15
      $region40: #{lenet5_mcdropout_forward.9} parent=35 // pred_fallthru
        _
    $region36: #{lenet5_mcdropout_forward.9} parent=5 // pred_fallthru
      _
    %p2233 = scmp.le.s32.totalorder 2, %s10
    // Predicated region
    $region41: #{lenet5_mcdropout_forward.9} parent=5 // pred_check
      %p2234 = pneg %p2233
    $region42: #{lenet5_mcdropout_forward.9} parent=5 // pred_check_branch
      %2236 = sbr.rel (%p2234) target = $region44
    $region43: #{lenet5_mcdropout_forward.9} parent=5 // pred_region
      %s2237 = ssub.s32 %s10, 2
      // Predicated region
      $region45: #{lenet5_mcdropout_forward.9} parent=43 // pred_check
        %p2238 = pneg %p133
      $region46: #{lenet5_mcdropout_forward.9} parent=43 // pred_check_branch
        %2240 = sbr.rel (%p2238) target = $region48
      $region47: #{lenet5_mcdropout_forward.9} parent=43 // pred_region
        %s2241 = smul.u32 128, %s16
        %p2242 = scmp.lt.s32.totalorder %s2241, 1663
        %s2243 = scalar_select %p2242, %s2241, 1663
        %s2244 = smul.addr %s2243, 8
        %s2245 = scalar_lea.vmem %s4, %s2244
      $region48: #{lenet5_mcdropout_forward.9} parent=43 // pred_fallthru
        _
    $region44: #{lenet5_mcdropout_forward.9} parent=5 // pred_fallthru
      _
  $region6: #{lenet5_mcdropout_forward.9} parent=0 // loop_footer
    %s14 = sadd.s32 1, %s10
  $region7: #{lenet5_mcdropout_forward.9} parent=0 // loop_footer_branch
    %9 = sbr.rel target = $region3
  $region8: #{lenet5_mcdropout_forward.9} parent=0 // loop_exit
    _

// kernel: lenet5_mcdropout_forward.10
$region0: #{lenet5_mcdropout_forward.10}
  #allocation0 [shape = 'u32[]', space=smem, size = 0x4, offset = 0x4, fixed_abs, tag = 'smem constant byte address 0x4 - core index']
  #allocation1 [shape = 'u32[144,128]{1,0:T(1,128)}', space=vmem, size = 0x12000, scoped, tag = 'internal scratch']
  %s0 = inlined_call_operand.vmem [shape: f32[2048,150], index: 0, kind: input, shape index: {}]
  %s1 = inlined_call_operand.vmem [shape: f32[150,128], index: 1, kind: input, shape index: {}]
  %s2 = inlined_call_operand.vmem [shape: f32[1,128], index: 2, kind: input, shape index: {}]
  %s3 = inlined_call_operand.vmem [shape: u32[2048,128], index: 3, kind: input, shape index: {}]
  %s4 = inlined_call_operand.vmem [shape: f32[2048,128], index: 4, kind: output, shape index: {}]
  %s5 = sld [smem:[#allocation0]]
  $region49: #{lenet5_mcdropout_forward.10} parent=0
    _
  %s7 = ssub.s32 1, %s5
  %s8 = scalar_select 0, %s7, %s5
  loop: start=0, step=1, limit=4
  $region2: #{lenet5_mcdropout_forward.10} parent=0 // loop_pre_header
    _
  $region3: #{lenet5_mcdropout_forward.10} parent=0 // loop_header
    %s10 = sphi 0, %s14
    %p11 = scmp.ge.s32.totalorder %s10, 4
    %s20 = sphi 0, %s22
    %s23 = sphi 0, %s20
    %s24 = sphi 0, %s23
    %s40 = sphi 0, %s24
    %s44 = sphi 0, %s44
    %s46 = sphi 0, %s44
    %s47 = sphi 0, %s46
    %s61 = sphi 0, %s47
    %s65 = sphi 0, %s65
    %s67 = sphi 0, %s65
    %s68 = sphi 0, %s67
    %s82 = sphi 0, %s68
    %s88 = sphi 0, %s90
    %s91 = sphi 0, %s88
    %s92 = sphi 0, %s91
    %s108 = sphi 0, %s92
    %s114 = sphi 0, %s116
    %s117 = sphi 0, %s114
    %s118 = sphi 0, %s117
    %s134 = sphi 0, %s118
  $region4: #{lenet5_mcdropout_forward.10} parent=0 // loop_header_branch
    %13 = sbr.rel (%p11) target = $region8
  $region5: #{lenet5_mcdropout_forward.10} parent=0 // loop_body
    %s15 = ssub.s32 %s10, 1
    %s16 = ssub.s32 %s10, 2
    %s17 = sadd.s32 %s10, 1
    %s18 = ssub.s32 %s10, %s17
    %p19 = scmp.eq.s32.totalorder %s18, 0
    %s21 = sadd.s32 %s20, 1
    %s22 = scalar_select %p19, %s20, %s21
    %p25 = pneg %p19
    %p26 = scmp.eq.s32.totalorder %s10, 1
    %p27 = por %p25, %p26
    %p28 = scmp.ne.s32.totalorder %s20, %s23
    %p29 = scmp.eq.s32.totalorder %s10, 0
    %p30 = por %p28, %p29
    %p31 = scmp.ne.s32.totalorder %s20, %s23
    %p32 = scmp.eq.s32.totalorder %s15, 1
    %p33 = por %p31, %p32
    %p34 = scmp.ne.s32.totalorder %s23, %s24
    %p35 = scmp.eq.s32.totalorder %s15, 0
    %p36 = por %p34, %p35
    %p37 = scmp.ne.s32.totalorder %s23, %s24
    %p38 = scmp.eq.s32.totalorder %s16, 1
    %p39 = por %p37, %p38
    %p41 = scmp.ne.s32.totalorder %s24, %s40
    %p42 = scmp.eq.s32.totalorder %s16, 0
    %p43 = por %p41, %p42
    %s45 = sadd.s32 %s44, 1
    %p48 = scmp.eq.s32.totalorder %s10, 1
    %p49 = scmp.ne.s32.totalorder %s44, %s46
    %p50 = scmp.eq.s32.totalorder %s10, 0
    %p51 = por %p49, %p50
    %p52 = scmp.ne.s32.totalorder %s44, %s46
    %p53 = scmp.eq.s32.totalorder %s15, 1
    %p54 = por %p52, %p53
    %p55 = scmp.ne.s32.totalorder %s46, %s47
    %p56 = scmp.eq.s32.totalorder %s15, 0
    %p57 = por %p55, %p56
    %p58 = scmp.ne.s32.totalorder %s46, %s47
    %p59 = scmp.eq.s32.totalorder %s16, 1
    %p60 = por %p58, %p59
    %p62 = scmp.ne.s32.totalorder %s47, %s61
    %p63 = scmp.eq.s32.totalorder %s16, 0
    %p64 = por %p62, %p63
    %s66 = sadd.s32 %s65, 1
    %p69 = scmp.eq.s32.totalorder %s10, 1
    %p70 = scmp.ne.s32.totalorder %s65, %s67
    %p71 = scmp.eq.s32.totalorder %s10, 0
    %p72 = por %p70, %p71
    %p73 = scmp.ne.s32.totalorder %s65, %s67
    %p74 = scmp.eq.s32.totalorder %s15, 1
    %p75 = por %p73, %p74
    %p76 = scmp.ne.s32.totalorder %s67, %s68
    %p77 = scmp.eq.s32.totalorder %s15, 0
    %p78 = por %p76, %p77
    %p79 = scmp.ne.s32.totalorder %s67, %s68
    %p80 = scmp.eq.s32.totalorder %s16, 1
    %p81 = por %p79, %p80
    %p83 = scmp.ne.s32.totalorder %s68, %s82
    %p84 = scmp.eq.s32.totalorder %s16, 0
    %p85 = por %p83, %p84
    %s86 = ssub.s32 %s10, %s17
    %p87 = scmp.eq.s32.totalorder %s86, 0
    %s89 = sadd.s32 %s88, 1
    %s90 = scalar_select %p87, %s88, %s89
    %p93 = pneg %p87
    %p94 = scmp.eq.s32.totalorder %s10, 1
    %p95 = por %p93, %p94
    %p96 = scmp.ne.s32.totalorder %s88, %s91
    %p97 = scmp.eq.s32.totalorder %s10, 0
    %p98 = por %p96, %p97
    %p99 = scmp.ne.s32.totalorder %s88, %s91
    %p100 = scmp.eq.s32.totalorder %s15, 1
    %p101 = por %p99, %p100
    %p102 = scmp.ne.s32.totalorder %s91, %s92
    %p103 = scmp.eq.s32.totalorder %s15, 0
    %p104 = por %p102, %p103
    %p105 = scmp.ne.s32.totalorder %s91, %s92
    %p106 = scmp.eq.s32.totalorder %s16, 1
    %p107 = por %p105, %p106
    %p109 = scmp.ne.s32.totalorder %s92, %s108
    %p110 = scmp.eq.s32.totalorder %s16, 0
    %p111 = por %p109, %p110
    %s112 = ssub.s32 %s10, %s17
    %p113 = scmp.eq.s32.totalorder %s112, 0
    %s115 = sadd.s32 %s114, 1
    %s116 = scalar_select %p113, %s114, %s115
    %p119 = pneg %p113
    %p120 = scmp.eq.s32.totalorder %s10, 1
    %p121 = por %p119, %p120
    %p122 = scmp.ne.s32.totalorder %s114, %s117
    %p123 = scmp.eq.s32.totalorder %s10, 0
    %p124 = por %p122, %p123
    %p125 = scmp.ne.s32.totalorder %s114, %s117
    %p126 = scmp.eq.s32.totalorder %s15, 1
    %p127 = por %p125, %p126
    %p128 = scmp.ne.s32.totalorder %s117, %s118
    %p129 = scmp.eq.s32.totalorder %s15, 0
    %p130 = por %p128, %p129
    %p131 = scmp.ne.s32.totalorder %s117, %s118
    %p132 = scmp.eq.s32.totalorder %s16, 1
    %p133 = por %p131, %p132
    %p135 = scmp.ne.s32.totalorder %s118, %s134
    %p136 = scmp.eq.s32.totalorder %s16, 0
    %p137 = por %p135, %p136
    %p138 = scmp.le.s32.totalorder 1, %s10
    %p139 = scmp.lt.s32.totalorder %s10, 3
    %p140 = pnand %p138, %p139
    %p141 = pneg %p140
    // Predicated region
    $region9: #{lenet5_mcdropout_forward.10} parent=5 // pred_check
      _
    $region10: #{lenet5_mcdropout_forward.10} parent=5 // pred_check_branch
      %143 = sbr.rel (%p140) target = $region12
    $region11: #{lenet5_mcdropout_forward.10} parent=5 // pred_region
      %s144 = ssub.s32 %s10, 1
      // Predicated region
      $region13: #{lenet5_mcdropout_forward.10} parent=11 // pred_check
        %p145 = pneg %p57
      $region14: #{lenet5_mcdropout_forward.10} parent=11 // pred_check_branch
        %147 = sbr.rel (%p145) target = $region16
      $region15: #{lenet5_mcdropout_forward.10} parent=11 // pred_region
        _
      $region16: #{lenet5_mcdropout_forward.10} parent=11 // pred_fallthru
        _
      // Predicated region
      $region17: #{lenet5_mcdropout_forward.10} parent=11 // pred_check
        %p148 = pneg %p78
      $region18: #{lenet5_mcdropout_forward.10} parent=11 // pred_check_branch
        %150 = sbr.rel (%p148) target = $region20
      $region19: #{lenet5_mcdropout_forward.10} parent=11 // pred_region
        _
      $region20: #{lenet5_mcdropout_forward.10} parent=11 // pred_fallthru
        _
    $region12: #{lenet5_mcdropout_forward.10} parent=5 // pred_fallthru
      _
    %p151 = scmp.lt.s32.totalorder %s10, 2
    // Predicated region
    $region21: #{lenet5_mcdropout_forward.10} parent=5 // pred_check
      %p152 = pneg %p151
    $region22: #{lenet5_mcdropout_forward.10} parent=5 // pred_check_branch
      %154 = sbr.rel (%p152) target = $region24
    $region23: #{lenet5_mcdropout_forward.10} parent=5 // pred_region
      // Predicated region
      $region25: #{lenet5_mcdropout_forward.10} parent=23 // pred_check
        %p155 = pneg %p30
      $region26: #{lenet5_mcdropout_forward.10} parent=23 // pred_check_branch
        %157 = sbr.rel (%p155) target = $region28
      $region27: #{lenet5_mcdropout_forward.10} parent=23 // pred_region
        %s158 = smul.u32 128, %s10
        %p159 = scmp.lt.s32.totalorder %s158, 255
        %s160 = scalar_select %p159, %s158, 255
        %s161 = smul.addr %s160, 2
        %s162 = smul.addr %s161, 8
        %s163 = scalar_lea.vmem %s0, %s162
        %s164 = smul.u32 128, %s10
      $region28: #{lenet5_mcdropout_forward.10} parent=23 // pred_fallthru
        _
      // Predicated region
      $region29: #{lenet5_mcdropout_forward.10} parent=23 // pred_check
        %p165 = pneg %p98
      $region30: #{lenet5_mcdropout_forward.10} parent=23 // pred_check_branch
        %167 = sbr.rel (%p165) target = $region32
      $region31: #{lenet5_mcdropout_forward.10} parent=23 // pred_region
        %s168 = smul.u32 128, %s10
        %p169 = scmp.lt.s32.totalorder %s168, 255
        %s170 = scalar_select %p169, %s168, 255
        %s171 = smul.addr %s170, 8
        %s172 = scalar_lea.vmem %s3, %s171
        %s173 = smul.u32 128, %s10
      $region32: #{lenet5_mcdropout_forward.10} parent=23 // pred_fallthru
        _
    $region24: #{lenet5_mcdropout_forward.10} parent=5 // pred_fallthru
      _
    %p174 = scmp.le.s32.totalorder 1, %s10
    %p175 = scmp.lt.s32.totalorder %s10, 3
    %p176 = pnand %p174, %p175
    %p177 = pneg %p176
    // Predicated region
    $region33: #{lenet5_mcdropout_forward.10} parent=5 // pred_check
      _
    $region34: #{lenet5_mcdropout_forward.10} parent=5 // pred_check_branch
      %179 = sbr.rel (%p176) target = $region36
    $region35: #{lenet5_mcdropout_forward.10} parent=5 // pred_region
      %s180 = ssub.s32 %s10, 1
      %s181 = smul.u32 128, %s15
      %p182 = scmp.lt.s32.totalorder %s181, 255
      %s183 = scalar_select %p182, %s181, 255
      %s184 = smul.addr %s183, 2
      %s185 = smul.addr %s184, 8
      %s186 = scalar_lea.vmem %s0, %s185
      %p187 = pneg %p36
      %p188 = pneg %p33
      %p189 = pneg %p57
      %p190 = pneg %p54
      %p191 = pneg %p78
      %p192 = pneg %p75
      %s193 = smul.u32 128, %s15
      %p194 = scmp.lt.s32.totalorder %s193, 255
      %s195 = scalar_select %p194, %s193, 255
      %s196 = smul.addr %s195, 8
      %s197 = scalar_lea.vmem %s3, %s196
      %p198 = pneg %p104
      %p199 = pneg %p101
      %p200 = pneg %p130
      %p201 = pneg %p127
      %s202 = smul.u32 128, %s15
      %p203 = scmp.lt.s32.totalorder %s202, 255
      %s204 = scalar_select %p203, %s202, 255
      %s205 = smul.addr %s204, 8
      %s206 = scalar_lea.vmem %s4, %s205
      %s207 = smul.u32 128, %s15
      %p208 = scmp.lt.s32.totalorder %s207, 255
      %s209 = scalar_select %p208, %s207, 255
      %s210 = smul.addr %s209, 2
      %s211 = smul.addr %s210, 8
      %s212 = scalar_lea.vmem %s0, %s211
      %s213 = smul.u32 128, %s15
      %s214 = smul.u32 128, %s15
      %p215 = scmp.lt.s32.totalorder %s214, 255
      %s216 = scalar_select %p215, %s214, 255
      %s217 = smul.addr %s216, 8
      %s218 = scalar_lea.vmem %s3, %s217
      %s219 = smul.u32 128, %s15
      %s220 = smul.u32 128, %s15
      %p221 = scmp.lt.s32.totalorder %s220, 255
      %s222 = scalar_select %p221, %s220, 255
      %s223 = smul.addr %s222, 8
      %s224 = scalar_lea.vmem %s4, %s223
      %s225 = smul.u32 128, %s15
      %v226 = vld [vmem:[%s212] sm:$0xff]
      %v227 = vld [vmem:[%s212 + $0x8] sm:$0xff]
      %v228 = vld [vmem:[%s212 + $0x10] sm:$0xff]
      %v229 = vld [vmem:[%s212 + $0x18] sm:$0xff]
      %v230 = vld [vmem:[%s212 + $0x20] sm:$0xff]
      %v231 = vld [vmem:[%s212 + $0x28] sm:$0xff]
      %v232 = vld [vmem:[%s212 + $0x30] sm:$0xff]
      %v233 = vld [vmem:[%s212 + $0x38] sm:$0xff]
      %v234 = vld [vmem:[%s212 + $0x40] sm:$0xff]
      %v235 = vld [vmem:[%s212 + $0x48] sm:$0xff]
      %v236 = vld [vmem:[%s212 + $0x50] sm:$0xff]
      %v237 = vld [vmem:[%s212 + $0x58] sm:$0xff]
      %v238 = vld [vmem:[%s212 + $0x60] sm:$0xff]
      %v239 = vld [vmem:[%s212 + $0x68] sm:$0xff]
      %v240 = vld [vmem:[%s212 + $0x70] sm:$0xff]
      %v241 = vld [vmem:[%s212 + $0x78] sm:$0xff]
      %v242 = vld [vmem:[%s212 + $0x80] sm:$0xff]
      %v243 = vld [vmem:[%s212 + $0x88] sm:$0xff]
      %v244 = vld [vmem:[%s212 + $0x90] sm:$0xff]
      %v245 = vld [vmem:[%s212 + $0x98] sm:$0xff]
      %v246 = vld [vmem:[%s212 + $0xa0] sm:$0xff]
      %v247 = vld [vmem:[%s212 + $0xa8] sm:$0xff]
      %v248 = vld [vmem:[%s212 + $0xb0] sm:$0xff]
      %v249 = vld [vmem:[%s212 + $0xb8] sm:$0xff]
      %v250 = vld [vmem:[%s212 + $0xc0] sm:$0xff]
      %v251 = vld [vmem:[%s212 + $0xc8] sm:$0xff]
      %v252 = vld [vmem:[%s212 + $0xd0] sm:$0xff]
      %v253 = vld [vmem:[%s212 + $0xd8] sm:$0xff]
      %v254 = vld [vmem:[%s212 + $0xe0] sm:$0xff]
      %v255 = vld [vmem:[%s212 + $0xe8] sm:$0xff]
      %v256 = vld [vmem:[%s212 + $0xf0] sm:$0xff]
      %v257 = vld [vmem:[%s212 + $0xf8] sm:$0xff]
      %v258 = vld [vmem:[%s212 + $0x100] sm:$0xff]
      %v259 = vld [vmem:[%s212 + $0x108] sm:$0xff]
      %v260 = vld [vmem:[%s212 + $0x110] sm:$0xff]
      %v261 = vld [vmem:[%s212 + $0x118] sm:$0xff]
      %v262 = vld [vmem:[%s212 + $0x120] sm:$0xff]
      %v263 = vld [vmem:[%s212 + $0x128] sm:$0xff]
      %v264 = vld [vmem:[%s212 + $0x130] sm:$0xff]
      %v265 = vld [vmem:[%s212 + $0x138] sm:$0xff]
      %v266 = vld [vmem:[%s212 + $0x140] sm:$0xff]
      %v267 = vld [vmem:[%s212 + $0x148] sm:$0xff]
      %v268 = vld [vmem:[%s212 + $0x150] sm:$0xff]
      %v269 = vld [vmem:[%s212 + $0x158] sm:$0xff]
      %v270 = vld [vmem:[%s212 + $0x160] sm:$0xff]
      %v271 = vld [vmem:[%s212 + $0x168] sm:$0xff]
      %v272 = vld [vmem:[%s212 + $0x170] sm:$0xff]
      %v273 = vld [vmem:[%s212 + $0x178] sm:$0xff]
      %v274 = vld [vmem:[%s212 + $0x180] sm:$0xff]
      %v275 = vld [vmem:[%s212 + $0x188] sm:$0xff]
      %v276 = vld [vmem:[%s212 + $0x190] sm:$0xff]
      %v277 = vld [vmem:[%s212 + $0x198] sm:$0xff]
      %v278 = vld [vmem:[%s212 + $0x1a0] sm:$0xff]
      %v279 = vld [vmem:[%s212 + $0x1a8] sm:$0xff]
      %v280 = vld [vmem:[%s212 + $0x1b0] sm:$0xff]
      %v281 = vld [vmem:[%s212 + $0x1b8] sm:$0xff]
      %v282 = vld [vmem:[%s212 + $0x1c0] sm:$0xff]
      %v283 = vld [vmem:[%s212 + $0x1c8] sm:$0xff]
      %v284 = vld [vmem:[%s212 + $0x1d0] sm:$0xff]
      %v285 = vld [vmem:[%s212 + $0x1d8] sm:$0xff]
      %v286 = vld [vmem:[%s212 + $0x1e0] sm:$0xff]
      %v287 = vld [vmem:[%s212 + $0x1e8] sm:$0xff]
      %v288 = vld [vmem:[%s212 + $0x1f0] sm:$0xff]
      %v289 = vld [vmem:[%s212 + $0x1f8] sm:$0xff]
      %v290 = vld [vmem:[%s212 + $0x200] sm:$0xff]
      %v291 = vld [vmem:[%s212 + $0x208] sm:$0xff]
      %v292 = vld [vmem:[%s212 + $0x210] sm:$0xff]
      %v293 = vld [vmem:[%s212 + $0x218] sm:$0xff]
      %v294 = vld [vmem:[%s212 + $0x220] sm:$0xff]
      %v295 = vld [vmem:[%s212 + $0x228] sm:$0xff]
      %v296 = vld [vmem:[%s212 + $0x230] sm:$0xff]
      %v297 = vld [vmem:[%s212 + $0x238] sm:$0xff]
      %v298 = vld [vmem:[%s212 + $0x240] sm:$0xff]
      %v299 = vld [vmem:[%s212 + $0x248] sm:$0xff]
      %v300 = vld [vmem:[%s212 + $0x250] sm:$0xff]
      %v301 = vld [vmem:[%s212 + $0x258] sm:$0xff]
      %v302 = vld [vmem:[%s212 + $0x260] sm:$0xff]
      %v303 = vld [vmem:[%s212 + $0x268] sm:$0xff]
      %v304 = vld [vmem:[%s212 + $0x270] sm:$0xff]
      %v305 = vld [vmem:[%s212 + $0x278] sm:$0xff]
      %v306 = vld [vmem:[%s212 + $0x280] sm:$0xff]
      %v307 = vld [vmem:[%s212 + $0x288] sm:$0xff]
      %v308 = vld [vmem:[%s212 + $0x290] sm:$0xff]
      %v309 = vld [vmem:[%s212 + $0x298] sm:$0xff]
      %v310 = vld [vmem:[%s212 + $0x2a0] sm:$0xff]
      %v311 = vld [vmem:[%s212 + $0x2a8] sm:$0xff]
      %v312 = vld [vmem:[%s212 + $0x2b0] sm:$0xff]
      %v313 = vld [vmem:[%s212 + $0x2b8] sm:$0xff]
      %v314 = vld [vmem:[%s212 + $0x2c0] sm:$0xff]
      %v315 = vld [vmem:[%s212 + $0x2c8] sm:$0xff]
      %v316 = vld [vmem:[%s212 + $0x2d0] sm:$0xff]
      %v317 = vld [vmem:[%s212 + $0x2d8] sm:$0xff]
      %v318 = vld [vmem:[%s212 + $0x2e0] sm:$0xff]
      %v319 = vld [vmem:[%s212 + $0x2e8] sm:$0xff]
      %v320 = vld [vmem:[%s212 + $0x2f0] sm:$0xff]
      %v321 = vld [vmem:[%s212 + $0x2f8] sm:$0xff]
      %v322 = vld [vmem:[%s212 + $0x300] sm:$0xff]
      %v323 = vld [vmem:[%s212 + $0x308] sm:$0xff]
      %v324 = vld [vmem:[%s212 + $0x310] sm:$0xff]
      %v325 = vld [vmem:[%s212 + $0x318] sm:$0xff]
      %v326 = vld [vmem:[%s212 + $0x320] sm:$0xff]
      %v327 = vld [vmem:[%s212 + $0x328] sm:$0xff]
      %v328 = vld [vmem:[%s212 + $0x330] sm:$0xff]
      %v329 = vld [vmem:[%s212 + $0x338] sm:$0xff]
      %v330 = vld [vmem:[%s212 + $0x340] sm:$0xff]
      %v331 = vld [vmem:[%s212 + $0x348] sm:$0xff]
      %v332 = vld [vmem:[%s212 + $0x350] sm:$0xff]
      %v333 = vld [vmem:[%s212 + $0x358] sm:$0xff]
      %v334 = vld [vmem:[%s212 + $0x360] sm:$0xff]
      %v335 = vld [vmem:[%s212 + $0x368] sm:$0xff]
      %v336 = vld [vmem:[%s212 + $0x370] sm:$0xff]
      %v337 = vld [vmem:[%s212 + $0x378] sm:$0xff]
      %v338 = vld [vmem:[%s212 + $0x380] sm:$0xff]
      %v339 = vld [vmem:[%s212 + $0x388] sm:$0xff]
      %v340 = vld [vmem:[%s212 + $0x390] sm:$0xff]
      %v341 = vld [vmem:[%s212 + $0x398] sm:$0xff]
      %v342 = vld [vmem:[%s212 + $0x3a0] sm:$0xff]
      %v343 = vld [vmem:[%s212 + $0x3a8] sm:$0xff]
      %v344 = vld [vmem:[%s212 + $0x3b0] sm:$0xff]
      %v345 = vld [vmem:[%s212 + $0x3b8] sm:$0xff]
      %v346 = vld [vmem:[%s212 + $0x3c0] sm:$0xff]
      %v347 = vld [vmem:[%s212 + $0x3c8] sm:$0xff]
      %v348 = vld [vmem:[%s212 + $0x3d0] sm:$0xff]
      %v349 = vld [vmem:[%s212 + $0x3d8] sm:$0xff]
      %v350 = vld [vmem:[%s212 + $0x3e0] sm:$0xff]
      %v351 = vld [vmem:[%s212 + $0x3e8] sm:$0xff]
      %v352 = vld [vmem:[%s212 + $0x3f0] sm:$0xff]
      %v353 = vld [vmem:[%s212 + $0x3f8] sm:$0xff]
      %v354 = vld [vmem:[%s212 + $0x400] sm:$0xff]
      %v355 = vld [vmem:[%s212 + $0x408] sm:$0xff]
      %v356 = vld [vmem:[%s212 + $0x410] sm:$0xff]
      %v357 = vld [vmem:[%s212 + $0x418] sm:$0xff]
      %v358 = vld [vmem:[%s212 + $0x420] sm:$0xff]
      %v359 = vld [vmem:[%s212 + $0x428] sm:$0xff]
      %v360 = vld [vmem:[%s212 + $0x430] sm:$0xff]
      %v361 = vld [vmem:[%s212 + $0x438] sm:$0xff]
      %v362 = vld [vmem:[%s212 + $0x440] sm:$0xff]
      %v363 = vld [vmem:[%s212 + $0x448] sm:$0xff]
      %v364 = vld [vmem:[%s212 + $0x450] sm:$0xff]
      %v365 = vld [vmem:[%s212 + $0x458] sm:$0xff]
      %v366 = vld [vmem:[%s212 + $0x460] sm:$0xff]
      %v367 = vld [vmem:[%s212 + $0x468] sm:$0xff]
      %v368 = vld [vmem:[%s212 + $0x470] sm:$0xff]
      %v369 = vld [vmem:[%s212 + $0x478] sm:$0xff]
      %v370 = vld [vmem:[%s212 + $0x480] sm:$0xff]
      %v371 = vld [vmem:[%s212 + $0x488] sm:$0xff]
      %v372 = vld [vmem:[%s212 + $0x490] sm:$0xff]
      %v373 = vld [vmem:[%s212 + $0x498] sm:$0xff]
      %v374 = vld [vmem:[%s212 + $0x4a0] sm:$0xff]
      %v375 = vld [vmem:[%s212 + $0x4a8] sm:$0xff]
      %v376 = vld [vmem:[%s212 + $0x4b0] sm:$0xff]
      %v377 = vld [vmem:[%s212 + $0x4b8] sm:$0xff]
      %v378 = vld [vmem:[%s212 + $0x4c0] sm:$0xff]
      %v379 = vld [vmem:[%s212 + $0x4c8] sm:$0xff]
      %v380 = vld [vmem:[%s212 + $0x4d0] sm:$0xff]
      %v381 = vld [vmem:[%s212 + $0x4d8] sm:$0xff]
      %v382 = vld [vmem:[%s212 + $0x4e0] sm:$0xff]
      %v383 = vld [vmem:[%s212 + $0x4e8] sm:$0xff]
      %v384 = vld [vmem:[%s212 + $0x4f0] sm:$0xff]
      %v385 = vld [vmem:[%s212 + $0x4f8] sm:$0xff]
      %v386 = vld [vmem:[%s212 + $0x500] sm:$0xff]
      %v387 = vld [vmem:[%s212 + $0x508] sm:$0xff]
      %v388 = vld [vmem:[%s212 + $0x510] sm:$0xff]
      %v389 = vld [vmem:[%s212 + $0x518] sm:$0xff]
      %v390 = vld [vmem:[%s212 + $0x520] sm:$0xff]
      %v391 = vld [vmem:[%s212 + $0x528] sm:$0xff]
      %v392 = vld [vmem:[%s212 + $0x530] sm:$0xff]
      %v393 = vld [vmem:[%s212 + $0x538] sm:$0xff]
      %v394 = vld [vmem:[%s212 + $0x540] sm:$0xff]
      %v395 = vld [vmem:[%s212 + $0x548] sm:$0xff]
      %v396 = vld [vmem:[%s212 + $0x550] sm:$0xff]
      %v397 = vld [vmem:[%s212 + $0x558] sm:$0xff]
      %v398 = vld [vmem:[%s212 + $0x560] sm:$0xff]
      %v399 = vld [vmem:[%s212 + $0x568] sm:$0xff]
      %v400 = vld [vmem:[%s212 + $0x570] sm:$0xff]
      %v401 = vld [vmem:[%s212 + $0x578] sm:$0xff]
      %v402 = vld [vmem:[%s212 + $0x580] sm:$0xff]
      %v403 = vld [vmem:[%s212 + $0x588] sm:$0xff]
      %v404 = vld [vmem:[%s212 + $0x590] sm:$0xff]
      %v405 = vld [vmem:[%s212 + $0x598] sm:$0xff]
      %v406 = vld [vmem:[%s212 + $0x5a0] sm:$0xff]
      %v407 = vld [vmem:[%s212 + $0x5a8] sm:$0xff]
      %v408 = vld [vmem:[%s212 + $0x5b0] sm:$0xff]
      %v409 = vld [vmem:[%s212 + $0x5b8] sm:$0xff]
      %v410 = vld [vmem:[%s212 + $0x5c0] sm:$0xff]
      %v411 = vld [vmem:[%s212 + $0x5c8] sm:$0xff]
      %v412 = vld [vmem:[%s212 + $0x5d0] sm:$0xff]
      %v413 = vld [vmem:[%s212 + $0x5d8] sm:$0xff]
      %v414 = vld [vmem:[%s212 + $0x5e0] sm:$0xff]
      %v415 = vld [vmem:[%s212 + $0x5e8] sm:$0xff]
      %v416 = vld [vmem:[%s212 + $0x5f0] sm:$0xff]
      %v417 = vld [vmem:[%s212 + $0x5f8] sm:$0xff]
      %v418 = vld [vmem:[%s212 + $0x600] sm:$0xff]
      %v419 = vld [vmem:[%s212 + $0x608] sm:$0xff]
      %v420 = vld [vmem:[%s212 + $0x610] sm:$0xff]
      %v421 = vld [vmem:[%s212 + $0x618] sm:$0xff]
      %v422 = vld [vmem:[%s212 + $0x620] sm:$0xff]
      %v423 = vld [vmem:[%s212 + $0x628] sm:$0xff]
      %v424 = vld [vmem:[%s212 + $0x630] sm:$0xff]
      %v425 = vld [vmem:[%s212 + $0x638] sm:$0xff]
      %v426 = vld [vmem:[%s212 + $0x640] sm:$0xff]
      %v427 = vld [vmem:[%s212 + $0x648] sm:$0xff]
      %v428 = vld [vmem:[%s212 + $0x650] sm:$0xff]
      %v429 = vld [vmem:[%s212 + $0x658] sm:$0xff]
      %v430 = vld [vmem:[%s212 + $0x660] sm:$0xff]
      %v431 = vld [vmem:[%s212 + $0x668] sm:$0xff]
      %v432 = vld [vmem:[%s212 + $0x670] sm:$0xff]
      %v433 = vld [vmem:[%s212 + $0x678] sm:$0xff]
      %v434 = vld [vmem:[%s212 + $0x680] sm:$0xff]
      %v435 = vld [vmem:[%s212 + $0x688] sm:$0xff]
      %v436 = vld [vmem:[%s212 + $0x690] sm:$0xff]
      %v437 = vld [vmem:[%s212 + $0x698] sm:$0xff]
      %v438 = vld [vmem:[%s212 + $0x6a0] sm:$0xff]
      %v439 = vld [vmem:[%s212 + $0x6a8] sm:$0xff]
      %v440 = vld [vmem:[%s212 + $0x6b0] sm:$0xff]
      %v441 = vld [vmem:[%s212 + $0x6b8] sm:$0xff]
      %v442 = vld [vmem:[%s212 + $0x6c0] sm:$0xff]
      %v443 = vld [vmem:[%s212 + $0x6c8] sm:$0xff]
      %v444 = vld [vmem:[%s212 + $0x6d0] sm:$0xff]
      %v445 = vld [vmem:[%s212 + $0x6d8] sm:$0xff]
      %v446 = vld [vmem:[%s212 + $0x6e0] sm:$0xff]
      %v447 = vld [vmem:[%s212 + $0x6e8] sm:$0xff]
      %v448 = vld [vmem:[%s212 + $0x6f0] sm:$0xff]
      %v449 = vld [vmem:[%s212 + $0x6f8] sm:$0xff]
      %v450 = vld [vmem:[%s212 + $0x700] sm:$0xff]
      %v451 = vld [vmem:[%s212 + $0x708] sm:$0xff]
      %v452 = vld [vmem:[%s212 + $0x710] sm:$0xff]
      %v453 = vld [vmem:[%s212 + $0x718] sm:$0xff]
      %v454 = vld [vmem:[%s212 + $0x720] sm:$0xff]
      %v455 = vld [vmem:[%s212 + $0x728] sm:$0xff]
      %v456 = vld [vmem:[%s212 + $0x730] sm:$0xff]
      %v457 = vld [vmem:[%s212 + $0x738] sm:$0xff]
      %v458 = vld [vmem:[%s212 + $0x740] sm:$0xff]
      %v459 = vld [vmem:[%s212 + $0x748] sm:$0xff]
      %v460 = vld [vmem:[%s212 + $0x750] sm:$0xff]
      %v461 = vld [vmem:[%s212 + $0x758] sm:$0xff]
      %v462 = vld [vmem:[%s212 + $0x760] sm:$0xff]
      %v463 = vld [vmem:[%s212 + $0x768] sm:$0xff]
      %v464 = vld [vmem:[%s212 + $0x770] sm:$0xff]
      %v465 = vld [vmem:[%s212 + $0x778] sm:$0xff]
      %v466 = vld [vmem:[%s212 + $0x780] sm:$0xff]
      %v467 = vld [vmem:[%s212 + $0x788] sm:$0xff]
      %v468 = vld [vmem:[%s212 + $0x790] sm:$0xff]
      %v469 = vld [vmem:[%s212 + $0x798] sm:$0xff]
      %v470 = vld [vmem:[%s212 + $0x7a0] sm:$0xff]
      %v471 = vld [vmem:[%s212 + $0x7a8] sm:$0xff]
      %v472 = vld [vmem:[%s212 + $0x7b0] sm:$0xff]
      %v473 = vld [vmem:[%s212 + $0x7b8] sm:$0xff]
      %v474 = vld [vmem:[%s212 + $0x7c0] sm:$0xff]
      %v475 = vld [vmem:[%s212 + $0x7c8] sm:$0xff]
      %v476 = vld [vmem:[%s212 + $0x7d0] sm:$0xff]
      %v477 = vld [vmem:[%s212 + $0x7d8] sm:$0xff]
      %v478 = vld [vmem:[%s212 + $0x7e0] sm:$0xff]
      %v479 = vld [vmem:[%s212 + $0x7e8] sm:$0xff]
      %v480 = vld [vmem:[%s212 + $0x7f0] sm:$0xff]
      %v481 = vld [vmem:[%s212 + $0x7f8] sm:$0xff]
      %v482 = vld [vmem:[%s1] sm:$0xff]
      %v483 = vld [vmem:[%s1 + $0x8] sm:$0xff]
      %v484 = vld [vmem:[%s1 + $0x10] sm:$0xff]
      %v485 = vld [vmem:[%s1 + $0x18] sm:$0xff]
      %v486 = vld [vmem:[%s1 + $0x20] sm:$0xff]
      %v487 = vld [vmem:[%s1 + $0x28] sm:$0xff]
      %v488 = vld [vmem:[%s1 + $0x30] sm:$0xff]
      %v489 = vld [vmem:[%s1 + $0x38] sm:$0xff]
      %v490 = vld [vmem:[%s1 + $0x40] sm:$0xff]
      %v491 = vld [vmem:[%s1 + $0x48] sm:$0xff]
      %v492 = vld [vmem:[%s1 + $0x50] sm:$0xff]
      %v493 = vld [vmem:[%s1 + $0x58] sm:$0xff]
      %v494 = vld [vmem:[%s1 + $0x60] sm:$0xff]
      %v495 = vld [vmem:[%s1 + $0x68] sm:$0xff]
      %v496 = vld [vmem:[%s1 + $0x70] sm:$0xff]
      %v497 = vld [vmem:[%s1 + $0x78] sm:$0xff]
      %v498 = vld [vmem:[%s1 + $0x80] sm:$0xff]
      %v499 = vld [vmem:[%s1 + $0x88] sm:$0xff]
      %v500 = vld [vmem:[%s1 + $0x90] sm:$0x3f]
      %v501 = vld [vmem:[%s2] sm:$0x1]
      %v503 = vlaneseq
      %v504 = vshrl.u32 %v503, 7
      %v505 = vsub.s32 0, %v504
      %v506 = vrot.slane %v501, %v505
      %vm508 = vcmask 179200
      %v510 = vsel %vm508, %v227, 0
      %v513 = vsel %vm508, %v229, 0
      %v516 = vsel %vm508, %v231, 0
      %v519 = vsel %vm508, %v233, 0
      %v522 = vsel %vm508, %v235, 0
      %v525 = vsel %vm508, %v237, 0
      %v528 = vsel %vm508, %v239, 0
      %v531 = vsel %vm508, %v241, 0
      %v534 = vsel %vm508, %v243, 0
      %v537 = vsel %vm508, %v245, 0
      %v540 = vsel %vm508, %v247, 0
      %v543 = vsel %vm508, %v249, 0
      %v546 = vsel %vm508, %v251, 0
      %v549 = vsel %vm508, %v253, 0
      %v552 = vsel %vm508, %v255, 0
      %v555 = vsel %vm508, %v257, 0
      %v558 = vsel %vm508, %v259, 0
      %v561 = vsel %vm508, %v261, 0
      %v564 = vsel %vm508, %v263, 0
      %v567 = vsel %vm508, %v265, 0
      %v570 = vsel %vm508, %v267, 0
      %v573 = vsel %vm508, %v269, 0
      %v576 = vsel %vm508, %v271, 0
      %v579 = vsel %vm508, %v273, 0
      %v582 = vsel %vm508, %v275, 0
      %v585 = vsel %vm508, %v277, 0
      %v588 = vsel %vm508, %v279, 0
      %v591 = vsel %vm508, %v281, 0
      %v594 = vsel %vm508, %v283, 0
      %v597 = vsel %vm508, %v285, 0
      %v600 = vsel %vm508, %v287, 0
      %v603 = vsel %vm508, %v289, 0
      %v606 = vsel %vm508, %v291, 0
      %v609 = vsel %vm508, %v293, 0
      %v612 = vsel %vm508, %v295, 0
      %v615 = vsel %vm508, %v297, 0
      %v618 = vsel %vm508, %v299, 0
      %v621 = vsel %vm508, %v301, 0
      %v624 = vsel %vm508, %v303, 0
      %v627 = vsel %vm508, %v305, 0
      %v630 = vsel %vm508, %v307, 0
      %v633 = vsel %vm508, %v309, 0
      %v636 = vsel %vm508, %v311, 0
      %v639 = vsel %vm508, %v313, 0
      %v642 = vsel %vm508, %v315, 0
      %v645 = vsel %vm508, %v317, 0
      %v648 = vsel %vm508, %v319, 0
      %v651 = vsel %vm508, %v321, 0
      %v654 = vsel %vm508, %v323, 0
      %v657 = vsel %vm508, %v325, 0
      %v660 = vsel %vm508, %v327, 0
      %v663 = vsel %vm508, %v329, 0
      %v666 = vsel %vm508, %v331, 0
      %v669 = vsel %vm508, %v333, 0
      %v672 = vsel %vm508, %v335, 0
      %v675 = vsel %vm508, %v337, 0
      %v678 = vsel %vm508, %v339, 0
      %v681 = vsel %vm508, %v341, 0
      %v684 = vsel %vm508, %v343, 0
      %v687 = vsel %vm508, %v345, 0
      %v690 = vsel %vm508, %v347, 0
      %v693 = vsel %vm508, %v349, 0
      %v696 = vsel %vm508, %v351, 0
      %v699 = vsel %vm508, %v353, 0
      %v702 = vsel %vm508, %v355, 0
      %v705 = vsel %vm508, %v357, 0
      %v708 = vsel %vm508, %v359, 0
      %v711 = vsel %vm508, %v361, 0
      %v714 = vsel %vm508, %v363, 0
      %v717 = vsel %vm508, %v365, 0
      %v720 = vsel %vm508, %v367, 0
      %v723 = vsel %vm508, %v369, 0
      %v726 = vsel %vm508, %v371, 0
      %v729 = vsel %vm508, %v373, 0
      %v732 = vsel %vm508, %v375, 0
      %v735 = vsel %vm508, %v377, 0
      %v738 = vsel %vm508, %v379, 0
      %v741 = vsel %vm508, %v381, 0
      %v744 = vsel %vm508, %v383, 0
      %v747 = vsel %vm508, %v385, 0
      %v750 = vsel %vm508, %v387, 0
      %v753 = vsel %vm508, %v389, 0
      %v756 = vsel %vm508, %v391, 0
      %v759 = vsel %vm508, %v393, 0
      %v762 = vsel %vm508, %v395, 0
      %v765 = vsel %vm508, %v397, 0
      %v768 = vsel %vm508, %v399, 0
      %v771 = vsel %vm508, %v401, 0
      %v774 = vsel %vm508, %v403, 0
      %v777 = vsel %vm508, %v405, 0
      %v780 = vsel %vm508, %v407, 0
      %v783 = vsel %vm508, %v409, 0
      %v786 = vsel %vm508, %v411, 0
      %v789 = vsel %vm508, %v413, 0
      %v792 = vsel %vm508, %v415, 0
      %v795 = vsel %vm508, %v417, 0
      %v798 = vsel %vm508, %v419, 0
      %v801 = vsel %vm508, %v421, 0
      %v804 = vsel %vm508, %v423, 0
      %v807 = vsel %vm508, %v425, 0
      %v810 = vsel %vm508, %v427, 0
      %v813 = vsel %vm508, %v429, 0
      %v816 = vsel %vm508, %v431, 0
      %v819 = vsel %vm508, %v433, 0
      %v822 = vsel %vm508, %v435, 0
      %v825 = vsel %vm508, %v437, 0
      %v828 = vsel %vm508, %v439, 0
      %v831 = vsel %vm508, %v441, 0
      %v834 = vsel %vm508, %v443, 0
      %v837 = vsel %vm508, %v445, 0
      %v840 = vsel %vm508, %v447, 0
      %v843 = vsel %vm508, %v449, 0
      %v846 = vsel %vm508, %v451, 0
      %v849 = vsel %vm508, %v453, 0
      %v852 = vsel %vm508, %v455, 0
      %v855 = vsel %vm508, %v457, 0
      %v858 = vsel %vm508, %v459, 0
      %v861 = vsel %vm508, %v461, 0
      %v864 = vsel %vm508, %v463, 0
      %v867 = vsel %vm508, %v465, 0
      %v870 = vsel %vm508, %v467, 0
      %v873 = vsel %vm508, %v469, 0
      %v876 = vsel %vm508, %v471, 0
      %v879 = vsel %vm508, %v473, 0
      %v882 = vsel %vm508, %v475, 0
      %v885 = vsel %vm508, %v477, 0
      %v888 = vsel %vm508, %v479, 0
      %v891 = vsel %vm508, %v481, 0
      %vm893 = vcmask 1045504
      %v895 = vsel %vm893, %v500, 0
      %897 = vmatprep.subr.mxu0 0.0
      %898 = vmatpush1.msra.mxu0 %v482
      %899 = vmatprep.subr.mxu0 0.0
      %900 = vmatpush1.msra.mxu0 %v483
      %901 = vmatprep.subr.mxu0 0.0
      %902 = vmatpush1.msra.mxu0 %v484
      %903 = vmatprep.subr.mxu0 0.0
      %904 = vmatpush1.msra.mxu0 %v485
      %905 = vmatprep.subr.mxu0 0.0
      %906 = vmatpush1.msra.mxu0 %v486
      %907 = vmatprep.subr.mxu0 0.0
      %908 = vmatpush1.msra.mxu0 %v487
      %909 = vmatprep.subr.mxu0 0.0
      %910 = vmatpush1.msra.mxu0 %v488
      %911 = vmatprep.subr.mxu0 0.0
      %912 = vmatpush1.msra.mxu0 %v489
      %913 = vmatprep.subr.mxu0 0.0
      %914 = vmatpush1.msra.mxu0 %v490
      %915 = vmatprep.subr.mxu0 0.0
      %916 = vmatpush1.msra.mxu0 %v491
      %917 = vmatprep.subr.mxu0 0.0
      %918 = vmatpush1.msra.mxu0 %v492
      %919 = vmatprep.subr.mxu0 0.0
      %920 = vmatpush1.msra.mxu0 %v493
      %921 = vmatprep.subr.mxu0 0.0
      %922 = vmatpush1.msra.mxu0 %v494
      %923 = vmatprep.subr.mxu0 0.0
      %924 = vmatpush1.msra.mxu0 %v495
      %925 = vmatprep.subr.mxu0 0.0
      %926 = vmatpush1.msra.mxu0 %v496
      %927 = vmatprep.subr.mxu0 0.0
      %928 = vmatpush1.msra.mxu0 %v497
      %929 = vmatprep.subr.mxu0 0.0
      %930 = vmatpush1.msra.mxu0 %v498
      %931 = vmatprep.subr.mxu0 0.0
      %932 = vmatpush1.msra.mxu0 %v499
      %933 = vmatprep.subr.mxu0 0.0
      %934 = vmatpush1.msra.mxu0 %v895
      %935 = vmatprep.subr.mxu0 0.0
      %936 = vmatpush1.msra.mxu0 0.0
      %937 = vmatprep.subr.mxu0 0.0
      %938 = vmatpush1.msra.mxu0 0.0
      %939 = vmatprep.subr.mxu0 0.0
      %940 = vmatpush1.msra.mxu0 0.0
      %941 = vmatprep.subr.mxu0 0.0
      %942 = vmatpush1.msra.mxu0 0.0
      %943 = vmatprep.subr.mxu0 0.0
      %944 = vmatpush1.msra.mxu0 0.0
      %945 = vmatprep.subr.mxu0 0.0
      %946 = vmatpush1.msra.mxu0 0.0
      %947 = vmatprep.subr.mxu0 0.0
      %948 = vmatpush1.msra.mxu0 0.0
      %949 = vmatprep.subr.mxu0 0.0
      %950 = vmatpush1.msra.mxu0 0.0
      %951 = vmatprep.subr.mxu0 0.0
      %952 = vmatpush1.msra.mxu0 0.0
      %953 = vmatprep.subr.mxu0 0.0
      %954 = vmatpush1.msra.mxu0 0.0
      %955 = vmatprep.subr.mxu0 0.0
      %956 = vmatpush1.msra.mxu0 0.0
      %957 = vmatprep.subr.mxu0 0.0
      %958 = vmatpush1.msra.mxu0 0.0
      %959 = vmatprep.subr.mxu0 0.0
      %960 = vmatpush1.msra.mxu0 0.0
      %961 = vmatprep.mubr.f32.mxu0 %v510
      %962 = vmatmul.mubr.f32.gmra.mrb[0].mxu0 %v226
      %v963 = vpop.f32.mrb[0].mxu0
      %v964 = vadd.f32 %v506, %v963
      %v965 = vpop.f32.mrb[0].mxu0
      %966 = vmatprep.mubr.f32.mxu0 %v513
      %967 = vmatmul.mubr.f32.gmra.mrb[0].mxu0 %v228
      %v968 = vpop.f32.mrb[0].mxu0
      %v969 = vadd.f32 %v506, %v968
      %v970 = vpop.f32.mrb[0].mxu0
      %971 = vmatprep.mubr.f32.mxu0 %v516
      %972 = vmatmul.mubr.f32.gmra.mrb[0].mxu0 %v230
      %v973 = vpop.f32.mrb[0].mxu0
      %v974 = vadd.f32 %v506, %v973
      %v975 = vpop.f32.mrb[0].mxu0
      %976 = vmatprep.mubr.f32.mxu0 %v519
      %977 = vmatmul.mubr.f32.gmra.mrb[0].mxu0 %v232
      %v978 = vpop.f32.mrb[0].mxu0
      %v979 = vadd.f32 %v506, %v978
      %v980 = vpop.f32.mrb[0].mxu0
      %981 = vmatprep.mubr.f32.mxu0 %v522
      %982 = vmatmul.mubr.f32.gmra.mrb[0].mxu0 %v234
      %v983 = vpop.f32.mrb[0].mxu0
      %v984 = vadd.f32 %v506, %v983
      %v985 = vpop.f32.mrb[0].mxu0
      %986 = vmatprep.mubr.f32.mxu0 %v525
      %987 = vmatmul.mubr.f32.gmra.mrb[0].mxu0 %v236
      %v988 = vpop.f32.mrb[0].mxu0
      %v989 = vadd.f32 %v506, %v988
      %v990 = vpop.f32.mrb[0].mxu0
      %991 = vmatprep.mubr.f32.mxu0 %v528
      %992 = vmatmul.mubr.f32.gmra.mrb[0].mxu0 %v238
      %v993 = vpop.f32.mrb[0].mxu0
      %v994 = vadd.f32 %v506, %v993
      %v995 = vpop.f32.mrb[0].mxu0
      %996 = vmatprep.mubr.f32.mxu0 %v531
      %997 = vmatmul.mubr.f32.gmra.mrb[0].mxu0 %v240
      %v998 = vpop.f32.mrb[0].mxu0
      %v999 = vadd.f32 %v506, %v998
      %v1000 = vpop.f32.mrb[0].mxu0
      %1001 = vmatprep.mubr.f32.mxu0 %v534
      %1002 = vmatmul.mubr.f32.gmra.mrb[0].mxu0 %v242
      %v1003 = vpop.f32.mrb[0].mxu0
      %v1004 = vadd.f32 %v506, %v1003
      %v1005 = vpop.f32.mrb[0].mxu0
      %1006 = vmatprep.mubr.f32.mxu0 %v537
      %1007 = vmatmul.mubr.f32.gmra.mrb[0].mxu0 %v244
      %v1008 = vpop.f32.mrb[0].mxu0
      %v1009 = vadd.f32 %v506, %v1008
      %v1010 = vpop.f32.mrb[0].mxu0
      %1011 = vmatprep.mubr.f32.mxu0 %v540
      %1012 = vmatmul.mubr.f32.gmra.mrb[0].mxu0 %v246
      %v1013 = vpop.f32.mrb[0].mxu0
      %v1014 = vadd.f32 %v506, %v1013
      %v1015 = vpop.f32.mrb[0].mxu0
      %1016 = vmatprep.mubr.f32.mxu0 %v543
      %1017 = vmatmul.mubr.f32.gmra.mrb[0].mxu0 %v248
      %v1018 = vpop.f32.mrb[0].mxu0
      %v1019 = vadd.f32 %v506, %v1018
      %v1020 = vpop.f32.mrb[0].mxu0
      %1021 = vmatprep.mubr.f32.mxu0 %v546
      %1022 = vmatmul.mubr.f32.gmra.mrb[0].mxu0 %v250
      %v1023 = vpop.f32.mrb[0].mxu0
      %v1024 = vadd.f32 %v506, %v1023
      %v1025 = vpop.f32.mrb[0].mxu0
      %1026 = vmatprep.mubr.f32.mxu0 %v549
      %1027 = vmatmul.mubr.f32.gmra.mrb[0].mxu0 %v252
      %v1028 = vpop.f32.mrb[0].mxu0
      %v1029 = vadd.f32 %v506, %v1028
      %v1030 = vpop.f32.mrb[0].mxu0
      %1031 = vmatprep.mubr.f32.mxu0 %v552
      %1032 = vmatmul.mubr.f32.gmra.mrb[0].mxu0 %v254
      %v1033 = vpop.f32.mrb[0].mxu0
      %v1034 = vadd.f32 %v506, %v1033
      %v1035 = vpop.f32.mrb[0].mxu0
      %1036 = vmatprep.mubr.f32.mxu0 %v555
      %1037 = vmatmul.mubr.f32.gmra.mrb[0].mxu0 %v256
      %v1038 = vpop.f32.mrb[0].mxu0
      %v1039 = vadd.f32 %v506, %v1038
      %v1040 = vpop.f32.mrb[0].mxu0
      %1041 = vmatprep.mubr.f32.mxu0 %v558
      %1042 = vmatmul.mubr.f32.gmra.mrb[0].mxu0 %v258
      %v1043 = vpop.f32.mrb[0].mxu0
      %v1044 = vadd.f32 %v506, %v1043
      %v1045 = vpop.f32.mrb[0].mxu0
      %1046 = vmatprep.mubr.f32.mxu0 %v561
      %1047 = vmatmul.mubr.f32.gmra.mrb[0].mxu0 %v260
      %v1048 = vpop.f32.mrb[0].mxu0
      %v1049 = vadd.f32 %v506, %v1048
      %v1050 = vpop.f32.mrb[0].mxu0
      %1051 = vmatprep.mubr.f32.mxu0 %v564
      %1052 = vmatmul.mubr.f32.gmra.mrb[0].mxu0 %v262
      %v1053 = vpop.f32.mrb[0].mxu0
      %v1054 = vadd.f32 %v506, %v1053
      %v1055 = vpop.f32.mrb[0].mxu0
      %1056 = vmatprep.mubr.f32.mxu0 %v567
      %1057 = vmatmul.mubr.f32.gmra.mrb[0].mxu0 %v264
      %v1058 = vpop.f32.mrb[0].mxu0
      %v1059 = vadd.f32 %v506, %v1058
      %v1060 = vpop.f32.mrb[0].mxu0
      %1061 = vmatprep.mubr.f32.mxu0 %v570
      %1062 = vmatmul.mubr.f32.gmra.mrb[0].mxu0 %v266
      %v1063 = vpop.f32.mrb[0].mxu0
      %v1064 = vadd.f32 %v506, %v1063
      %v1065 = vpop.f32.mrb[0].mxu0
      %1066 = vmatprep.mubr.f32.mxu0 %v573
      %1067 = vmatmul.mubr.f32.gmra.mrb[0].mxu0 %v268
      %v1068 = vpop.f32.mrb[0].mxu0
      %v1069 = vadd.f32 %v506, %v1068
      %v1070 = vpop.f32.mrb[0].mxu0
      %1071 = vmatprep.mubr.f32.mxu0 %v576
      %1072 = vmatmul.mubr.f32.gmra.mrb[0].mxu0 %v270
      %v1073 = vpop.f32.mrb[0].mxu0
      %v1074 = vadd.f32 %v506, %v1073
      %v1075 = vpop.f32.mrb[0].mxu0
      %1076 = vmatprep.mubr.f32.mxu0 %v579
      %1077 = vmatmul.mubr.f32.gmra.mrb[0].mxu0 %v272
      %v1078 = vpop.f32.mrb[0].mxu0
      %v1079 = vadd.f32 %v506, %v1078
      %v1080 = vpop.f32.mrb[0].mxu0
      %1081 = vmatprep.mubr.f32.mxu0 %v582
      %1082 = vmatmul.mubr.f32.gmra.mrb[0].mxu0 %v274
      %v1083 = vpop.f32.mrb[0].mxu0
      %v1084 = vadd.f32 %v506, %v1083
      %v1085 = vpop.f32.mrb[0].mxu0
      %1086 = vmatprep.mubr.f32.mxu0 %v585
      %1087 = vmatmul.mubr.f32.gmra.mrb[0].mxu0 %v276
      %v1088 = vpop.f32.mrb[0].mxu0
      %v1089 = vadd.f32 %v506, %v1088
      %v1090 = vpop.f32.mrb[0].mxu0
      %1091 = vmatprep.mubr.f32.mxu0 %v588
      %1092 = vmatmul.mubr.f32.gmra.mrb[0].mxu0 %v278
      %v1093 = vpop.f32.mrb[0].mxu0
      %v1094 = vadd.f32 %v506, %v1093
      %v1095 = vpop.f32.mrb[0].mxu0
      %1096 = vmatprep.mubr.f32.mxu0 %v591
      %1097 = vmatmul.mubr.f32.gmra.mrb[0].mxu0 %v280
      %v1098 = vpop.f32.mrb[0].mxu0
      %v1099 = vadd.f32 %v506, %v1098
      %v1100 = vpop.f32.mrb[0].mxu0
      %1101 = vmatprep.mubr.f32.mxu0 %v594
      %1102 = vmatmul.mubr.f32.gmra.mrb[0].mxu0 %v282
      %v1103 = vpop.f32.mrb[0].mxu0
      %v1104 = vadd.f32 %v506, %v1103
      %v1105 = vpop.f32.mrb[0].mxu0
      %1106 = vmatprep.mubr.f32.mxu0 %v597
      %1107 = vmatmul.mubr.f32.gmra.mrb[0].mxu0 %v284
      %v1108 = vpop.f32.mrb[0].mxu0
      %v1109 = vadd.f32 %v506, %v1108
      %v1110 = vpop.f32.mrb[0].mxu0
      %1111 = vmatprep.mubr.f32.mxu0 %v600
      %1112 = vmatmul.mubr.f32.gmra.mrb[0].mxu0 %v286
      %v1113 = vpop.f32.mrb[0].mxu0
      %v1114 = vadd.f32 %v506, %v1113
      %v1115 = vpop.f32.mrb[0].mxu0
      %1116 = vmatprep.mubr.f32.mxu0 %v603
      %1117 = vmatmul.mubr.f32.gmra.mrb[0].mxu0 %v288
      %v1118 = vpop.f32.mrb[0].mxu0
      %v1119 = vadd.f32 %v506, %v1118
      %v1120 = vpop.f32.mrb[0].mxu0
      %1121 = vmatprep.mubr.f32.mxu0 %v606
      %1122 = vmatmul.mubr.f32.gmra.mrb[0].mxu0 %v290
      %v1123 = vpop.f32.mrb[0].mxu0
      %v1124 = vadd.f32 %v506, %v1123
      %v1125 = vpop.f32.mrb[0].mxu0
      %1126 = vmatprep.mubr.f32.mxu0 %v609
      %1127 = vmatmul.mubr.f32.gmra.mrb[0].mxu0 %v292
      %v1128 = vpop.f32.mrb[0].mxu0
      %v1129 = vadd.f32 %v506, %v1128
      %v1130 = vpop.f32.mrb[0].mxu0
      %1131 = vmatprep.mubr.f32.mxu0 %v612
      %1132 = vmatmul.mubr.f32.gmra.mrb[0].mxu0 %v294
      %v1133 = vpop.f32.mrb[0].mxu0
      %v1134 = vadd.f32 %v506, %v1133
      %v1135 = vpop.f32.mrb[0].mxu0
      %1136 = vmatprep.mubr.f32.mxu0 %v615
      %1137 = vmatmul.mubr.f32.gmra.mrb[0].mxu0 %v296
      %v1138 = vpop.f32.mrb[0].mxu0
      %v1139 = vadd.f32 %v506, %v1138
      %v1140 = vpop.f32.mrb[0].mxu0
      %1141 = vmatprep.mubr.f32.mxu0 %v618
      %1142 = vmatmul.mubr.f32.gmra.mrb[0].mxu0 %v298
      %v1143 = vpop.f32.mrb[0].mxu0
      %v1144 = vadd.f32 %v506, %v1143
      %v1145 = vpop.f32.mrb[0].mxu0
      %1146 = vmatprep.mubr.f32.mxu0 %v621
      %1147 = vmatmul.mubr.f32.gmra.mrb[0].mxu0 %v300
      %v1148 = vpop.f32.mrb[0].mxu0
      %v1149 = vadd.f32 %v506, %v1148
      %v1150 = vpop.f32.mrb[0].mxu0
      %1151 = vmatprep.mubr.f32.mxu0 %v624
      %1152 = vmatmul.mubr.f32.gmra.mrb[0].mxu0 %v302
      %v1153 = vpop.f32.mrb[0].mxu0
      %v1154 = vadd.f32 %v506, %v1153
      %v1155 = vpop.f32.mrb[0].mxu0
      %1156 = vmatprep.mubr.f32.mxu0 %v627
      %1157 = vmatmul.mubr.f32.gmra.mrb[0].mxu0 %v304
      %v1158 = vpop.f32.mrb[0].mxu0
      %v1159 = vadd.f32 %v506, %v1158
      %v1160 = vpop.f32.mrb[0].mxu0
      %1161 = vmatprep.mubr.f32.mxu0 %v630
      %1162 = vmatmul.mubr.f32.gmra.mrb[0].mxu0 %v306
      %v1163 = vpop.f32.mrb[0].mxu0
      %v1164 = vadd.f32 %v506, %v1163
      %v1165 = vpop.f32.mrb[0].mxu0
      %1166 = vmatprep.mubr.f32.mxu0 %v633
      %1167 = vmatmul.mubr.f32.gmra.mrb[0].mxu0 %v308
      %v1168 = vpop.f32.mrb[0].mxu0
      %v1169 = vadd.f32 %v506, %v1168
      %v1170 = vpop.f32.mrb[0].mxu0
      %1171 = vmatprep.mubr.f32.mxu0 %v636
      %1172 = vmatmul.mubr.f32.gmra.mrb[0].mxu0 %v310
      %v1173 = vpop.f32.mrb[0].mxu0
      %v1174 = vadd.f32 %v506, %v1173
      %v1175 = vpop.f32.mrb[0].mxu0
      %1176 = vmatprep.mubr.f32.mxu0 %v639
      %1177 = vmatmul.mubr.f32.gmra.mrb[0].mxu0 %v312
      %v1178 = vpop.f32.mrb[0].mxu0
      %v1179 = vadd.f32 %v506, %v1178
      %v1180 = vpop.f32.mrb[0].mxu0
      %1181 = vmatprep.mubr.f32.mxu0 %v642
      %1182 = vmatmul.mubr.f32.gmra.mrb[0].mxu0 %v314
      %v1183 = vpop.f32.mrb[0].mxu0
      %v1184 = vadd.f32 %v506, %v1183
      %v1185 = vpop.f32.mrb[0].mxu0
      %1186 = vmatprep.mubr.f32.mxu0 %v645
      %1187 = vmatmul.mubr.f32.gmra.mrb[0].mxu0 %v316
      %v1188 = vpop.f32.mrb[0].mxu0
      %v1189 = vadd.f32 %v506, %v1188
      %v1190 = vpop.f32.mrb[0].mxu0
      %1191 = vmatprep.mubr.f32.mxu0 %v648
      %1192 = vmatmul.mubr.f32.gmra.mrb[0].mxu0 %v318
      %v1193 = vpop.f32.mrb[0].mxu0
      %v1194 = vadd.f32 %v506, %v1193
      %v1195 = vpop.f32.mrb[0].mxu0
      %1196 = vmatprep.mubr.f32.mxu0 %v651
      %1197 = vmatmul.mubr.f32.gmra.mrb[0].mxu0 %v320
      %v1198 = vpop.f32.mrb[0].mxu0
      %v1199 = vadd.f32 %v506, %v1198
      %v1200 = vpop.f32.mrb[0].mxu0
      %1201 = vmatprep.mubr.f32.mxu0 %v654
      %1202 = vmatmul.mubr.f32.gmra.mrb[0].mxu0 %v322
      %v1203 = vpop.f32.mrb[0].mxu0
      %v1204 = vadd.f32 %v506, %v1203
      %v1205 = vpop.f32.mrb[0].mxu0
      %1206 = vmatprep.mubr.f32.mxu0 %v657
      %1207 = vmatmul.mubr.f32.gmra.mrb[0].mxu0 %v324
      %v1208 = vpop.f32.mrb[0].mxu0
      %v1209 = vadd.f32 %v506, %v1208
      %v1210 = vpop.f32.mrb[0].mxu0
      %1211 = vmatprep.mubr.f32.mxu0 %v660
      %1212 = vmatmul.mubr.f32.gmra.mrb[0].mxu0 %v326
      %v1213 = vpop.f32.mrb[0].mxu0
      %v1214 = vadd.f32 %v506, %v1213
      %v1215 = vpop.f32.mrb[0].mxu0
      %1216 = vmatprep.mubr.f32.mxu0 %v663
      %1217 = vmatmul.mubr.f32.gmra.mrb[0].mxu0 %v328
      %v1218 = vpop.f32.mrb[0].mxu0
      %v1219 = vadd.f32 %v506, %v1218
      %v1220 = vpop.f32.mrb[0].mxu0
      %1221 = vmatprep.mubr.f32.mxu0 %v666
      %1222 = vmatmul.mubr.f32.gmra.mrb[0].mxu0 %v330
      %v1223 = vpop.f32.mrb[0].mxu0
      %v1224 = vadd.f32 %v506, %v1223
      %v1225 = vpop.f32.mrb[0].mxu0
      %1226 = vmatprep.mubr.f32.mxu0 %v669
      %1227 = vmatmul.mubr.f32.gmra.mrb[0].mxu0 %v332
      %v1228 = vpop.f32.mrb[0].mxu0
      %v1229 = vadd.f32 %v506, %v1228
      %v1230 = vpop.f32.mrb[0].mxu0
      %1231 = vmatprep.mubr.f32.mxu0 %v672
      %1232 = vmatmul.mubr.f32.gmra.mrb[0].mxu0 %v334
      %v1233 = vpop.f32.mrb[0].mxu0
      %v1234 = vadd.f32 %v506, %v1233
      %v1235 = vpop.f32.mrb[0].mxu0
      %1236 = vmatprep.mubr.f32.mxu0 %v675
      %1237 = vmatmul.mubr.f32.gmra.mrb[0].mxu0 %v336
      %v1238 = vpop.f32.mrb[0].mxu0
      %v1239 = vadd.f32 %v506, %v1238
      %v1240 = vpop.f32.mrb[0].mxu0
      %1241 = vmatprep.mubr.f32.mxu0 %v678
      %1242 = vmatmul.mubr.f32.gmra.mrb[0].mxu0 %v338
      %v1243 = vpop.f32.mrb[0].mxu0
      %v1244 = vadd.f32 %v506, %v1243
      %v1245 = vpop.f32.mrb[0].mxu0
      %1246 = vmatprep.mubr.f32.mxu0 %v681
      %1247 = vmatmul.mubr.f32.gmra.mrb[0].mxu0 %v340
      %v1248 = vpop.f32.mrb[0].mxu0
      %v1249 = vadd.f32 %v506, %v1248
      %v1250 = vpop.f32.mrb[0].mxu0
      %1251 = vmatprep.mubr.f32.mxu0 %v684
      %1252 = vmatmul.mubr.f32.gmra.mrb[0].mxu0 %v342
      %v1253 = vpop.f32.mrb[0].mxu0
      %v1254 = vadd.f32 %v506, %v1253
      %v1255 = vpop.f32.mrb[0].mxu0
      %1256 = vmatprep.mubr.f32.mxu0 %v687
      %1257 = vmatmul.mubr.f32.gmra.mrb[0].mxu0 %v344
      %v1258 = vpop.f32.mrb[0].mxu0
      %v1259 = vadd.f32 %v506, %v1258
      %v1260 = vpop.f32.mrb[0].mxu0
      %1261 = vmatprep.mubr.f32.mxu0 %v690
      %1262 = vmatmul.mubr.f32.gmra.mrb[0].mxu0 %v346
      %v1263 = vpop.f32.mrb[0].mxu0
      %v1264 = vadd.f32 %v506, %v1263
      %v1265 = vpop.f32.mrb[0].mxu0
      %1266 = vmatprep.mubr.f32.mxu0 %v693
      %1267 = vmatmul.mubr.f32.gmra.mrb[0].mxu0 %v348
      %v1268 = vpop.f32.mrb[0].mxu0
      %v1269 = vadd.f32 %v506, %v1268
      %v1270 = vpop.f32.mrb[0].mxu0
      %1271 = vmatprep.mubr.f32.mxu0 %v696
      %1272 = vmatmul.mubr.f32.gmra.mrb[0].mxu0 %v350
      %v1273 = vpop.f32.mrb[0].mxu0
      %v1274 = vadd.f32 %v506, %v1273
      %v1275 = vpop.f32.mrb[0].mxu0
      %1276 = vmatprep.mubr.f32.mxu0 %v699
      %1277 = vmatmul.mubr.f32.gmra.mrb[0].mxu0 %v352
      %v1278 = vpop.f32.mrb[0].mxu0
      %v1279 = vadd.f32 %v506, %v1278
      %v1280 = vpop.f32.mrb[0].mxu0
      %1281 = vmatprep.mubr.f32.mxu0 %v702
      %1282 = vmatmul.mubr.f32.gmra.mrb[0].mxu0 %v354
      %v1283 = vpop.f32.mrb[0].mxu0
      %v1284 = vadd.f32 %v506, %v1283
      %v1285 = vpop.f32.mrb[0].mxu0
      %1286 = vmatprep.mubr.f32.mxu0 %v705
      %1287 = vmatmul.mubr.f32.gmra.mrb[0].mxu0 %v356
      %v1288 = vpop.f32.mrb[0].mxu0
      %v1289 = vadd.f32 %v506, %v1288
      %v1290 = vpop.f32.mrb[0].mxu0
      %1291 = vmatprep.mubr.f32.mxu0 %v708
      %1292 = vmatmul.mubr.f32.gmra.mrb[0].mxu0 %v358
      %v1293 = vpop.f32.mrb[0].mxu0
      %v1294 = vadd.f32 %v506, %v1293
      %v1295 = vpop.f32.mrb[0].mxu0
      %1296 = vmatprep.mubr.f32.mxu0 %v711
      %1297 = vmatmul.mubr.f32.gmra.mrb[0].mxu0 %v360
      %v1298 = vpop.f32.mrb[0].mxu0
      %v1299 = vadd.f32 %v506, %v1298
      %v1300 = vpop.f32.mrb[0].mxu0
      %1301 = vmatprep.mubr.f32.mxu0 %v714
      %1302 = vmatmul.mubr.f32.gmra.mrb[0].mxu0 %v362
      %v1303 = vpop.f32.mrb[0].mxu0
      %v1304 = vadd.f32 %v506, %v1303
      %v1305 = vpop.f32.mrb[0].mxu0
      %1306 = vmatprep.mubr.f32.mxu0 %v717
      %1307 = vmatmul.mubr.f32.gmra.mrb[0].mxu0 %v364
      %v1308 = vpop.f32.mrb[0].mxu0
      %v1309 = vadd.f32 %v506, %v1308
      %v1310 = vpop.f32.mrb[0].mxu0
      %1311 = vmatprep.mubr.f32.mxu0 %v720
      %1312 = vmatmul.mubr.f32.gmra.mrb[0].mxu0 %v366
      %v1313 = vpop.f32.mrb[0].mxu0
      %v1314 = vadd.f32 %v506, %v1313
      %v1315 = vpop.f32.mrb[0].mxu0
      %1316 = vmatprep.mubr.f32.mxu0 %v723
      %1317 = vmatmul.mubr.f32.gmra.mrb[0].mxu0 %v368
      %v1318 = vpop.f32.mrb[0].mxu0
      %v1319 = vadd.f32 %v506, %v1318
      %v1320 = vpop.f32.mrb[0].mxu0
      %1321 = vmatprep.mubr.f32.mxu0 %v726
      %1322 = vmatmul.mubr.f32.gmra.mrb[0].mxu0 %v370
      %v1323 = vpop.f32.mrb[0].mxu0
      %v1324 = vadd.f32 %v506, %v1323
      %v1325 = vpop.f32.mrb[0].mxu0
      %1326 = vmatprep.mubr.f32.mxu0 %v729
      %1327 = vmatmul.mubr.f32.gmra.mrb[0].mxu0 %v372
      %v1328 = vpop.f32.mrb[0].mxu0
      %v1329 = vadd.f32 %v506, %v1328
      %v1330 = vpop.f32.mrb[0].mxu0
      %1331 = vmatprep.mubr.f32.mxu0 %v732
      %1332 = vmatmul.mubr.f32.gmra.mrb[0].mxu0 %v374
      %v1333 = vpop.f32.mrb[0].mxu0
      %v1334 = vadd.f32 %v506, %v1333
      %v1335 = vpop.f32.mrb[0].mxu0
      %1336 = vmatprep.mubr.f32.mxu0 %v735
      %1337 = vmatmul.mubr.f32.gmra.mrb[0].mxu0 %v376
      %v1338 = vpop.f32.mrb[0].mxu0
      %v1339 = vadd.f32 %v506, %v1338
      %v1340 = vpop.f32.mrb[0].mxu0
      %1341 = vmatprep.mubr.f32.mxu0 %v738
      %1342 = vmatmul.mubr.f32.gmra.mrb[0].mxu0 %v378
      %v1343 = vpop.f32.mrb[0].mxu0
      %v1344 = vadd.f32 %v506, %v1343
      %v1345 = vpop.f32.mrb[0].mxu0
      %1346 = vmatprep.mubr.f32.mxu0 %v741
      %1347 = vmatmul.mubr.f32.gmra.mrb[0].mxu0 %v380
      %v1348 = vpop.f32.mrb[0].mxu0
      %v1349 = vadd.f32 %v506, %v1348
      %v1350 = vpop.f32.mrb[0].mxu0
      %1351 = vmatprep.mubr.f32.mxu0 %v744
      %1352 = vmatmul.mubr.f32.gmra.mrb[0].mxu0 %v382
      %v1353 = vpop.f32.mrb[0].mxu0
      %v1354 = vadd.f32 %v506, %v1353
      %v1355 = vpop.f32.mrb[0].mxu0
      %1356 = vmatprep.mubr.f32.mxu0 %v747
      %1357 = vmatmul.mubr.f32.gmra.mrb[0].mxu0 %v384
      %v1358 = vpop.f32.mrb[0].mxu0
      %v1359 = vadd.f32 %v506, %v1358
      %v1360 = vpop.f32.mrb[0].mxu0
      %1361 = vmatprep.mubr.f32.mxu0 %v750
      %1362 = vmatmul.mubr.f32.gmra.mrb[0].mxu0 %v386
      %v1363 = vpop.f32.mrb[0].mxu0
      %v1364 = vadd.f32 %v506, %v1363
      %v1365 = vpop.f32.mrb[0].mxu0
      %1366 = vmatprep.mubr.f32.mxu0 %v753
      %1367 = vmatmul.mubr.f32.gmra.mrb[0].mxu0 %v388
      %v1368 = vpop.f32.mrb[0].mxu0
      %v1369 = vadd.f32 %v506, %v1368
      %v1370 = vpop.f32.mrb[0].mxu0
      %1371 = vmatprep.mubr.f32.mxu0 %v756
      %1372 = vmatmul.mubr.f32.gmra.mrb[0].mxu0 %v390
      %v1373 = vpop.f32.mrb[0].mxu0
      %v1374 = vadd.f32 %v506, %v1373
      %v1375 = vpop.f32.mrb[0].mxu0
      %1376 = vmatprep.mubr.f32.mxu0 %v759
      %1377 = vmatmul.mubr.f32.gmra.mrb[0].mxu0 %v392
      %v1378 = vpop.f32.mrb[0].mxu0
      %v1379 = vadd.f32 %v506, %v1378
      %v1380 = vpop.f32.mrb[0].mxu0
      %1381 = vmatprep.mubr.f32.mxu0 %v762
      %1382 = vmatmul.mubr.f32.gmra.mrb[0].mxu0 %v394
      %v1383 = vpop.f32.mrb[0].mxu0
      %v1384 = vadd.f32 %v506, %v1383
      %v1385 = vpop.f32.mrb[0].mxu0
      %1386 = vmatprep.mubr.f32.mxu0 %v765
      %1387 = vmatmul.mubr.f32.gmra.mrb[0].mxu0 %v396
      %v1388 = vpop.f32.mrb[0].mxu0
      %v1389 = vadd.f32 %v506, %v1388
      %v1390 = vpop.f32.mrb[0].mxu0
      %1391 = vmatprep.mubr.f32.mxu0 %v768
      %1392 = vmatmul.mubr.f32.gmra.mrb[0].mxu0 %v398
      %v1393 = vpop.f32.mrb[0].mxu0
      %v1394 = vadd.f32 %v506, %v1393
      %v1395 = vpop.f32.mrb[0].mxu0
      %1396 = vmatprep.mubr.f32.mxu0 %v771
      %1397 = vmatmul.mubr.f32.gmra.mrb[0].mxu0 %v400
      %v1398 = vpop.f32.mrb[0].mxu0
      %v1399 = vadd.f32 %v506, %v1398
      %v1400 = vpop.f32.mrb[0].mxu0
      %1401 = vmatprep.mubr.f32.mxu0 %v774
      %1402 = vmatmul.mubr.f32.gmra.mrb[0].mxu0 %v402
      %v1403 = vpop.f32.mrb[0].mxu0
      %v1404 = vadd.f32 %v506, %v1403
      %v1405 = vpop.f32.mrb[0].mxu0
      %1406 = vmatprep.mubr.f32.mxu0 %v777
      %1407 = vmatmul.mubr.f32.gmra.mrb[0].mxu0 %v404
      %v1408 = vpop.f32.mrb[0].mxu0
      %v1409 = vadd.f32 %v506, %v1408
      %v1410 = vpop.f32.mrb[0].mxu0
      %1411 = vmatprep.mubr.f32.mxu0 %v780
      %1412 = vmatmul.mubr.f32.gmra.mrb[0].mxu0 %v406
      %v1413 = vpop.f32.mrb[0].mxu0
      %v1414 = vadd.f32 %v506, %v1413
      %v1415 = vpop.f32.mrb[0].mxu0
      %1416 = vmatprep.mubr.f32.mxu0 %v783
      %1417 = vmatmul.mubr.f32.gmra.mrb[0].mxu0 %v408
      %v1418 = vpop.f32.mrb[0].mxu0
      %v1419 = vadd.f32 %v506, %v1418
      %v1420 = vpop.f32.mrb[0].mxu0
      %1421 = vmatprep.mubr.f32.mxu0 %v786
      %1422 = vmatmul.mubr.f32.gmra.mrb[0].mxu0 %v410
      %v1423 = vpop.f32.mrb[0].mxu0
      %v1424 = vadd.f32 %v506, %v1423
      %v1425 = vpop.f32.mrb[0].mxu0
      %1426 = vmatprep.mubr.f32.mxu0 %v789
      %1427 = vmatmul.mubr.f32.gmra.mrb[0].mxu0 %v412
      %v1428 = vpop.f32.mrb[0].mxu0
      %v1429 = vadd.f32 %v506, %v1428
      %v1430 = vpop.f32.mrb[0].mxu0
      %1431 = vmatprep.mubr.f32.mxu0 %v792
      %1432 = vmatmul.mubr.f32.gmra.mrb[0].mxu0 %v414
      %v1433 = vpop.f32.mrb[0].mxu0
      %v1434 = vadd.f32 %v506, %v1433
      %v1435 = vpop.f32.mrb[0].mxu0
      %1436 = vmatprep.mubr.f32.mxu0 %v795
      %1437 = vmatmul.mubr.f32.gmra.mrb[0].mxu0 %v416
      %v1438 = vpop.f32.mrb[0].mxu0
      %v1439 = vadd.f32 %v506, %v1438
      %v1440 = vpop.f32.mrb[0].mxu0
      %1441 = vmatprep.mubr.f32.mxu0 %v798
      %1442 = vmatmul.mubr.f32.gmra.mrb[0].mxu0 %v418
      %v1443 = vpop.f32.mrb[0].mxu0
      %v1444 = vadd.f32 %v506, %v1443
      %v1445 = vpop.f32.mrb[0].mxu0
      %1446 = vmatprep.mubr.f32.mxu0 %v801
      %1447 = vmatmul.mubr.f32.gmra.mrb[0].mxu0 %v420
      %v1448 = vpop.f32.mrb[0].mxu0
      %v1449 = vadd.f32 %v506, %v1448
      %v1450 = vpop.f32.mrb[0].mxu0
      %1451 = vmatprep.mubr.f32.mxu0 %v804
      %1452 = vmatmul.mubr.f32.gmra.mrb[0].mxu0 %v422
      %v1453 = vpop.f32.mrb[0].mxu0
      %v1454 = vadd.f32 %v506, %v1453
      %v1455 = vpop.f32.mrb[0].mxu0
      %1456 = vmatprep.mubr.f32.mxu0 %v807
      %1457 = vmatmul.mubr.f32.gmra.mrb[0].mxu0 %v424
      %v1458 = vpop.f32.mrb[0].mxu0
      %v1459 = vadd.f32 %v506, %v1458
      %v1460 = vpop.f32.mrb[0].mxu0
      %1461 = vmatprep.mubr.f32.mxu0 %v810
      %1462 = vmatmul.mubr.f32.gmra.mrb[0].mxu0 %v426
      %v1463 = vpop.f32.mrb[0].mxu0
      %v1464 = vadd.f32 %v506, %v1463
      %v1465 = vpop.f32.mrb[0].mxu0
      %1466 = vmatprep.mubr.f32.mxu0 %v813
      %1467 = vmatmul.mubr.f32.gmra.mrb[0].mxu0 %v428
      %v1468 = vpop.f32.mrb[0].mxu0
      %v1469 = vadd.f32 %v506, %v1468
      %v1470 = vpop.f32.mrb[0].mxu0
      %1471 = vmatprep.mubr.f32.mxu0 %v816
      %1472 = vmatmul.mubr.f32.gmra.mrb[0].mxu0 %v430
      %v1473 = vpop.f32.mrb[0].mxu0
      %v1474 = vadd.f32 %v506, %v1473
      %v1475 = vpop.f32.mrb[0].mxu0
      %1476 = vmatprep.mubr.f32.mxu0 %v819
      %1477 = vmatmul.mubr.f32.gmra.mrb[0].mxu0 %v432
      %v1478 = vpop.f32.mrb[0].mxu0
      %v1479 = vadd.f32 %v506, %v1478
      %v1480 = vpop.f32.mrb[0].mxu0
      %1481 = vmatprep.mubr.f32.mxu0 %v822
      %1482 = vmatmul.mubr.f32.gmra.mrb[0].mxu0 %v434
      %v1483 = vpop.f32.mrb[0].mxu0
      %v1484 = vadd.f32 %v506, %v1483
      %v1485 = vpop.f32.mrb[0].mxu0
      %1486 = vmatprep.mubr.f32.mxu0 %v825
      %1487 = vmatmul.mubr.f32.gmra.mrb[0].mxu0 %v436
      %v1488 = vpop.f32.mrb[0].mxu0
      %v1489 = vadd.f32 %v506, %v1488
      %v1490 = vpop.f32.mrb[0].mxu0
      %1491 = vmatprep.mubr.f32.mxu0 %v828
      %1492 = vmatmul.mubr.f32.gmra.mrb[0].mxu0 %v438
      %v1493 = vpop.f32.mrb[0].mxu0
      %v1494 = vadd.f32 %v506, %v1493
      %v1495 = vpop.f32.mrb[0].mxu0
      %1496 = vmatprep.mubr.f32.mxu0 %v831
      %1497 = vmatmul.mubr.f32.gmra.mrb[0].mxu0 %v440
      %v1498 = vpop.f32.mrb[0].mxu0
      %v1499 = vadd.f32 %v506, %v1498
      %v1500 = vpop.f32.mrb[0].mxu0
      %1501 = vmatprep.mubr.f32.mxu0 %v834
      %1502 = vmatmul.mubr.f32.gmra.mrb[0].mxu0 %v442
      %v1503 = vpop.f32.mrb[0].mxu0
      %v1504 = vadd.f32 %v506, %v1503
      %v1505 = vpop.f32.mrb[0].mxu0
      %1506 = vmatprep.mubr.f32.mxu0 %v837
      %1507 = vmatmul.mubr.f32.gmra.mrb[0].mxu0 %v444
      %v1508 = vpop.f32.mrb[0].mxu0
      %v1509 = vadd.f32 %v506, %v1508
      %v1510 = vpop.f32.mrb[0].mxu0
      %1511 = vmatprep.mubr.f32.mxu0 %v840
      %1512 = vmatmul.mubr.f32.gmra.mrb[0].mxu0 %v446
      %v1513 = vpop.f32.mrb[0].mxu0
      %v1514 = vadd.f32 %v506, %v1513
      %v1515 = vpop.f32.mrb[0].mxu0
      %1516 = vmatprep.mubr.f32.mxu0 %v843
      %1517 = vmatmul.mubr.f32.gmra.mrb[0].mxu0 %v448
      %v1518 = vpop.f32.mrb[0].mxu0
      %v1519 = vadd.f32 %v506, %v1518
      %v1520 = vpop.f32.mrb[0].mxu0
      %1521 = vmatprep.mubr.f32.mxu0 %v846
      %1522 = vmatmul.mubr.f32.gmra.mrb[0].mxu0 %v450
      %v1523 = vpop.f32.mrb[0].mxu0
      %v1524 = vadd.f32 %v506, %v1523
      %v1525 = vpop.f32.mrb[0].mxu0
      %1526 = vmatprep.mubr.f32.mxu0 %v849
      %1527 = vmatmul.mubr.f32.gmra.mrb[0].mxu0 %v452
      %v1528 = vpop.f32.mrb[0].mxu0
      %v1529 = vadd.f32 %v506, %v1528
      %v1530 = vpop.f32.mrb[0].mxu0
      %1531 = vmatprep.mubr.f32.mxu0 %v852
      %1532 = vmatmul.mubr.f32.gmra.mrb[0].mxu0 %v454
      %v1533 = vpop.f32.mrb[0].mxu0
      %v1534 = vadd.f32 %v506, %v1533
      %v1535 = vpop.f32.mrb[0].mxu0
      %1536 = vmatprep.mubr.f32.mxu0 %v855
      %1537 = vmatmul.mubr.f32.gmra.mrb[0].mxu0 %v456
      %v1538 = vpop.f32.mrb[0].mxu0
      %v1539 = vadd.f32 %v506, %v1538
      %v1540 = vpop.f32.mrb[0].mxu0
      %1541 = vmatprep.mubr.f32.mxu0 %v858
      %1542 = vmatmul.mubr.f32.gmra.mrb[0].mxu0 %v458
      %v1543 = vpop.f32.mrb[0].mxu0
      %v1544 = vadd.f32 %v506, %v1543
      %v1545 = vpop.f32.mrb[0].mxu0
      %1546 = vmatprep.mubr.f32.mxu0 %v861
      %1547 = vmatmul.mubr.f32.gmra.mrb[0].mxu0 %v460
      %v1548 = vpop.f32.mrb[0].mxu0
      %v1549 = vadd.f32 %v506, %v1548
      %v1550 = vpop.f32.mrb[0].mxu0
      %1551 = vmatprep.mubr.f32.mxu0 %v864
      %1552 = vmatmul.mubr.f32.gmra.mrb[0].mxu0 %v462
      %v1553 = vpop.f32.mrb[0].mxu0
      %v1554 = vadd.f32 %v506, %v1553
      %v1555 = vpop.f32.mrb[0].mxu0
      %1556 = vmatprep.mubr.f32.mxu0 %v867
      %1557 = vmatmul.mubr.f32.gmra.mrb[0].mxu0 %v464
      %v1558 = vpop.f32.mrb[0].mxu0
      %v1559 = vadd.f32 %v506, %v1558
      %v1560 = vpop.f32.mrb[0].mxu0
      %1561 = vmatprep.mubr.f32.mxu0 %v870
      %1562 = vmatmul.mubr.f32.gmra.mrb[0].mxu0 %v466
      %v1563 = vpop.f32.mrb[0].mxu0
      %v1564 = vadd.f32 %v506, %v1563
      %v1565 = vpop.f32.mrb[0].mxu0
      %1566 = vmatprep.mubr.f32.mxu0 %v873
      %1567 = vmatmul.mubr.f32.gmra.mrb[0].mxu0 %v468
      %v1568 = vpop.f32.mrb[0].mxu0
      %v1569 = vadd.f32 %v506, %v1568
      %v1570 = vpop.f32.mrb[0].mxu0
      %1571 = vmatprep.mubr.f32.mxu0 %v876
      %1572 = vmatmul.mubr.f32.gmra.mrb[0].mxu0 %v470
      %v1573 = vpop.f32.mrb[0].mxu0
      %v1574 = vadd.f32 %v506, %v1573
      %v1575 = vpop.f32.mrb[0].mxu0
      %1576 = vmatprep.mubr.f32.mxu0 %v879
      %1577 = vmatmul.mubr.f32.gmra.mrb[0].mxu0 %v472
      %v1578 = vpop.f32.mrb[0].mxu0
      %v1579 = vadd.f32 %v506, %v1578
      %v1580 = vpop.f32.mrb[0].mxu0
      %1581 = vmatprep.mubr.f32.mxu0 %v882
      %1582 = vmatmul.mubr.f32.gmra.mrb[0].mxu0 %v474
      %v1583 = vpop.f32.mrb[0].mxu0
      %v1584 = vadd.f32 %v506, %v1583
      %v1585 = vpop.f32.mrb[0].mxu0
      %1586 = vmatprep.mubr.f32.mxu0 %v885
      %1587 = vmatmul.mubr.f32.gmra.mrb[0].mxu0 %v476
      %v1588 = vpop.f32.mrb[0].mxu0
      %v1589 = vadd.f32 %v506, %v1588
      %v1590 = vpop.f32.mrb[0].mxu0
      %1591 = vmatprep.mubr.f32.mxu0 %v888
      %1592 = vmatmul.mubr.f32.gmra.mrb[0].mxu0 %v478
      %v1593 = vpop.f32.mrb[0].mxu0
      %v1594 = vadd.f32 %v506, %v1593
      %v1595 = vpop.f32.mrb[0].mxu0
      %1596 = vmatprep.mubr.f32.mxu0 %v891
      %1597 = vmatmul.mubr.f32.gmra.mrb[0].mxu0 %v480
      %v1598 = vpop.f32.mrb[0].mxu0
      %v1599 = vadd.f32 %v506, %v1598
      %v1600 = vpop.f32.mrb[0].mxu0
      %1601 = vdwg.mxu0
      %v1602 = vld [vmem:[%s218] sm:$0xff]
      %v1603 = vld [vmem:[%s218 + $0x8] sm:$0xff]
      %v1604 = vld [vmem:[%s218 + $0x10] sm:$0xff]
      %v1605 = vld [vmem:[%s218 + $0x18] sm:$0xff]
      %v1606 = vld [vmem:[%s218 + $0x20] sm:$0xff]
      %v1607 = vld [vmem:[%s218 + $0x28] sm:$0xff]
      %v1608 = vld [vmem:[%s218 + $0x30] sm:$0xff]
      %v1609 = vld [vmem:[%s218 + $0x38] sm:$0xff]
      %v1610 = vld [vmem:[%s218 + $0x40] sm:$0xff]
      %v1611 = vld [vmem:[%s218 + $0x48] sm:$0xff]
      %v1612 = vld [vmem:[%s218 + $0x50] sm:$0xff]
      %v1613 = vld [vmem:[%s218 + $0x58] sm:$0xff]
      %v1614 = vld [vmem:[%s218 + $0x60] sm:$0xff]
      %v1615 = vld [vmem:[%s218 + $0x68] sm:$0xff]
      %v1616 = vld [vmem:[%s218 + $0x70] sm:$0xff]
      %v1617 = vld [vmem:[%s218 + $0x78] sm:$0xff]
      %v1618 = vld [vmem:[%s218 + $0x80] sm:$0xff]
      %v1619 = vld [vmem:[%s218 + $0x88] sm:$0xff]
      %v1620 = vld [vmem:[%s218 + $0x90] sm:$0xff]
      %v1621 = vld [vmem:[%s218 + $0x98] sm:$0xff]
      %v1622 = vld [vmem:[%s218 + $0xa0] sm:$0xff]
      %v1623 = vld [vmem:[%s218 + $0xa8] sm:$0xff]
      %v1624 = vld [vmem:[%s218 + $0xb0] sm:$0xff]
      %v1625 = vld [vmem:[%s218 + $0xb8] sm:$0xff]
      %v1626 = vld [vmem:[%s218 + $0xc0] sm:$0xff]
      %v1627 = vld [vmem:[%s218 + $0xc8] sm:$0xff]
      %v1628 = vld [vmem:[%s218 + $0xd0] sm:$0xff]
      %v1629 = vld [vmem:[%s218 + $0xd8] sm:$0xff]
      %v1630 = vld [vmem:[%s218 + $0xe0] sm:$0xff]
      %v1631 = vld [vmem:[%s218 + $0xe8] sm:$0xff]
      %v1632 = vld [vmem:[%s218 + $0xf0] sm:$0xff]
      %v1633 = vld [vmem:[%s218 + $0xf8] sm:$0xff]
      %v1634 = vld [vmem:[%s218 + $0x100] sm:$0xff]
      %v1635 = vld [vmem:[%s218 + $0x108] sm:$0xff]
      %v1636 = vld [vmem:[%s218 + $0x110] sm:$0xff]
      %v1637 = vld [vmem:[%s218 + $0x118] sm:$0xff]
      %v1638 = vld [vmem:[%s218 + $0x120] sm:$0xff]
      %v1639 = vld [vmem:[%s218 + $0x128] sm:$0xff]
      %v1640 = vld [vmem:[%s218 + $0x130] sm:$0xff]
      %v1641 = vld [vmem:[%s218 + $0x138] sm:$0xff]
      %v1642 = vld [vmem:[%s218 + $0x140] sm:$0xff]
      %v1643 = vld [vmem:[%s218 + $0x148] sm:$0xff]
      %v1644 = vld [vmem:[%s218 + $0x150] sm:$0xff]
      %v1645 = vld [vmem:[%s218 + $0x158] sm:$0xff]
      %v1646 = vld [vmem:[%s218 + $0x160] sm:$0xff]
      %v1647 = vld [vmem:[%s218 + $0x168] sm:$0xff]
      %v1648 = vld [vmem:[%s218 + $0x170] sm:$0xff]
      %v1649 = vld [vmem:[%s218 + $0x178] sm:$0xff]
      %v1650 = vld [vmem:[%s218 + $0x180] sm:$0xff]
      %v1651 = vld [vmem:[%s218 + $0x188] sm:$0xff]
      %v1652 = vld [vmem:[%s218 + $0x190] sm:$0xff]
      %v1653 = vld [vmem:[%s218 + $0x198] sm:$0xff]
      %v1654 = vld [vmem:[%s218 + $0x1a0] sm:$0xff]
      %v1655 = vld [vmem:[%s218 + $0x1a8] sm:$0xff]
      %v1656 = vld [vmem:[%s218 + $0x1b0] sm:$0xff]
      %v1657 = vld [vmem:[%s218 + $0x1b8] sm:$0xff]
      %v1658 = vld [vmem:[%s218 + $0x1c0] sm:$0xff]
      %v1659 = vld [vmem:[%s218 + $0x1c8] sm:$0xff]
      %v1660 = vld [vmem:[%s218 + $0x1d0] sm:$0xff]
      %v1661 = vld [vmem:[%s218 + $0x1d8] sm:$0xff]
      %v1662 = vld [vmem:[%s218 + $0x1e0] sm:$0xff]
      %v1663 = vld [vmem:[%s218 + $0x1e8] sm:$0xff]
      %v1664 = vld [vmem:[%s218 + $0x1f0] sm:$0xff]
      %v1665 = vld [vmem:[%s218 + $0x1f8] sm:$0xff]
      %v1666 = vld [vmem:[%s218 + $0x200] sm:$0xff]
      %v1667 = vld [vmem:[%s218 + $0x208] sm:$0xff]
      %v1668 = vld [vmem:[%s218 + $0x210] sm:$0xff]
      %v1669 = vld [vmem:[%s218 + $0x218] sm:$0xff]
      %v1670 = vld [vmem:[%s218 + $0x220] sm:$0xff]
      %v1671 = vld [vmem:[%s218 + $0x228] sm:$0xff]
      %v1672 = vld [vmem:[%s218 + $0x230] sm:$0xff]
      %v1673 = vld [vmem:[%s218 + $0x238] sm:$0xff]
      %v1674 = vld [vmem:[%s218 + $0x240] sm:$0xff]
      %v1675 = vld [vmem:[%s218 + $0x248] sm:$0xff]
      %v1676 = vld [vmem:[%s218 + $0x250] sm:$0xff]
      %v1677 = vld [vmem:[%s218 + $0x258] sm:$0xff]
      %v1678 = vld [vmem:[%s218 + $0x260] sm:$0xff]
      %v1679 = vld [vmem:[%s218 + $0x268] sm:$0xff]
      %v1680 = vld [vmem:[%s218 + $0x270] sm:$0xff]
      %v1681 = vld [vmem:[%s218 + $0x278] sm:$0xff]
      %v1682 = vld [vmem:[%s218 + $0x280] sm:$0xff]
      %v1683 = vld [vmem:[%s218 + $0x288] sm:$0xff]
      %v1684 = vld [vmem:[%s218 + $0x290] sm:$0xff]
      %v1685 = vld [vmem:[%s218 + $0x298] sm:$0xff]
      %v1686 = vld [vmem:[%s218 + $0x2a0] sm:$0xff]
      %v1687 = vld [vmem:[%s218 + $0x2a8] sm:$0xff]
      %v1688 = vld [vmem:[%s218 + $0x2b0] sm:$0xff]
      %v1689 = vld [vmem:[%s218 + $0x2b8] sm:$0xff]
      %v1690 = vld [vmem:[%s218 + $0x2c0] sm:$0xff]
      %v1691 = vld [vmem:[%s218 + $0x2c8] sm:$0xff]
      %v1692 = vld [vmem:[%s218 + $0x2d0] sm:$0xff]
      %v1693 = vld [vmem:[%s218 + $0x2d8] sm:$0xff]
      %v1694 = vld [vmem:[%s218 + $0x2e0] sm:$0xff]
      %v1695 = vld [vmem:[%s218 + $0x2e8] sm:$0xff]
      %v1696 = vld [vmem:[%s218 + $0x2f0] sm:$0xff]
      %v1697 = vld [vmem:[%s218 + $0x2f8] sm:$0xff]
      %v1698 = vld [vmem:[%s218 + $0x300] sm:$0xff]
      %v1699 = vld [vmem:[%s218 + $0x308] sm:$0xff]
      %v1700 = vld [vmem:[%s218 + $0x310] sm:$0xff]
      %v1701 = vld [vmem:[%s218 + $0x318] sm:$0xff]
      %v1702 = vld [vmem:[%s218 + $0x320] sm:$0xff]
      %v1703 = vld [vmem:[%s218 + $0x328] sm:$0xff]
      %v1704 = vld [vmem:[%s218 + $0x330] sm:$0xff]
      %v1705 = vld [vmem:[%s218 + $0x338] sm:$0xff]
      %v1706 = vld [vmem:[%s218 + $0x340] sm:$0xff]
      %v1707 = vld [vmem:[%s218 + $0x348] sm:$0xff]
      %v1708 = vld [vmem:[%s218 + $0x350] sm:$0xff]
      %v1709 = vld [vmem:[%s218 + $0x358] sm:$0xff]
      %v1710 = vld [vmem:[%s218 + $0x360] sm:$0xff]
      %v1711 = vld [vmem:[%s218 + $0x368] sm:$0xff]
      %v1712 = vld [vmem:[%s218 + $0x370] sm:$0xff]
      %v1713 = vld [vmem:[%s218 + $0x378] sm:$0xff]
      %v1714 = vld [vmem:[%s218 + $0x380] sm:$0xff]
      %v1715 = vld [vmem:[%s218 + $0x388] sm:$0xff]
      %v1716 = vld [vmem:[%s218 + $0x390] sm:$0xff]
      %v1717 = vld [vmem:[%s218 + $0x398] sm:$0xff]
      %v1718 = vld [vmem:[%s218 + $0x3a0] sm:$0xff]
      %v1719 = vld [vmem:[%s218 + $0x3a8] sm:$0xff]
      %v1720 = vld [vmem:[%s218 + $0x3b0] sm:$0xff]
      %v1721 = vld [vmem:[%s218 + $0x3b8] sm:$0xff]
      %v1722 = vld [vmem:[%s218 + $0x3c0] sm:$0xff]
      %v1723 = vld [vmem:[%s218 + $0x3c8] sm:$0xff]
      %v1724 = vld [vmem:[%s218 + $0x3d0] sm:$0xff]
      %v1725 = vld [vmem:[%s218 + $0x3d8] sm:$0xff]
      %v1726 = vld [vmem:[%s218 + $0x3e0] sm:$0xff]
      %v1727 = vld [vmem:[%s218 + $0x3e8] sm:$0xff]
      %v1728 = vld [vmem:[%s218 + $0x3f0] sm:$0xff]
      %v1729 = vld [vmem:[%s218 + $0x3f8] sm:$0xff]
      %vm1730 = vcmp.ge.u32.totalorder %v1602, 1073741824
      %vm1731 = vcmp.ge.u32.totalorder %v1603, 1073741824
      %vm1732 = vcmp.ge.u32.totalorder %v1604, 1073741824
      %vm1733 = vcmp.ge.u32.totalorder %v1605, 1073741824
      %vm1734 = vcmp.ge.u32.totalorder %v1606, 1073741824
      %vm1735 = vcmp.ge.u32.totalorder %v1607, 1073741824
      %vm1736 = vcmp.ge.u32.totalorder %v1608, 1073741824
      %vm1737 = vcmp.ge.u32.totalorder %v1609, 1073741824
      %vm1738 = vcmp.ge.u32.totalorder %v1610, 1073741824
      %vm1739 = vcmp.ge.u32.totalorder %v1611, 1073741824
      %vm1740 = vcmp.ge.u32.totalorder %v1612, 1073741824
      %vm1741 = vcmp.ge.u32.totalorder %v1613, 1073741824
      %vm1742 = vcmp.ge.u32.totalorder %v1614, 1073741824
      %vm1743 = vcmp.ge.u32.totalorder %v1615, 1073741824
      %vm1744 = vcmp.ge.u32.totalorder %v1616, 1073741824
      %vm1745 = vcmp.ge.u32.totalorder %v1617, 1073741824
      %vm1746 = vcmp.ge.u32.totalorder %v1618, 1073741824
      %vm1747 = vcmp.ge.u32.totalorder %v1619, 1073741824
      %vm1748 = vcmp.ge.u32.totalorder %v1620, 1073741824
      %vm1749 = vcmp.ge.u32.totalorder %v1621, 1073741824
      %vm1750 = vcmp.ge.u32.totalorder %v1622, 1073741824
      %vm1751 = vcmp.ge.u32.totalorder %v1623, 1073741824
      %vm1752 = vcmp.ge.u32.totalorder %v1624, 1073741824
      %vm1753 = vcmp.ge.u32.totalorder %v1625, 1073741824
      %vm1754 = vcmp.ge.u32.totalorder %v1626, 1073741824
      %vm1755 = vcmp.ge.u32.totalorder %v1627, 1073741824
      %vm1756 = vcmp.ge.u32.totalorder %v1628, 1073741824
      %vm1757 = vcmp.ge.u32.totalorder %v1629, 1073741824
      %vm1758 = vcmp.ge.u32.totalorder %v1630, 1073741824
      %vm1759 = vcmp.ge.u32.totalorder %v1631, 1073741824
      %vm1760 = vcmp.ge.u32.totalorder %v1632, 1073741824
      %vm1761 = vcmp.ge.u32.totalorder %v1633, 1073741824
      %vm1762 = vcmp.ge.u32.totalorder %v1634, 1073741824
      %vm1763 = vcmp.ge.u32.totalorder %v1635, 1073741824
      %vm1764 = vcmp.ge.u32.totalorder %v1636, 1073741824
      %vm1765 = vcmp.ge.u32.totalorder %v1637, 1073741824
      %vm1766 = vcmp.ge.u32.totalorder %v1638, 1073741824
      %vm1767 = vcmp.ge.u32.totalorder %v1639, 1073741824
      %vm1768 = vcmp.ge.u32.totalorder %v1640, 1073741824
      %vm1769 = vcmp.ge.u32.totalorder %v1641, 1073741824
      %vm1770 = vcmp.ge.u32.totalorder %v1642, 1073741824
      %vm1771 = vcmp.ge.u32.totalorder %v1643, 1073741824
      %vm1772 = vcmp.ge.u32.totalorder %v1644, 1073741824
      %vm1773 = vcmp.ge.u32.totalorder %v1645, 1073741824
      %vm1774 = vcmp.ge.u32.totalorder %v1646, 1073741824
      %vm1775 = vcmp.ge.u32.totalorder %v1647, 1073741824
      %vm1776 = vcmp.ge.u32.totalorder %v1648, 1073741824
      %vm1777 = vcmp.ge.u32.totalorder %v1649, 1073741824
      %vm1778 = vcmp.ge.u32.totalorder %v1650, 1073741824
      %vm1779 = vcmp.ge.u32.totalorder %v1651, 1073741824
      %vm1780 = vcmp.ge.u32.totalorder %v1652, 1073741824
      %vm1781 = vcmp.ge.u32.totalorder %v1653, 1073741824
      %vm1782 = vcmp.ge.u32.totalorder %v1654, 1073741824
      %vm1783 = vcmp.ge.u32.totalorder %v1655, 1073741824
      %vm1784 = vcmp.ge.u32.totalorder %v1656, 1073741824
      %vm1785 = vcmp.ge.u32.totalorder %v1657, 1073741824
      %vm1786 = vcmp.ge.u32.totalorder %v1658, 1073741824
      %vm1787 = vcmp.ge.u32.totalorder %v1659, 1073741824
      %vm1788 = vcmp.ge.u32.totalorder %v1660, 1073741824
      %vm1789 = vcmp.ge.u32.totalorder %v1661, 1073741824
      %vm1790 = vcmp.ge.u32.totalorder %v1662, 1073741824
      %vm1791 = vcmp.ge.u32.totalorder %v1663, 1073741824
      %vm1792 = vcmp.ge.u32.totalorder %v1664, 1073741824
      %vm1793 = vcmp.ge.u32.totalorder %v1665, 1073741824
      %vm1794 = vcmp.ge.u32.totalorder %v1666, 1073741824
      %vm1795 = vcmp.ge.u32.totalorder %v1667, 1073741824
      %vm1796 = vcmp.ge.u32.totalorder %v1668, 1073741824
      %vm1797 = vcmp.ge.u32.totalorder %v1669, 1073741824
      %vm1798 = vcmp.ge.u32.totalorder %v1670, 1073741824
      %vm1799 = vcmp.ge.u32.totalorder %v1671, 1073741824
      %vm1800 = vcmp.ge.u32.totalorder %v1672, 1073741824
      %vm1801 = vcmp.ge.u32.totalorder %v1673, 1073741824
      %vm1802 = vcmp.ge.u32.totalorder %v1674, 1073741824
      %vm1803 = vcmp.ge.u32.totalorder %v1675, 1073741824
      %vm1804 = vcmp.ge.u32.totalorder %v1676, 1073741824
      %vm1805 = vcmp.ge.u32.totalorder %v1677, 1073741824
      %vm1806 = vcmp.ge.u32.totalorder %v1678, 1073741824
      %vm1807 = vcmp.ge.u32.totalorder %v1679, 1073741824
      %vm1808 = vcmp.ge.u32.totalorder %v1680, 1073741824
      %vm1809 = vcmp.ge.u32.totalorder %v1681, 1073741824
      %vm1810 = vcmp.ge.u32.totalorder %v1682, 1073741824
      %vm1811 = vcmp.ge.u32.totalorder %v1683, 1073741824
      %vm1812 = vcmp.ge.u32.totalorder %v1684, 1073741824
      %vm1813 = vcmp.ge.u32.totalorder %v1685, 1073741824
      %vm1814 = vcmp.ge.u32.totalorder %v1686, 1073741824
      %vm1815 = vcmp.ge.u32.totalorder %v1687, 1073741824
      %vm1816 = vcmp.ge.u32.totalorder %v1688, 1073741824
      %vm1817 = vcmp.ge.u32.totalorder %v1689, 1073741824
      %vm1818 = vcmp.ge.u32.totalorder %v1690, 1073741824
      %vm1819 = vcmp.ge.u32.totalorder %v1691, 1073741824
      %vm1820 = vcmp.ge.u32.totalorder %v1692, 1073741824
      %vm1821 = vcmp.ge.u32.totalorder %v1693, 1073741824
      %vm1822 = vcmp.ge.u32.totalorder %v1694, 1073741824
      %vm1823 = vcmp.ge.u32.totalorder %v1695, 1073741824
      %vm1824 = vcmp.ge.u32.totalorder %v1696, 1073741824
      %vm1825 = vcmp.ge.u32.totalorder %v1697, 1073741824
      %vm1826 = vcmp.ge.u32.totalorder %v1698, 1073741824
      %vm1827 = vcmp.ge.u32.totalorder %v1699, 1073741824
      %vm1828 = vcmp.ge.u32.totalorder %v1700, 1073741824
      %vm1829 = vcmp.ge.u32.totalorder %v1701, 1073741824
      %vm1830 = vcmp.ge.u32.totalorder %v1702, 1073741824
      %vm1831 = vcmp.ge.u32.totalorder %v1703, 1073741824
      %vm1832 = vcmp.ge.u32.totalorder %v1704, 1073741824
      %vm1833 = vcmp.ge.u32.totalorder %v1705, 1073741824
      %vm1834 = vcmp.ge.u32.totalorder %v1706, 1073741824
      %vm1835 = vcmp.ge.u32.totalorder %v1707, 1073741824
      %vm1836 = vcmp.ge.u32.totalorder %v1708, 1073741824
      %vm1837 = vcmp.ge.u32.totalorder %v1709, 1073741824
      %vm1838 = vcmp.ge.u32.totalorder %v1710, 1073741824
      %vm1839 = vcmp.ge.u32.totalorder %v1711, 1073741824
      %vm1840 = vcmp.ge.u32.totalorder %v1712, 1073741824
      %vm1841 = vcmp.ge.u32.totalorder %v1713, 1073741824
      %vm1842 = vcmp.ge.u32.totalorder %v1714, 1073741824
      %vm1843 = vcmp.ge.u32.totalorder %v1715, 1073741824
      %vm1844 = vcmp.ge.u32.totalorder %v1716, 1073741824
      %vm1845 = vcmp.ge.u32.totalorder %v1717, 1073741824
      %vm1846 = vcmp.ge.u32.totalorder %v1718, 1073741824
      %vm1847 = vcmp.ge.u32.totalorder %v1719, 1073741824
      %vm1848 = vcmp.ge.u32.totalorder %v1720, 1073741824
      %vm1849 = vcmp.ge.u32.totalorder %v1721, 1073741824
      %vm1850 = vcmp.ge.u32.totalorder %v1722, 1073741824
      %vm1851 = vcmp.ge.u32.totalorder %v1723, 1073741824
      %vm1852 = vcmp.ge.u32.totalorder %v1724, 1073741824
      %vm1853 = vcmp.ge.u32.totalorder %v1725, 1073741824
      %vm1854 = vcmp.ge.u32.totalorder %v1726, 1073741824
      %vm1855 = vcmp.ge.u32.totalorder %v1727, 1073741824
      %vm1856 = vcmp.ge.u32.totalorder %v1728, 1073741824
      %vm1857 = vcmp.ge.u32.totalorder %v1729, 1073741824
      %v1858 = vmul.f32 %v964, 1.3333334
      %v1859 = vmul.f32 %v969, 1.3333334
      %v1860 = vmul.f32 %v974, 1.3333334
      %v1861 = vmul.f32 %v979, 1.3333334
      %v1862 = vmul.f32 %v984, 1.3333334
      %v1863 = vmul.f32 %v989, 1.3333334
      %v1864 = vmul.f32 %v994, 1.3333334
      %v1865 = vmul.f32 %v999, 1.3333334
      %v1866 = vmul.f32 %v1004, 1.3333334
      %v1867 = vmul.f32 %v1009, 1.3333334
      %v1868 = vmul.f32 %v1014, 1.3333334
      %v1869 = vmul.f32 %v1019, 1.3333334
      %v1870 = vmul.f32 %v1024, 1.3333334
      %v1871 = vmul.f32 %v1029, 1.3333334
      %v1872 = vmul.f32 %v1034, 1.3333334
      %v1873 = vmul.f32 %v1039, 1.3333334
      %v1874 = vmul.f32 %v1044, 1.3333334
      %v1875 = vmul.f32 %v1049, 1.3333334
      %v1876 = vmul.f32 %v1054, 1.3333334
      %v1877 = vmul.f32 %v1059, 1.3333334
      %v1878 = vmul.f32 %v1064, 1.3333334
      %v1879 = vmul.f32 %v1069, 1.3333334
      %v1880 = vmul.f32 %v1074, 1.3333334
      %v1881 = vmul.f32 %v1079, 1.3333334
      %v1882 = vmul.f32 %v1084, 1.3333334
      %v1883 = vmul.f32 %v1089, 1.3333334
      %v1884 = vmul.f32 %v1094, 1.3333334
      %v1885 = vmul.f32 %v1099, 1.3333334
      %v1886 = vmul.f32 %v1104, 1.3333334
      %v1887 = vmul.f32 %v1109, 1.3333334
      %v1888 = vmul.f32 %v1114, 1.3333334
      %v1889 = vmul.f32 %v1119, 1.3333334
      %v1890 = vmul.f32 %v1124, 1.3333334
      %v1891 = vmul.f32 %v1129, 1.3333334
      %v1892 = vmul.f32 %v1134, 1.3333334
      %v1893 = vmul.f32 %v1139, 1.3333334
      %v1894 = vmul.f32 %v1144, 1.3333334
      %v1895 = vmul.f32 %v1149, 1.3333334
      %v1896 = vmul.f32 %v1154, 1.3333334
      %v1897 = vmul.f32 %v1159, 1.3333334
      %v1898 = vmul.f32 %v1164, 1.3333334
      %v1899 = vmul.f32 %v1169, 1.3333334
      %v1900 = vmul.f32 %v1174, 1.3333334
      %v1901 = vmul.f32 %v1179, 1.3333334
      %v1902 = vmul.f32 %v1184, 1.3333334
      %v1903 = vmul.f32 %v1189, 1.3333334
      %v1904 = vmul.f32 %v1194, 1.3333334
      %v1905 = vmul.f32 %v1199, 1.3333334
      %v1906 = vmul.f32 %v1204, 1.3333334
      %v1907 = vmul.f32 %v1209, 1.3333334
      %v1908 = vmul.f32 %v1214, 1.3333334
      %v1909 = vmul.f32 %v1219, 1.3333334
      %v1910 = vmul.f32 %v1224, 1.3333334
      %v1911 = vmul.f32 %v1229, 1.3333334
      %v1912 = vmul.f32 %v1234, 1.3333334
      %v1913 = vmul.f32 %v1239, 1.3333334
      %v1914 = vmul.f32 %v1244, 1.3333334
      %v1915 = vmul.f32 %v1249, 1.3333334
      %v1916 = vmul.f32 %v1254, 1.3333334
      %v1917 = vmul.f32 %v1259, 1.3333334
      %v1918 = vmul.f32 %v1264, 1.3333334
      %v1919 = vmul.f32 %v1269, 1.3333334
      %v1920 = vmul.f32 %v1274, 1.3333334
      %v1921 = vmul.f32 %v1279, 1.3333334
      %v1922 = vmul.f32 %v1284, 1.3333334
      %v1923 = vmul.f32 %v1289, 1.3333334
      %v1924 = vmul.f32 %v1294, 1.3333334
      %v1925 = vmul.f32 %v1299, 1.3333334
      %v1926 = vmul.f32 %v1304, 1.3333334
      %v1927 = vmul.f32 %v1309, 1.3333334
      %v1928 = vmul.f32 %v1314, 1.3333334
      %v1929 = vmul.f32 %v1319, 1.3333334
      %v1930 = vmul.f32 %v1324, 1.3333334
      %v1931 = vmul.f32 %v1329, 1.3333334
      %v1932 = vmul.f32 %v1334, 1.3333334
      %v1933 = vmul.f32 %v1339, 1.3333334
      %v1934 = vmul.f32 %v1344, 1.3333334
      %v1935 = vmul.f32 %v1349, 1.3333334
      %v1936 = vmul.f32 %v1354, 1.3333334
      %v1937 = vmul.f32 %v1359, 1.3333334
      %v1938 = vmul.f32 %v1364, 1.3333334
      %v1939 = vmul.f32 %v1369, 1.3333334
      %v1940 = vmul.f32 %v1374, 1.3333334
      %v1941 = vmul.f32 %v1379, 1.3333334
      %v1942 = vmul.f32 %v1384, 1.3333334
      %v1943 = vmul.f32 %v1389, 1.3333334
      %v1944 = vmul.f32 %v1394, 1.3333334
      %v1945 = vmul.f32 %v1399, 1.3333334
      %v1946 = vmul.f32 %v1404, 1.3333334
      %v1947 = vmul.f32 %v1409, 1.3333334
      %v1948 = vmul.f32 %v1414, 1.3333334
      %v1949 = vmul.f32 %v1419, 1.3333334
      %v1950 = vmul.f32 %v1424, 1.3333334
      %v1951 = vmul.f32 %v1429, 1.3333334
      %v1952 = vmul.f32 %v1434, 1.3333334
      %v1953 = vmul.f32 %v1439, 1.3333334
      %v1954 = vmul.f32 %v1444, 1.3333334
      %v1955 = vmul.f32 %v1449, 1.3333334
      %v1956 = vmul.f32 %v1454, 1.3333334
      %v1957 = vmul.f32 %v1459, 1.3333334
      %v1958 = vmul.f32 %v1464, 1.3333334
      %v1959 = vmul.f32 %v1469, 1.3333334
      %v1960 = vmul.f32 %v1474, 1.3333334
      %v1961 = vmul.f32 %v1479, 1.3333334
      %v1962 = vmul.f32 %v1484, 1.3333334
      %v1963 = vmul.f32 %v1489, 1.3333334
      %v1964 = vmul.f32 %v1494, 1.3333334
      %v1965 = vmul.f32 %v1499, 1.3333334
      %v1966 = vmul.f32 %v1504, 1.3333334
      %v1967 = vmul.f32 %v1509, 1.3333334
      %v1968 = vmul.f32 %v1514, 1.3333334
      %v1969 = vmul.f32 %v1519, 1.3333334
      %v1970 = vmul.f32 %v1524, 1.3333334
      %v1971 = vmul.f32 %v1529, 1.3333334
      %v1972 = vmul.f32 %v1534, 1.3333334
      %v1973 = vmul.f32 %v1539, 1.3333334
      %v1974 = vmul.f32 %v1544, 1.3333334
      %v1975 = vmul.f32 %v1549, 1.3333334
      %v1976 = vmul.f32 %v1554, 1.3333334
      %v1977 = vmul.f32 %v1559, 1.3333334
      %v1978 = vmul.f32 %v1564, 1.3333334
      %v1979 = vmul.f32 %v1569, 1.3333334
      %v1980 = vmul.f32 %v1574, 1.3333334
      %v1981 = vmul.f32 %v1579, 1.3333334
      %v1982 = vmul.f32 %v1584, 1.3333334
      %v1983 = vmul.f32 %v1589, 1.3333334
      %v1984 = vmul.f32 %v1594, 1.3333334
      %v1985 = vmul.f32 %v1599, 1.3333334
      %v1986 = vsel %vm1730, %v1858, 0.0
      %v1987 = vsel %vm1731, %v1859, 0.0
      %v1988 = vsel %vm1732, %v1860, 0.0
      %v1989 = vsel %vm1733, %v1861, 0.0
      %v1990 = vsel %vm1734, %v1862, 0.0
      %v1991 = vsel %vm1735, %v1863, 0.0
      %v1992 = vsel %vm1736, %v1864, 0.0
      %v1993 = vsel %vm1737, %v1865, 0.0
      %v1994 = vsel %vm1738, %v1866, 0.0
      %v1995 = vsel %vm1739, %v1867, 0.0
      %v1996 = vsel %vm1740, %v1868, 0.0
      %v1997 = vsel %vm1741, %v1869, 0.0
      %v1998 = vsel %vm1742, %v1870, 0.0
      %v1999 = vsel %vm1743, %v1871, 0.0
      %v2000 = vsel %vm1744, %v1872, 0.0
      %v2001 = vsel %vm1745, %v1873, 0.0
      %v2002 = vsel %vm1746, %v1874, 0.0
      %v2003 = vsel %vm1747, %v1875, 0.0
      %v2004 = vsel %vm1748, %v1876, 0.0
      %v2005 = vsel %vm1749, %v1877, 0.0
      %v2006 = vsel %vm1750, %v1878, 0.0
      %v2007 = vsel %vm1751, %v1879, 0.0
      %v2008 = vsel %vm1752, %v1880, 0.0
      %v2009 = vsel %vm1753, %v1881, 0.0
      %v2010 = vsel %vm1754, %v1882, 0.0
      %v2011 = vsel %vm1755, %v1883, 0.0
      %v2012 = vsel %vm1756, %v1884, 0.0
      %v2013 = vsel %vm1757, %v1885, 0.0
      %v2014 = vsel %vm1758, %v1886, 0.0
      %v2015 = vsel %vm1759, %v1887, 0.0
      %v2016 = vsel %vm1760, %v1888, 0.0
      %v2017 = vsel %vm1761, %v1889, 0.0
      %v2018 = vsel %vm1762, %v1890, 0.0
      %v2019 = vsel %vm1763, %v1891, 0.0
      %v2020 = vsel %vm1764, %v1892, 0.0
      %v2021 = vsel %vm1765, %v1893, 0.0
      %v2022 = vsel %vm1766, %v1894, 0.0
      %v2023 = vsel %vm1767, %v1895, 0.0
      %v2024 = vsel %vm1768, %v1896, 0.0
      %v2025 = vsel %vm1769, %v1897, 0.0
      %v2026 = vsel %vm1770, %v1898, 0.0
      %v2027 = vsel %vm1771, %v1899, 0.0
      %v2028 = vsel %vm1772, %v1900, 0.0
      %v2029 = vsel %vm1773, %v1901, 0.0
      %v2030 = vsel %vm1774, %v1902, 0.0
      %v2031 = vsel %vm1775, %v1903, 0.0
      %v2032 = vsel %vm1776, %v1904, 0.0
      %v2033 = vsel %vm1777, %v1905, 0.0
      %v2034 = vsel %vm1778, %v1906, 0.0
      %v2035 = vsel %vm1779, %v1907, 0.0
      %v2036 = vsel %vm1780, %v1908, 0.0
      %v2037 = vsel %vm1781, %v1909, 0.0
      %v2038 = vsel %vm1782, %v1910, 0.0
      %v2039 = vsel %vm1783, %v1911, 0.0
      %v2040 = vsel %vm1784, %v1912, 0.0
      %v2041 = vsel %vm1785, %v1913, 0.0
      %v2042 = vsel %vm1786, %v1914, 0.0
      %v2043 = vsel %vm1787, %v1915, 0.0
      %v2044 = vsel %vm1788, %v1916, 0.0
      %v2045 = vsel %vm1789, %v1917, 0.0
      %v2046 = vsel %vm1790, %v1918, 0.0
      %v2047 = vsel %vm1791, %v1919, 0.0
      %v2048 = vsel %vm1792, %v1920, 0.0
      %v2049 = vsel %vm1793, %v1921, 0.0
      %v2050 = vsel %vm1794, %v1922, 0.0
      %v2051 = vsel %vm1795, %v1923, 0.0
      %v2052 = vsel %vm1796, %v1924, 0.0
      %v2053 = vsel %vm1797, %v1925, 0.0
      %v2054 = vsel %vm1798, %v1926, 0.0
      %v2055 = vsel %vm1799, %v1927, 0.0
      %v2056 = vsel %vm1800, %v1928, 0.0
      %v2057 = vsel %vm1801, %v1929, 0.0
      %v2058 = vsel %vm1802, %v1930, 0.0
      %v2059 = vsel %vm1803, %v1931, 0.0
      %v2060 = vsel %vm1804, %v1932, 0.0
      %v2061 = vsel %vm1805, %v1933, 0.0
      %v2062 = vsel %vm1806, %v1934, 0.0
      %v2063 = vsel %vm1807, %v1935, 0.0
      %v2064 = vsel %vm1808, %v1936, 0.0
      %v2065 = vsel %vm1809, %v1937, 0.0
      %v2066 = vsel %vm1810, %v1938, 0.0
      %v2067 = vsel %vm1811, %v1939, 0.0
      %v2068 = vsel %vm1812, %v1940, 0.0
      %v2069 = vsel %vm1813, %v1941, 0.0
      %v2070 = vsel %vm1814, %v1942, 0.0
      %v2071 = vsel %vm1815, %v1943, 0.0
      %v2072 = vsel %vm1816, %v1944, 0.0
      %v2073 = vsel %vm1817, %v1945, 0.0
      %v2074 = vsel %vm1818, %v1946, 0.0
      %v2075 = vsel %vm1819, %v1947, 0.0
      %v2076 = vsel %vm1820, %v1948, 0.0
      %v2077 = vsel %vm1821, %v1949, 0.0
      %v2078 = vsel %vm1822, %v1950, 0.0
      %v2079 = vsel %vm1823, %v1951, 0.0
      %v2080 = vsel %vm1824, %v1952, 0.0
      %v2081 = vsel %vm1825, %v1953, 0.0
      %v2082 = vsel %vm1826, %v1954, 0.0
      %v2083 = vsel %vm1827, %v1955, 0.0
      %v2084 = vsel %vm1828, %v1956, 0.0
      %v2085 = vsel %vm1829, %v1957, 0.0
      %v2086 = vsel %vm1830, %v1958, 0.0
      %v2087 = vsel %vm1831, %v1959, 0.0
      %v2088 = vsel %vm1832, %v1960, 0.0
      %v2089 = vsel %vm1833, %v1961, 0.0
      %v2090 = vsel %vm1834, %v1962, 0.0
      %v2091 = vsel %vm1835, %v1963, 0.0
      %v2092 = vsel %vm1836, %v1964, 0.0
      %v2093 = vsel %vm1837, %v1965, 0.0
      %v2094 = vsel %vm1838, %v1966, 0.0
      %v2095 = vsel %vm1839, %v1967, 0.0
      %v2096 = vsel %vm1840, %v1968, 0.0
      %v2097 = vsel %vm1841, %v1969, 0.0
      %v2098 = vsel %vm1842, %v1970, 0.0
      %v2099 = vsel %vm1843, %v1971, 0.0
      %v2100 = vsel %vm1844, %v1972, 0.0
      %v2101 = vsel %vm1845, %v1973, 0.0
      %v2102 = vsel %vm1846, %v1974, 0.0
      %v2103 = vsel %vm1847, %v1975, 0.0
      %v2104 = vsel %vm1848, %v1976, 0.0
      %v2105 = vsel %vm1849, %v1977, 0.0
      %v2106 = vsel %vm1850, %v1978, 0.0
      %v2107 = vsel %vm1851, %v1979, 0.0
      %v2108 = vsel %vm1852, %v1980, 0.0
      %v2109 = vsel %vm1853, %v1981, 0.0
      %v2110 = vsel %vm1854, %v1982, 0.0
      %v2111 = vsel %vm1855, %v1983, 0.0
      %v2112 = vsel %vm1856, %v1984, 0.0
      %v2113 = vsel %vm1857, %v1985, 0.0
      %v2114 = vtanh.pop %v1986
      %v2115 = vtanh.pop %v1987
      %v2116 = vtanh.pop %v1988
      %v2117 = vtanh.pop %v1989
      %v2118 = vtanh.pop %v1990
      %v2119 = vtanh.pop %v1991
      %v2120 = vtanh.pop %v1992
      %v2121 = vtanh.pop %v1993
      %v2122 = vtanh.pop %v1994
      %v2123 = vtanh.pop %v1995
      %v2124 = vtanh.pop %v1996
      %v2125 = vtanh.pop %v1997
      %v2126 = vtanh.pop %v1998
      %v2127 = vtanh.pop %v1999
      %v2128 = vtanh.pop %v2000
      %v2129 = vtanh.pop %v2001
      %v2130 = vtanh.pop %v2002
      %v2131 = vtanh.pop %v2003
      %v2132 = vtanh.pop %v2004
      %v2133 = vtanh.pop %v2005
      %v2134 = vtanh.pop %v2006
      %v2135 = vtanh.pop %v2007
      %v2136 = vtanh.pop %v2008
      %v2137 = vtanh.pop %v2009
      %v2138 = vtanh.pop %v2010
      %v2139 = vtanh.pop %v2011
      %v2140 = vtanh.pop %v2012
      %v2141 = vtanh.pop %v2013
      %v2142 = vtanh.pop %v2014
      %v2143 = vtanh.pop %v2015
      %v2144 = vtanh.pop %v2016
      %v2145 = vtanh.pop %v2017
      %v2146 = vtanh.pop %v2018
      %v2147 = vtanh.pop %v2019
      %v2148 = vtanh.pop %v2020
      %v2149 = vtanh.pop %v2021
      %v2150 = vtanh.pop %v2022
      %v2151 = vtanh.pop %v2023
      %v2152 = vtanh.pop %v2024
      %v2153 = vtanh.pop %v2025
      %v2154 = vtanh.pop %v2026
      %v2155 = vtanh.pop %v2027
      %v2156 = vtanh.pop %v2028
      %v2157 = vtanh.pop %v2029
      %v2158 = vtanh.pop %v2030
      %v2159 = vtanh.pop %v2031
      %v2160 = vtanh.pop %v2032
      %v2161 = vtanh.pop %v2033
      %v2162 = vtanh.pop %v2034
      %v2163 = vtanh.pop %v2035
      %v2164 = vtanh.pop %v2036
      %v2165 = vtanh.pop %v2037
      %v2166 = vtanh.pop %v2038
      %v2167 = vtanh.pop %v2039
      %v2168 = vtanh.pop %v2040
      %v2169 = vtanh.pop %v2041
      %v2170 = vtanh.pop %v2042
      %v2171 = vtanh.pop %v2043
      %v2172 = vtanh.pop %v2044
      %v2173 = vtanh.pop %v2045
      %v2174 = vtanh.pop %v2046
      %v2175 = vtanh.pop %v2047
      %v2176 = vtanh.pop %v2048
      %v2177 = vtanh.pop %v2049
      %v2178 = vtanh.pop %v2050
      %v2179 = vtanh.pop %v2051
      %v2180 = vtanh.pop %v2052
      %v2181 = vtanh.pop %v2053
      %v2182 = vtanh.pop %v2054
      %v2183 = vtanh.pop %v2055
      %v2184 = vtanh.pop %v2056
      %v2185 = vtanh.pop %v2057
      %v2186 = vtanh.pop %v2058
      %v2187 = vtanh.pop %v2059
      %v2188 = vtanh.pop %v2060
      %v2189 = vtanh.pop %v2061
      %v2190 = vtanh.pop %v2062
      %v2191 = vtanh.pop %v2063
      %v2192 = vtanh.pop %v2064
      %v2193 = vtanh.pop %v2065
      %v2194 = vtanh.pop %v2066
      %v2195 = vtanh.pop %v2067
      %v2196 = vtanh.pop %v2068
      %v2197 = vtanh.pop %v2069
      %v2198 = vtanh.pop %v2070
      %v2199 = vtanh.pop %v2071
      %v2200 = vtanh.pop %v2072
      %v2201 = vtanh.pop %v2073
      %v2202 = vtanh.pop %v2074
      %v2203 = vtanh.pop %v2075
      %v2204 = vtanh.pop %v2076
      %v2205 = vtanh.pop %v2077
      %v2206 = vtanh.pop %v2078
      %v2207 = vtanh.pop %v2079
      %v2208 = vtanh.pop %v2080
      %v2209 = vtanh.pop %v2081
      %v2210 = vtanh.pop %v2082
      %v2211 = vtanh.pop %v2083
      %v2212 = vtanh.pop %v2084
      %v2213 = vtanh.pop %v2085
      %v2214 = vtanh.pop %v2086
      %v2215 = vtanh.pop %v2087
      %v2216 = vtanh.pop %v2088
      %v2217 = vtanh.pop %v2089
      %v2218 = vtanh.pop %v2090
      %v2219 = vtanh.pop %v2091
      %v2220 = vtanh.pop %v2092
      %v2221 = vtanh.pop %v2093
      %v2222 = vtanh.pop %v2094
      %v2223 = vtanh.pop %v2095
      %v2224 = vtanh.pop %v2096
      %v2225 = vtanh.pop %v2097
      %v2226 = vtanh.pop %v2098
      %v2227 = vtanh.pop %v2099
      %v2228 = vtanh.pop %v2100
      %v2229 = vtanh.pop %v2101
      %v2230 = vtanh.pop %v2102
      %v2231 = vtanh.pop %v2103
      %v2232 = vtanh.pop %v2104
      %v2233 = vtanh.pop %v2105
      %v2234 = vtanh.pop %v2106
      %v2235 = vtanh.pop %v2107
      %v2236 = vtanh.pop %v2108
      %v2237 = vtanh.pop %v2109
      %v2238 = vtanh.pop %v2110
      %v2239 = vtanh.pop %v2111
      %v2240 = vtanh.pop %v2112
      %v2241 = vtanh.pop %v2113
      %2242 = vst [vmem:[%s224] sm:$0xff] %v2114
      %2243 = vst [vmem:[%s224 + $0x8] sm:$0xff] %v2115
      %2244 = vst [vmem:[%s224 + $0x10] sm:$0xff] %v2116
      %2245 = vst [vmem:[%s224 + $0x18] sm:$0xff] %v2117
      %2246 = vst [vmem:[%s224 + $0x20] sm:$0xff] %v2118
      %2247 = vst [vmem:[%s224 + $0x28] sm:$0xff] %v2119
      %2248 = vst [vmem:[%s224 + $0x30] sm:$0xff] %v2120
      %2249 = vst [vmem:[%s224 + $0x38] sm:$0xff] %v2121
      %2250 = vst [vmem:[%s224 + $0x40] sm:$0xff] %v2122
      %2251 = vst [vmem:[%s224 + $0x48] sm:$0xff] %v2123
      %2252 = vst [vmem:[%s224 + $0x50] sm:$0xff] %v2124
      %2253 = vst [vmem:[%s224 + $0x58] sm:$0xff] %v2125
      %2254 = vst [vmem:[%s224 + $0x60] sm:$0xff] %v2126
      %2255 = vst [vmem:[%s224 + $0x68] sm:$0xff] %v2127
      %2256 = vst [vmem:[%s224 + $0x70] sm:$0xff] %v2128
      %2257 = vst [vmem:[%s224 + $0x78] sm:$0xff] %v2129
      %2258 = vst [vmem:[%s224 + $0x80] sm:$0xff] %v2130
      %2259 = vst [vmem:[%s224 + $0x88] sm:$0xff] %v2131
      %2260 = vst [vmem:[%s224 + $0x90] sm:$0xff] %v2132
      %2261 = vst [vmem:[%s224 + $0x98] sm:$0xff] %v2133
      %2262 = vst [vmem:[%s224 + $0xa0] sm:$0xff] %v2134
      %2263 = vst [vmem:[%s224 + $0xa8] sm:$0xff] %v2135
      %2264 = vst [vmem:[%s224 + $0xb0] sm:$0xff] %v2136
      %2265 = vst [vmem:[%s224 + $0xb8] sm:$0xff] %v2137
      %2266 = vst [vmem:[%s224 + $0xc0] sm:$0xff] %v2138
      %2267 = vst [vmem:[%s224 + $0xc8] sm:$0xff] %v2139
      %2268 = vst [vmem:[%s224 + $0xd0] sm:$0xff] %v2140
      %2269 = vst [vmem:[%s224 + $0xd8] sm:$0xff] %v2141
      %2270 = vst [vmem:[%s224 + $0xe0] sm:$0xff] %v2142
      %2271 = vst [vmem:[%s224 + $0xe8] sm:$0xff] %v2143
      %2272 = vst [vmem:[%s224 + $0xf0] sm:$0xff] %v2144
      %2273 = vst [vmem:[%s224 + $0xf8] sm:$0xff] %v2145
      %2274 = vst [vmem:[%s224 + $0x100] sm:$0xff] %v2146
      %2275 = vst [vmem:[%s224 + $0x108] sm:$0xff] %v2147
      %2276 = vst [vmem:[%s224 + $0x110] sm:$0xff] %v2148
      %2277 = vst [vmem:[%s224 + $0x118] sm:$0xff] %v2149
      %2278 = vst [vmem:[%s224 + $0x120] sm:$0xff] %v2150
      %2279 = vst [vmem:[%s224 + $0x128] sm:$0xff] %v2151
      %2280 = vst [vmem:[%s224 + $0x130] sm:$0xff] %v2152
      %2281 = vst [vmem:[%s224 + $0x138] sm:$0xff] %v2153
      %2282 = vst [vmem:[%s224 + $0x140] sm:$0xff] %v2154
      %2283 = vst [vmem:[%s224 + $0x148] sm:$0xff] %v2155
      %2284 = vst [vmem:[%s224 + $0x150] sm:$0xff] %v2156
      %2285 = vst [vmem:[%s224 + $0x158] sm:$0xff] %v2157
      %2286 = vst [vmem:[%s224 + $0x160] sm:$0xff] %v2158
      %2287 = vst [vmem:[%s224 + $0x168] sm:$0xff] %v2159
      %2288 = vst [vmem:[%s224 + $0x170] sm:$0xff] %v2160
      %2289 = vst [vmem:[%s224 + $0x178] sm:$0xff] %v2161
      %2290 = vst [vmem:[%s224 + $0x180] sm:$0xff] %v2162
      %2291 = vst [vmem:[%s224 + $0x188] sm:$0xff] %v2163
      %2292 = vst [vmem:[%s224 + $0x190] sm:$0xff] %v2164
      %2293 = vst [vmem:[%s224 + $0x198] sm:$0xff] %v2165
      %2294 = vst [vmem:[%s224 + $0x1a0] sm:$0xff] %v2166
      %2295 = vst [vmem:[%s224 + $0x1a8] sm:$0xff] %v2167
      %2296 = vst [vmem:[%s224 + $0x1b0] sm:$0xff] %v2168
      %2297 = vst [vmem:[%s224 + $0x1b8] sm:$0xff] %v2169
      %2298 = vst [vmem:[%s224 + $0x1c0] sm:$0xff] %v2170
      %2299 = vst [vmem:[%s224 + $0x1c8] sm:$0xff] %v2171
      %2300 = vst [vmem:[%s224 + $0x1d0] sm:$0xff] %v2172
      %2301 = vst [vmem:[%s224 + $0x1d8] sm:$0xff] %v2173
      %2302 = vst [vmem:[%s224 + $0x1e0] sm:$0xff] %v2174
      %2303 = vst [vmem:[%s224 + $0x1e8] sm:$0xff] %v2175
      %2304 = vst [vmem:[%s224 + $0x1f0] sm:$0xff] %v2176
      %2305 = vst [vmem:[%s224 + $0x1f8] sm:$0xff] %v2177
      %2306 = vst [vmem:[%s224 + $0x200] sm:$0xff] %v2178
      %2307 = vst [vmem:[%s224 + $0x208] sm:$0xff] %v2179
      %2308 = vst [vmem:[%s224 + $0x210] sm:$0xff] %v2180
      %2309 = vst [vmem:[%s224 + $0x218] sm:$0xff] %v2181
      %2310 = vst [vmem:[%s224 + $0x220] sm:$0xff] %v2182
      %2311 = vst [vmem:[%s224 + $0x228] sm:$0xff] %v2183
      %2312 = vst [vmem:[%s224 + $0x230] sm:$0xff] %v2184
      %2313 = vst [vmem:[%s224 + $0x238] sm:$0xff] %v2185
      %2314 = vst [vmem:[%s224 + $0x240] sm:$0xff] %v2186
      %2315 = vst [vmem:[%s224 + $0x248] sm:$0xff] %v2187
      %2316 = vst [vmem:[%s224 + $0x250] sm:$0xff] %v2188
      %2317 = vst [vmem:[%s224 + $0x258] sm:$0xff] %v2189
      %2318 = vst [vmem:[%s224 + $0x260] sm:$0xff] %v2190
      %2319 = vst [vmem:[%s224 + $0x268] sm:$0xff] %v2191
      %2320 = vst [vmem:[%s224 + $0x270] sm:$0xff] %v2192
      %2321 = vst [vmem:[%s224 + $0x278] sm:$0xff] %v2193
      %2322 = vst [vmem:[%s224 + $0x280] sm:$0xff] %v2194
      %2323 = vst [vmem:[%s224 + $0x288] sm:$0xff] %v2195
      %2324 = vst [vmem:[%s224 + $0x290] sm:$0xff] %v2196
      %2325 = vst [vmem:[%s224 + $0x298] sm:$0xff] %v2197
      %2326 = vst [vmem:[%s224 + $0x2a0] sm:$0xff] %v2198
      %2327 = vst [vmem:[%s224 + $0x2a8] sm:$0xff] %v2199
      %2328 = vst [vmem:[%s224 + $0x2b0] sm:$0xff] %v2200
      %2329 = vst [vmem:[%s224 + $0x2b8] sm:$0xff] %v2201
      %2330 = vst [vmem:[%s224 + $0x2c0] sm:$0xff] %v2202
      %2331 = vst [vmem:[%s224 + $0x2c8] sm:$0xff] %v2203
      %2332 = vst [vmem:[%s224 + $0x2d0] sm:$0xff] %v2204
      %2333 = vst [vmem:[%s224 + $0x2d8] sm:$0xff] %v2205
      %2334 = vst [vmem:[%s224 + $0x2e0] sm:$0xff] %v2206
      %2335 = vst [vmem:[%s224 + $0x2e8] sm:$0xff] %v2207
      %2336 = vst [vmem:[%s224 + $0x2f0] sm:$0xff] %v2208
      %2337 = vst [vmem:[%s224 + $0x2f8] sm:$0xff] %v2209
      %2338 = vst [vmem:[%s224 + $0x300] sm:$0xff] %v2210
      %2339 = vst [vmem:[%s224 + $0x308] sm:$0xff] %v2211
      %2340 = vst [vmem:[%s224 + $0x310] sm:$0xff] %v2212
      %2341 = vst [vmem:[%s224 + $0x318] sm:$0xff] %v2213
      %2342 = vst [vmem:[%s224 + $0x320] sm:$0xff] %v2214
      %2343 = vst [vmem:[%s224 + $0x328] sm:$0xff] %v2215
      %2344 = vst [vmem:[%s224 + $0x330] sm:$0xff] %v2216
      %2345 = vst [vmem:[%s224 + $0x338] sm:$0xff] %v2217
      %2346 = vst [vmem:[%s224 + $0x340] sm:$0xff] %v2218
      %2347 = vst [vmem:[%s224 + $0x348] sm:$0xff] %v2219
      %2348 = vst [vmem:[%s224 + $0x350] sm:$0xff] %v2220
      %2349 = vst [vmem:[%s224 + $0x358] sm:$0xff] %v2221
      %2350 = vst [vmem:[%s224 + $0x360] sm:$0xff] %v2222
      %2351 = vst [vmem:[%s224 + $0x368] sm:$0xff] %v2223
      %2352 = vst [vmem:[%s224 + $0x370] sm:$0xff] %v2224
      %2353 = vst [vmem:[%s224 + $0x378] sm:$0xff] %v2225
      %2354 = vst [vmem:[%s224 + $0x380] sm:$0xff] %v2226
      %2355 = vst [vmem:[%s224 + $0x388] sm:$0xff] %v2227
      %2356 = vst [vmem:[%s224 + $0x390] sm:$0xff] %v2228
      %2357 = vst [vmem:[%s224 + $0x398] sm:$0xff] %v2229
      %2358 = vst [vmem:[%s224 + $0x3a0] sm:$0xff] %v2230
      %2359 = vst [vmem:[%s224 + $0x3a8] sm:$0xff] %v2231
      %2360 = vst [vmem:[%s224 + $0x3b0] sm:$0xff] %v2232
      %2361 = vst [vmem:[%s224 + $0x3b8] sm:$0xff] %v2233
      %2362 = vst [vmem:[%s224 + $0x3c0] sm:$0xff] %v2234
      %2363 = vst [vmem:[%s224 + $0x3c8] sm:$0xff] %v2235
      %2364 = vst [vmem:[%s224 + $0x3d0] sm:$0xff] %v2236
      %2365 = vst [vmem:[%s224 + $0x3d8] sm:$0xff] %v2237
      %2366 = vst [vmem:[%s224 + $0x3e0] sm:$0xff] %v2238
      %2367 = vst [vmem:[%s224 + $0x3e8] sm:$0xff] %v2239
      %2368 = vst [vmem:[%s224 + $0x3f0] sm:$0xff] %v2240
      %2369 = vst [vmem:[%s224 + $0x3f8] sm:$0xff] %v2241
      %s2370 = smul.u32 128, %s15
      %p2371 = scmp.lt.s32.totalorder %s2370, 255
      %s2372 = scalar_select %p2371, %s2370, 255
      %s2373 = smul.addr %s2372, 8
      %s2374 = scalar_lea.vmem %s4, %s2373
      // Predicated region
      $region37: #{lenet5_mcdropout_forward.10} parent=35 // pred_check
        %p2375 = pneg %p127
      $region38: #{lenet5_mcdropout_forward.10} parent=35 // pred_check_branch
        %2377 = sbr.rel (%p2375) target = $region40
      $region39: #{lenet5_mcdropout_forward.10} parent=35 // pred_region
        %s2378 = smul.u32 128, %s15
      $region40: #{lenet5_mcdropout_forward.10} parent=35 // pred_fallthru
        _
    $region36: #{lenet5_mcdropout_forward.10} parent=5 // pred_fallthru
      _
    %p2379 = scmp.le.s32.totalorder 2, %s10
    // Predicated region
    $region41: #{lenet5_mcdropout_forward.10} parent=5 // pred_check
      %p2380 = pneg %p2379
    $region42: #{lenet5_mcdropout_forward.10} parent=5 // pred_check_branch
      %2382 = sbr.rel (%p2380) target = $region44
    $region43: #{lenet5_mcdropout_forward.10} parent=5 // pred_region
      %s2383 = ssub.s32 %s10, 2
      // Predicated region
      $region45: #{lenet5_mcdropout_forward.10} parent=43 // pred_check
        %p2384 = pneg %p133
      $region46: #{lenet5_mcdropout_forward.10} parent=43 // pred_check_branch
        %2386 = sbr.rel (%p2384) target = $region48
      $region47: #{lenet5_mcdropout_forward.10} parent=43 // pred_region
        %s2387 = smul.u32 128, %s16
        %p2388 = scmp.lt.s32.totalorder %s2387, 255
        %s2389 = scalar_select %p2388, %s2387, 255
        %s2390 = smul.addr %s2389, 8
        %s2391 = scalar_lea.vmem %s4, %s2390
      $region48: #{lenet5_mcdropout_forward.10} parent=43 // pred_fallthru
        _
    $region44: #{lenet5_mcdropout_forward.10} parent=5 // pred_fallthru
      _
  $region6: #{lenet5_mcdropout_forward.10} parent=0 // loop_footer
    %s14 = sadd.s32 1, %s10
  $region7: #{lenet5_mcdropout_forward.10} parent=0 // loop_footer_branch
    %9 = sbr.rel target = $region3
  $region8: #{lenet5_mcdropout_forward.10} parent=0 // loop_exit
    _

// kernel: lenet5_mcdropout_forward.11
$region0: #{lenet5_mcdropout_forward.11}
  #allocation0 [shape = 'u32[]', space=smem, size = 0x4, offset = 0x4, fixed_abs, tag = 'smem constant byte address 0x4 - core index']
  #allocation1 [shape = 'u32[144,128]{1,0:T(1,128)}', space=vmem, size = 0x12000, scoped, tag = 'internal scratch']
  %s0 = inlined_call_operand.vmem [shape: f32[16,400], index: 0, kind: input, shape index: {}]
  %s1 = inlined_call_operand.vmem [shape: f32[400,128], index: 1, kind: input, shape index: {}]
  %s2 = inlined_call_operand.vmem [shape: f32[1,128], index: 2, kind: input, shape index: {}]
  %s3 = inlined_call_operand.vmem [shape: u32[16,128], index: 3, kind: input, shape index: {}]
  %s4 = inlined_call_operand.vmem [shape: f32[128,128], index: 4, kind: input, shape index: {}]
  %s5 = inlined_call_operand.vmem [shape: f32[1,128], index: 5, kind: input, shape index: {}]
  %s6 = inlined_call_operand.vmem [shape: u32[16,128], index: 6, kind: input, shape index: {}]
  %s7 = inlined_call_operand.vmem [shape: f32[128,128], index: 7, kind: input, shape index: {}]
  %s8 = inlined_call_operand.vmem [shape: f32[1,128], index: 8, kind: input, shape index: {}]
  %s9 = inlined_call_operand.hbm [shape: f32[16,128], index: 9, kind: output, shape index: {}]
  %s10 = sld [smem:[#allocation0]]
  $region46: #{lenet5_mcdropout_forward.11} parent=0
    _
  %s12 = ssub.s32 1, %s10
  %s13 = scalar_select 0, %s12, %s10
  $region1: #{lenet5_mcdropout_forward.11} parent=0
    #allocation2 [shape = 'u8[8192]{0}', space=vmem, size = 0x2000, scoped, tag = 'output window, operand 0, single buffered']
    #allocation3 [shape = 's32[1]{0}', space=sflag, size = 0x4, scoped, tag = 'scoped memory for lenet5_mcdropout_forward.11']
    %14 = vsyncpa [#allocation3], 0
    // Predicated region
    $region2: #{lenet5_mcdropout_forward.11} parent=1 // pred_check
      _
    $region3: #{lenet5_mcdropout_forward.11} parent=1 // pred_check_branch
      %16 = sbr.rel (0) target = $region5
    $region4: #{lenet5_mcdropout_forward.11} parent=1 // pred_region
      _
    $region5: #{lenet5_mcdropout_forward.11} parent=1 // pred_fallthru
      _
    // Predicated region
    $region6: #{lenet5_mcdropout_forward.11} parent=1 // pred_check
      _
    $region7: #{lenet5_mcdropout_forward.11} parent=1 // pred_check_branch
      %18 = sbr.rel (0) target = $region9
    $region8: #{lenet5_mcdropout_forward.11} parent=1 // pred_region
      _
    $region9: #{lenet5_mcdropout_forward.11} parent=1 // pred_fallthru
      _
    // Predicated region
    $region10: #{lenet5_mcdropout_forward.11} parent=1 // pred_check
      _
    $region11: #{lenet5_mcdropout_forward.11} parent=1 // pred_check_branch
      %20 = sbr.rel (0) target = $region13
    $region12: #{lenet5_mcdropout_forward.11} parent=1 // pred_region
      _
    $region13: #{lenet5_mcdropout_forward.11} parent=1 // pred_fallthru
      _
    // Predicated region
    $region14: #{lenet5_mcdropout_forward.11} parent=1 // pred_check
      _
    $region15: #{lenet5_mcdropout_forward.11} parent=1 // pred_check_branch
      %22 = sbr.rel (0) target = $region17
    $region16: #{lenet5_mcdropout_forward.11} parent=1 // pred_region
      _
    $region17: #{lenet5_mcdropout_forward.11} parent=1 // pred_fallthru
      _
    // Predicated region
    $region18: #{lenet5_mcdropout_forward.11} parent=1 // pred_check
      _
    $region19: #{lenet5_mcdropout_forward.11} parent=1 // pred_check_branch
      %24 = sbr.rel (0) target = $region21
    $region20: #{lenet5_mcdropout_forward.11} parent=1 // pred_region
      _
    $region21: #{lenet5_mcdropout_forward.11} parent=1 // pred_fallthru
      _
    // Predicated region
    $region22: #{lenet5_mcdropout_forward.11} parent=1 // pred_check
      _
    $region23: #{lenet5_mcdropout_forward.11} parent=1 // pred_check_branch
      %26 = sbr.rel (0) target = $region25
    $region24: #{lenet5_mcdropout_forward.11} parent=1 // pred_region
      _
    $region25: #{lenet5_mcdropout_forward.11} parent=1 // pred_fallthru
      _
    // Predicated region
    $region26: #{lenet5_mcdropout_forward.11} parent=1 // pred_check
      _
    $region27: #{lenet5_mcdropout_forward.11} parent=1 // pred_check_branch
      %28 = sbr.rel (0) target = $region29
    $region28: #{lenet5_mcdropout_forward.11} parent=1 // pred_region
      _
    $region29: #{lenet5_mcdropout_forward.11} parent=1 // pred_fallthru
      _
    // Predicated region
    $region30: #{lenet5_mcdropout_forward.11} parent=1 // pred_check
      _
    $region31: #{lenet5_mcdropout_forward.11} parent=1 // pred_check_branch
      %30 = sbr.rel (0) target = $region33
    $region32: #{lenet5_mcdropout_forward.11} parent=1 // pred_region
      _
    $region33: #{lenet5_mcdropout_forward.11} parent=1 // pred_fallthru
      _
    // Predicated region
    $region34: #{lenet5_mcdropout_forward.11} parent=1 // pred_check
      _
    $region35: #{lenet5_mcdropout_forward.11} parent=1 // pred_check_branch
      %32 = sbr.rel (0) target = $region37
    $region36: #{lenet5_mcdropout_forward.11} parent=1 // pred_region
      _
    $region37: #{lenet5_mcdropout_forward.11} parent=1 // pred_fallthru
      _
    %v33 = vld [vmem:[%s0] sm:$0xff]
    %v34 = vld [vmem:[%s0 + $0x8] sm:$0xff]
    %v35 = vld [vmem:[%s0 + $0x10] sm:$0xff]
    %v36 = vld [vmem:[%s0 + $0x18] sm:$0xff]
    %v37 = vld [vmem:[%s0 + $0x20] sm:$0xff]
    %v38 = vld [vmem:[%s0 + $0x28] sm:$0xff]
    %v39 = vld [vmem:[%s0 + $0x30] sm:$0xff]
    %v40 = vld [vmem:[%s0 + $0x38] sm:$0xff]
    %v41 = vld [vmem:[%s1] sm:$0xff]
    %v42 = vld [vmem:[%s1 + $0x8] sm:$0xff]
    %v43 = vld [vmem:[%s1 + $0x10] sm:$0xff]
    %v44 = vld [vmem:[%s1 + $0x18] sm:$0xff]
    %v45 = vld [vmem:[%s1 + $0x20] sm:$0xff]
    %v46 = vld [vmem:[%s1 + $0x28] sm:$0xff]
    %v47 = vld [vmem:[%s1 + $0x30] sm:$0xff]
    %v48 = vld [vmem:[%s1 + $0x38] sm:$0xff]
    %v49 = vld [vmem:[%s1 + $0x40] sm:$0xff]
    %v50 = vld [vmem:[%s1 + $0x48] sm:$0xff]
    %v51 = vld [vmem:[%s1 + $0x50] sm:$0xff]
    %v52 = vld [vmem:[%s1 + $0x58] sm:$0xff]
    %v53 = vld [vmem:[%s1 + $0x60] sm:$0xff]
    %v54 = vld [vmem:[%s1 + $0x68] sm:$0xff]
    %v55 = vld [vmem:[%s1 + $0x70] sm:$0xff]
    %v56 = vld [vmem:[%s1 + $0x78] sm:$0xff]
    %v57 = vld [vmem:[%s1 + $0x80] sm:$0xff]
    %v58 = vld [vmem:[%s1 + $0x88] sm:$0xff]
    %v59 = vld [vmem:[%s1 + $0x90] sm:$0xff]
    %v60 = vld [vmem:[%s1 + $0x98] sm:$0xff]
    %v61 = vld [vmem:[%s1 + $0xa0] sm:$0xff]
    %v62 = vld [vmem:[%s1 + $0xa8] sm:$0xff]
    %v63 = vld [vmem:[%s1 + $0xb0] sm:$0xff]
    %v64 = vld [vmem:[%s1 + $0xb8] sm:$0xff]
    %v65 = vld [vmem:[%s1 + $0xc0] sm:$0xff]
    %v66 = vld [vmem:[%s1 + $0xc8] sm:$0xff]
    %v67 = vld [vmem:[%s1 + $0xd0] sm:$0xff]
    %v68 = vld [vmem:[%s1 + $0xd8] sm:$0xff]
    %v69 = vld [vmem:[%s1 + $0xe0] sm:$0xff]
    %v70 = vld [vmem:[%s1 + $0xe8] sm:$0xff]
    %v71 = vld [vmem:[%s1 + $0xf0] sm:$0xff]
    %v72 = vld [vmem:[%s1 + $0xf8] sm:$0xff]
    %v73 = vld [vmem:[%s1 + $0x100] sm:$0xff]
    %v74 = vld [vmem:[%s1 + $0x108] sm:$0xff]
    %v75 = vld [vmem:[%s1 + $0x110] sm:$0xff]
    %v76 = vld [vmem:[%s1 + $0x118] sm:$0xff]
    %v77 = vld [vmem:[%s1 + $0x120] sm:$0xff]
    %v78 = vld [vmem:[%s1 + $0x128] sm:$0xff]
    %v79 = vld [vmem:[%s1 + $0x130] sm:$0xff]
    %v80 = vld [vmem:[%s1 + $0x138] sm:$0xff]
    %v81 = vld [vmem:[%s1 + $0x140] sm:$0xff]
    %v82 = vld [vmem:[%s1 + $0x148] sm:$0xff]
    %v83 = vld [vmem:[%s1 + $0x150] sm:$0xff]
    %v84 = vld [vmem:[%s1 + $0x158] sm:$0xff]
    %v85 = vld [vmem:[%s1 + $0x160] sm:$0xff]
    %v86 = vld [vmem:[%s1 + $0x168] sm:$0xff]
    %v87 = vld [vmem:[%s1 + $0x170] sm:$0xff]
    %v88 = vld [vmem:[%s1 + $0x178] sm:$0xff]
    %v89 = vld [vmem:[%s1 + $0x180] sm:$0xff]
    %v90 = vld [vmem:[%s1 + $0x188] sm:$0xff]
    %v91 = vld [vmem:[%s2] sm:$0x1]
    %v93 = vlaneseq
    %v94 = vshrl.u32 %v93, 7
    %v95 = vsub.s32 0, %v94
    %v96 = vrot.slane %v91, %v95
    %vm98 = vcmask 130048
    %v100 = vsel %vm98, %v36, 0
    %v103 = vsel %vm98, %v40, 0
    %105 = vmatprep.subr.mxu0 0.0
    %106 = vmatpush1.msra.mxu0 %v41
    %107 = vmatprep.subr.mxu0 0.0
    %108 = vmatpush1.msra.mxu0 %v42
    %109 = vmatprep.subr.mxu0 0.0
    %110 = vmatpush1.msra.mxu0 %v43
    %111 = vmatprep.subr.mxu0 0.0
    %112 = vmatpush1.msra.mxu0 %v44
    %113 = vmatprep.subr.mxu0 0.0
    %114 = vmatpush1.msra.mxu0 %v45
    %115 = vmatprep.subr.mxu0 0.0
    %116 = vmatpush1.msra.mxu0 %v46
    %117 = vmatprep.subr.mxu0 0.0
    %118 = vmatpush1.msra.mxu0 %v47
    %119 = vmatprep.subr.mxu0 0.0
    %120 = vmatpush1.msra.mxu0 %v48
    %121 = vmatprep.subr.mxu0 0.0
    %122 = vmatpush1.msra.mxu0 %v49
    %123 = vmatprep.subr.mxu0 0.0
    %124 = vmatpush1.msra.mxu0 %v50
    %125 = vmatprep.subr.mxu0 0.0
    %126 = vmatpush1.msra.mxu0 %v51
    %127 = vmatprep.subr.mxu0 0.0
    %128 = vmatpush1.msra.mxu0 %v52
    %129 = vmatprep.subr.mxu0 0.0
    %130 = vmatpush1.msra.mxu0 %v53
    %131 = vmatprep.subr.mxu0 0.0
    %132 = vmatpush1.msra.mxu0 %v54
    %133 = vmatprep.subr.mxu0 0.0
    %134 = vmatpush1.msra.mxu0 %v55
    %135 = vmatprep.subr.mxu0 0.0
    %136 = vmatpush1.msra.mxu0 %v56
    %137 = vmatprep.subr.mxu0 0.0
    %138 = vmatpush1.msra.mxu0 %v57
    %139 = vmatprep.subr.mxu0 0.0
    %140 = vmatpush1.msra.mxu0 %v58
    %141 = vmatprep.subr.mxu0 0.0
    %142 = vmatpush1.msra.mxu0 %v59
    %143 = vmatprep.subr.mxu0 0.0
    %144 = vmatpush1.msra.mxu0 %v60
    %145 = vmatprep.subr.mxu0 0.0
    %146 = vmatpush1.msra.mxu0 %v61
    %147 = vmatprep.subr.mxu0 0.0
    %148 = vmatpush1.msra.mxu0 %v62
    %149 = vmatprep.subr.mxu0 0.0
    %150 = vmatpush1.msra.mxu0 %v63
    %151 = vmatprep.subr.mxu0 0.0
    %152 = vmatpush1.msra.mxu0 %v64
    %153 = vmatprep.subr.mxu0 0.0
    %154 = vmatpush1.msra.mxu0 %v65
    %155 = vmatprep.subr.mxu0 0.0
    %156 = vmatpush1.msra.mxu0 %v66
    %157 = vmatprep.subr.mxu0 0.0
    %158 = vmatpush1.msra.mxu0 %v67
    %159 = vmatprep.subr.mxu0 0.0
    %160 = vmatpush1.msra.mxu0 %v68
    %161 = vmatprep.subr.mxu0 0.0
    %162 = vmatpush1.msra.mxu0 %v69
    %163 = vmatprep.subr.mxu0 0.0
    %164 = vmatpush1.msra.mxu0 %v70
    %165 = vmatprep.subr.mxu0 0.0
    %166 = vmatpush1.msra.mxu0 %v71
    %167 = vmatprep.subr.mxu0 0.0
    %168 = vmatpush1.msra.mxu0 %v72
    %169 = vmatprep.mubr.f32.mxu0 %v34
    %170 = vmatmul.mubr.f32.gmra.mrb[0].mxu0 %v33
    %v171 = vpop.f32.mrb[0].mxu0
    %v172 = vadd.f32 %v96, %v171
    %v173 = vpop.f32.mrb[0].mxu0
    %174 = vmatprep.mubr.f32.mxu0 %v38
    %175 = vmatmul.mubr.f32.gmra.mrb[0].mxu0 %v37
    %v176 = vpop.f32.mrb[0].mxu0
    %v177 = vadd.f32 %v96, %v176
    %v178 = vpop.f32.mrb[0].mxu0
    %179 = vdwg.mxu0
    %180 = vmatprep.subr.mxu0 0.0
    %181 = vmatpush1.msra.mxu0 %v73
    %182 = vmatprep.subr.mxu0 0.0
    %183 = vmatpush1.msra.mxu0 %v74
    %184 = vmatprep.subr.mxu0 0.0
    %185 = vmatpush1.msra.mxu0 %v75
    %186 = vmatprep.subr.mxu0 0.0
    %187 = vmatpush1.msra.mxu0 %v76
    %188 = vmatprep.subr.mxu0 0.0
    %189 = vmatpush1.msra.mxu0 %v77
    %190 = vmatprep.subr.mxu0 0.0
    %191 = vmatpush1.msra.mxu0 %v78
    %192 = vmatprep.subr.mxu0 0.0
    %193 = vmatpush1.msra.mxu0 %v79
    %194 = vmatprep.subr.mxu0 0.0
    %195 = vmatpush1.msra.mxu0 %v80
    %196 = vmatprep.subr.mxu0 0.0
    %197 = vmatpush1.msra.mxu0 %v81
    %198 = vmatprep.subr.mxu0 0.0
    %199 = vmatpush1.msra.mxu0 %v82
    %200 = vmatprep.subr.mxu0 0.0
    %201 = vmatpush1.msra.mxu0 %v83
    %202 = vmatprep.subr.mxu0 0.0
    %203 = vmatpush1.msra.mxu0 %v84
    %204 = vmatprep.subr.mxu0 0.0
    %205 = vmatpush1.msra.mxu0 %v85
    %206 = vmatprep.subr.mxu0 0.0
    %207 = vmatpush1.msra.mxu0 %v86
    %208 = vmatprep.subr.mxu0 0.0
    %209 = vmatpush1.msra.mxu0 %v87
    %210 = vmatprep.subr.mxu0 0.0
    %211 = vmatpush1.msra.mxu0 %v88
    %212 = vmatprep.subr.mxu0 0.0
    %213 = vmatpush1.msra.mxu0 %v89
    %214 = vmatprep.subr.mxu0 0.0
    %215 = vmatpush1.msra.mxu0 %v90
    %216 = vmatprep.subr.mxu0 0.0
    %217 = vmatpush1.msra.mxu0 0.0
    %218 = vmatprep.subr.mxu0 0.0
    %219 = vmatpush1.msra.mxu0 0.0
    %220 = vmatprep.subr.mxu0 0.0
    %221 = vmatpush1.msra.mxu0 0.0
    %222 = vmatprep.subr.mxu0 0.0
    %223 = vmatpush1.msra.mxu0 0.0
    %224 = vmatprep.subr.mxu0 0.0
    %225 = vmatpush1.msra.mxu0 0.0
    %226 = vmatprep.subr.mxu0 0.0
    %227 = vmatpush1.msra.mxu0 0.0
    %228 = vmatprep.subr.mxu0 0.0
    %229 = vmatpush1.msra.mxu0 0.0
    %230 = vmatprep.subr.mxu0 0.0
    %231 = vmatpush1.msra.mxu0 0.0
    %232 = vmatprep.subr.mxu0 0.0
    %233 = vmatpush1.msra.mxu0 0.0
    %234 = vmatprep.subr.mxu0 0.0
    %235 = vmatpush1.msra.mxu0 0.0
    %236 = vmatprep.subr.mxu0 0.0
    %237 = vmatpush1.msra.mxu0 0.0
    %238 = vmatprep.subr.mxu0 0.0
    %239 = vmatpush1.msra.mxu0 0.0
    %240 = vmatprep.subr.mxu0 0.0
    %241 = vmatpush1.msra.mxu0 0.0
    %242 = vmatprep.subr.mxu0 0.0
    %243 = vmatpush1.msra.mxu0 0.0
    %244 = vmatprep.mubr.f32.mxu0 %v100
    %245 = vmatmul.mubr.f32.gmra.mrb[0].mxu0 %v35
    %v246 = vpop.f32.mrb[0].mxu0
    %v247 = vadd.f32 %v172, %v246
    %v248 = vpop.f32.mrb[0].mxu0
    %249 = vmatprep.mubr.f32.mxu0 %v103
    %250 = vmatmul.mubr.f32.gmra.mrb[0].mxu0 %v39
    %v251 = vpop.f32.mrb[0].mxu0
    %v252 = vadd.f32 %v177, %v251
    %v253 = vpop.f32.mrb[0].mxu0
    %254 = vdwg.mxu0
    %v255 = vld [vmem:[%s3] sm:$0xff]
    %v256 = vld [vmem:[%s3 + $0x8] sm:$0xff]
    %vm257 = vcmp.ge.u32.totalorder %v255, 1073741824
    %vm258 = vcmp.ge.u32.totalorder %v256, 1073741824
    %v259 = vmul.f32 %v247, 1.3333334
    %v260 = vmul.f32 %v252, 1.3333334
    %v261 = vsel %vm257, %v259, 0.0
    %v262 = vsel %vm258, %v260, 0.0
    %v263 = vtanh.pop %v261
    %v264 = vtanh.pop %v262
    %v265 = vld [vmem:[%s4] sm:$0xff]
    %v266 = vld [vmem:[%s4 + $0x8] sm:$0xff]
    %v267 = vld [vmem:[%s4 + $0x10] sm:$0xff]
    %v268 = vld [vmem:[%s4 + $0x18] sm:$0xff]
    %v269 = vld [vmem:[%s4 + $0x20] sm:$0xff]
    %v270 = vld [vmem:[%s4 + $0x28] sm:$0xff]
    %v271 = vld [vmem:[%s4 + $0x30] sm:$0xff]
    %v272 = vld [vmem:[%s4 + $0x38] sm:$0xff]
    %v273 = vld [vmem:[%s4 + $0x40] sm:$0xff]
    %v274 = vld [vmem:[%s4 + $0x48] sm:$0xff]
    %v275 = vld [vmem:[%s4 + $0x50] sm:$0xff]
    %v276 = vld [vmem:[%s4 + $0x58] sm:$0xff]
    %v277 = vld [vmem:[%s4 + $0x60] sm:$0xff]
    %v278 = vld [vmem:[%s4 + $0x68] sm:$0xff]
    %v279 = vld [vmem:[%s4 + $0x70] sm:$0xff]
    %v280 = vld [vmem:[%s4 + $0x78] sm:$0xff]
    %v281 = vld [vmem:[%s5] sm:$0x1]
    %v283 = vlaneseq
    %v284 = vshrl.u32 %v283, 7
    %v285 = vsub.s32 0, %v284
    %v286 = vrot.slane %v281, %v285
    %288 = vmatprep.subr.mxu0 0.0
    %289 = vmatpush1.msra.mxu0 %v265
    %290 = vmatprep.subr.mxu0 0.0
    %291 = vmatpush1.msra.mxu0 %v266
    %292 = vmatprep.subr.mxu0 0.0
    %293 = vmatpush1.msra.mxu0 %v267
    %294 = vmatprep.subr.mxu0 0.0
    %295 = vmatpush1.msra.mxu0 %v268
    %296 = vmatprep.subr.mxu0 0.0
    %297 = vmatpush1.msra.mxu0 %v269
    %298 = vmatprep.subr.mxu0 0.0
    %299 = vmatpush1.msra.mxu0 %v270
    %300 = vmatprep.subr.mxu0 0.0
    %301 = vmatpush1.msra.mxu0 %v271
    %302 = vmatprep.subr.mxu0 0.0
    %303 = vmatpush1.msra.mxu0 %v272
    %304 = vmatprep.subr.mxu0 0.0
    %305 = vmatpush1.msra.mxu0 %v273
    %306 = vmatprep.subr.mxu0 0.0
    %307 = vmatpush1.msra.mxu0 %v274
    %308 = vmatprep.subr.mxu0 0.0
    %309 = vmatpush1.msra.mxu0 %v275
    %310 = vmatprep.subr.mxu0 0.0
    %311 = vmatpush1.msra.mxu0 %v276
    %312 = vmatprep.subr.mxu0 0.0
    %313 = vmatpush1.msra.mxu0 %v277
    %314 = vmatprep.subr.mxu0 0.0
    %315 = vmatpush1.msra.mxu0 %v278
    %316 = vmatprep.subr.mxu0 0.0
    %317 = vmatpush1.msra.mxu0 %v279
    %318 = vmatprep.subr.mxu0 0.0
    %319 = vmatpush1.msra.mxu0 %v280
    %320 = vmatprep.subr.mxu0 0.0
    %321 = vmatpush1.msra.mxu0 0.0
    %322 = vmatprep.subr.mxu0 0.0
    %323 = vmatpush1.msra.mxu0 0.0
    %324 = vmatprep.subr.mxu0 0.0
    %325 = vmatpush1.msra.mxu0 0.0
    %326 = vmatprep.subr.mxu0 0.0
    %327 = vmatpush1.msra.mxu0 0.0
    %328 = vmatprep.subr.mxu0 0.0
    %329 = vmatpush1.msra.mxu0 0.0
    %330 = vmatprep.subr.mxu0 0.0
    %331 = vmatpush1.msra.mxu0 0.0
    %332 = vmatprep.subr.mxu0 0.0
    %333 = vmatpush1.msra.mxu0 0.0
    %334 = vmatprep.subr.mxu0 0.0
    %335 = vmatpush1.msra.mxu0 0.0
    %336 = vmatprep.subr.mxu0 0.0
    %337 = vmatpush1.msra.mxu0 0.0
    %338 = vmatprep.subr.mxu0 0.0
    %339 = vmatpush1.msra.mxu0 0.0
    %340 = vmatprep.subr.mxu0 0.0
    %341 = vmatpush1.msra.mxu0 0.0
    %342 = vmatprep.subr.mxu0 0.0
    %343 = vmatpush1.msra.mxu0 0.0
    %344 = vmatprep.subr.mxu0 0.0
    %345 = vmatpush1.msra.mxu0 0.0
    %346 = vmatprep.subr.mxu0 0.0
    %347 = vmatpush1.msra.mxu0 0.0
    %348 = vmatprep.subr.mxu0 0.0
    %349 = vmatpush1.msra.mxu0 0.0
    %350 = vmatprep.subr.mxu0 0.0
    %351 = vmatpush1.msra.mxu0 0.0
    %352 = vmatprep.mubr.f32.mxu0 0.0
    %353 = vmatmul.mubr.f32.gmra.mrb[0].mxu0 %v263
    %v354 = vpop.f32.mrb[0].mxu0
    %v355 = vadd.f32 %v286, %v354
    %v356 = vpop.f32.mrb[0].mxu0
    %357 = vmatprep.mubr.f32.mxu0 0.0
    %358 = vmatmul.mubr.f32.gmra.mrb[0].mxu0 %v264
    %v359 = vpop.f32.mrb[0].mxu0
    %v360 = vadd.f32 %v286, %v359
    %v361 = vpop.f32.mrb[0].mxu0
    %362 = vdwg.mxu0
    %v363 = vld [vmem:[%s6] sm:$0xff]
    %v364 = vld [vmem:[%s6 + $0x8] sm:$0xff]
    %vm365 = vcmp.ge.u32.totalorder %v363, 1073741824
    %vm366 = vcmp.ge.u32.totalorder %v364, 1073741824
    %v367 = vmul.f32 %v355, 1.3333334
    %v368 = vmul.f32 %v360, 1.3333334
    %v369 = vsel %vm365, %v367, 0.0
    %v370 = vsel %vm366, %v368, 0.0
    %v371 = vtanh.pop %v369
    %v372 = vtanh.pop %v370
    %v373 = vld [vmem:[%s7] sm:$0xff]
    %v374 = vld [vmem:[%s7 + $0x8] sm:$0xff]
    %v375 = vld [vmem:[%s7 + $0x10] sm:$0xff]
    %v376 = vld [vmem:[%s7 + $0x18] sm:$0xff]
    %v377 = vld [vmem:[%s7 + $0x20] sm:$0xff]
    %v378 = vld [vmem:[%s7 + $0x28] sm:$0xff]
    %v379 = vld [vmem:[%s7 + $0x30] sm:$0xff]
    %v380 = vld [vmem:[%s7 + $0x38] sm:$0xff]
    %v381 = vld [vmem:[%s7 + $0x40] sm:$0xff]
    %v382 = vld [vmem:[%s7 + $0x48] sm:$0xff]
    %v383 = vld [vmem:[%s7 + $0x50] sm:$0xff]
    %v384 = vld [vmem:[%s7 + $0x58] sm:$0xff]
    %v385 = vld [vmem:[%s7 + $0x60] sm:$0xff]
    %v386 = vld [vmem:[%s7 + $0x68] sm:$0xff]
    %v387 = vld [vmem:[%s7 + $0x70] sm:$0xff]
    %v388 = vld [vmem:[%s7 + $0x78] sm:$0xff]
    %v389 = vld [vmem:[%s8] sm:$0x1]
    %v391 = vlaneseq
    %v392 = vshrl.u32 %v391, 7
    %v393 = vsub.s32 0, %v392
    %v394 = vrot.slane %v389, %v393
    %396 = vmatprep.subr.mxu0 0.0
    %397 = vmatpush1.msra.mxu0 %v373
    %398 = vmatprep.subr.mxu0 0.0
    %399 = vmatpush1.msra.mxu0 %v374
    %400 = vmatprep.subr.mxu0 0.0
    %401 = vmatpush1.msra.mxu0 %v375
    %402 = vmatprep.subr.mxu0 0.0
    %403 = vmatpush1.msra.mxu0 %v376
    %404 = vmatprep.subr.mxu0 0.0
    %405 = vmatpush1.msra.mxu0 %v377
    %406 = vmatprep.subr.mxu0 0.0
    %407 = vmatpush1.msra.mxu0 %v378
    %408 = vmatprep.subr.mxu0 0.0
    %409 = vmatpush1.msra.mxu0 %v379
    %410 = vmatprep.subr.mxu0 0.0
    %411 = vmatpush1.msra.mxu0 %v380
    %412 = vmatprep.subr.mxu0 0.0
    %413 = vmatpush1.msra.mxu0 %v381
    %414 = vmatprep.subr.mxu0 0.0
    %415 = vmatpush1.msra.mxu0 %v382
    %416 = vmatprep.subr.mxu0 0.0
    %417 = vmatpush1.msra.mxu0 %v383
    %418 = vmatprep.subr.mxu0 0.0
    %419 = vmatpush1.msra.mxu0 %v384
    %420 = vmatprep.subr.mxu0 0.0
    %421 = vmatpush1.msra.mxu0 %v385
    %422 = vmatprep.subr.mxu0 0.0
    %423 = vmatpush1.msra.mxu0 %v386
    %424 = vmatprep.subr.mxu0 0.0
    %425 = vmatpush1.msra.mxu0 %v387
    %426 = vmatprep.subr.mxu0 0.0
    %427 = vmatpush1.msra.mxu0 %v388
    %428 = vmatprep.subr.mxu0 0.0
    %429 = vmatpush1.msra.mxu0 0.0
    %430 = vmatprep.subr.mxu0 0.0
    %431 = vmatpush1.msra.mxu0 0.0
    %432 = vmatprep.subr.mxu0 0.0
    %433 = vmatpush1.msra.mxu0 0.0
    %434 = vmatprep.subr.mxu0 0.0
    %435 = vmatpush1.msra.mxu0 0.0
    %436 = vmatprep.subr.mxu0 0.0
    %437 = vmatpush1.msra.mxu0 0.0
    %438 = vmatprep.subr.mxu0 0.0
    %439 = vmatpush1.msra.mxu0 0.0
    %440 = vmatprep.subr.mxu0 0.0
    %441 = vmatpush1.msra.mxu0 0.0
    %442 = vmatprep.subr.mxu0 0.0
    %443 = vmatpush1.msra.mxu0 0.0
    %444 = vmatprep.subr.mxu0 0.0
    %445 = vmatpush1.msra.mxu0 0.0
    %446 = vmatprep.subr.mxu0 0.0
    %447 = vmatpush1.msra.mxu0 0.0
    %448 = vmatprep.subr.mxu0 0.0
    %449 = vmatpush1.msra.mxu0 0.0
    %450 = vmatprep.subr.mxu0 0.0
    %451 = vmatpush1.msra.mxu0 0.0
    %452 = vmatprep.subr.mxu0 0.0
    %453 = vmatpush1.msra.mxu0 0.0
    %454 = vmatprep.subr.mxu0 0.0
    %455 = vmatpush1.msra.mxu0 0.0
    %456 = vmatprep.subr.mxu0 0.0
    %457 = vmatpush1.msra.mxu0 0.0
    %458 = vmatprep.subr.mxu0 0.0
    %459 = vmatpush1.msra.mxu0 0.0
    %460 = vmatprep.mubr.f32.mxu0 0.0
    %461 = vmatmul.mubr.f32.gmra.mrb[0].mxu0 %v371
    %v462 = vpop.f32.mrb[0].mxu0
    %v463 = vadd.f32 %v394, %v462
    %v464 = vpop.f32.mrb[0].mxu0
    %465 = vmatprep.mubr.f32.mxu0 0.0
    %466 = vmatmul.mubr.f32.gmra.mrb[0].mxu0 %v372
    %v467 = vpop.f32.mrb[0].mxu0
    %v468 = vadd.f32 %v394, %v467
    %v469 = vpop.f32.mrb[0].mxu0
    %470 = vdwg.mxu0
    %471 = vst [vmem:[#allocation2] sm:$0xff] %v463
    %472 = vst [vmem:[#allocation2 + $0x8] sm:$0xff] %v468
    // Predicated region
    $region38: #{lenet5_mcdropout_forward.11} parent=1 // pred_check
      _
    $region39: #{lenet5_mcdropout_forward.11} parent=1 // pred_check_branch
      %474 = sbr.rel (0) target = $region41
    $region40: #{lenet5_mcdropout_forward.11} parent=1 // pred_region
      %s476 = ssub.s32 256, 256
      %477 = vsyncadd [#allocation3], %s476
      %s478 = sshll.u32 [#allocation2], 4
      %s479 = int_to_ptr.vmem [resolvable:$true] %s478
      %484 = dma.vmem_to_hbm [thread:$0]  %s479, 256, %s9, [#allocation3], 128, 128, 8
    $region41: #{lenet5_mcdropout_forward.11} parent=1 // pred_fallthru
      _
    // Predicated region
    $region42: #{lenet5_mcdropout_forward.11} parent=1 // pred_check
      _
    $region43: #{lenet5_mcdropout_forward.11} parent=1 // pred_check_branch
      %486 = sbr.rel (0) target = $region45
    $region44: #{lenet5_mcdropout_forward.11} parent=1 // pred_region
      %487 = dma.done [#allocation3], 256
    $region45: #{lenet5_mcdropout_forward.11} parent=1 // pred_fallthru
      _
    %488 = vsyncpa [#allocation3], 1

</llo_original>
